<compile_context>
chip_gen: v5e
topology: v5e:2x2
jax: 0.10.0
libtpu: 0.0.40
codegen_flags: <defaults>
</compile_context>

<pallas_src>
import functools

import jax
import jax.numpy as jnp
from jax.experimental import pallas as pl
from jax.experimental.pallas import tpu as pltpu

C_MID = 64      # hidden channels of the residual block
KS = 3          # conv kernel size
SUB = 256       # output lanes per register-resident sub-chunk
LANES = 128


def _round_up(x, m):
    return (x + m - 1) // m * m


def _window(lo_ref, hi_ref, start, size, width):
    """Static (1, size) window [start, start+size) over two consecutive
    `width`-wide blocks (lo = block j, hi = block j+1) of the same flat row."""
    end = start + size
    if end <= width:
        return lo_ref[:, start:end]
    if start >= width:
        return hi_ref[:, start - width:end - width]
    return jnp.concatenate([lo_ref[:, start:width], hi_ref[:, :end - width]],
                           axis=1)


def _restorer_kernel(xa_ref, xb_ref, ma_ref, mb_ref, w1_ref, b1_ref, w2_ref,
                     b2_ref, o_ref, *, wp, chunk):
    """One grid step = one `chunk`-wide column block of the flat padded row.

    xa/xb_ref : (1, chunk) flat zero-embedded padded input, blocks j and j+1
    ma/mb_ref : (1, chunk) interior mask (1.0 at non-pad flat positions)
    w1_ref    : (64, 9)  conv1 taps, [c_out, dy*3+dx]
    b1_ref    : (64, 1)
    w2_ref    : (9, 64)  conv2 taps, [dy*3+dx, c_in]
    b2_ref    : (1,)     scalar bias in SMEM
    o_ref     : (1, chunk) flat conv2 output for this column block
    """
    halo = 2 * wp + 2                 # max tap offset (dy=dx=2)
    slab = SUB + halo                 # h1 / s width per sub-chunk
    n_sub = chunk // SUB

    # Weights are tiny; load once per grid step (hoisted out of the loop).
    w1 = w1_ref[...]                  # (64, 9)
    b1 = b1_ref[...]                  # (64, 1)
    w2 = w2_ref[...]                  # (9, 64)
    b2 = b2_ref[0]                    # scalar

    for k in range(n_sub):
        start = k * SUB
        # Static windows over the two resident blocks (no dynamic lane slices).
        xwin = _window(xa_ref, xb_ref, start, SUB + 2 * halo, chunk)  # (1, SUB+2*halo)
        mwin = _window(ma_ref, mb_ref, start, slab, chunk)            # (1, slab)

        # ---- conv1 (1 -> 64) + bias + ReLU: 9 VPU broadcast-FMAs into a
        # register-resident (64, slab) accumulator; tap 0 initialises.
        h1 = w1[:, 0:1] * xwin[:, 0:slab]
        for t in range(1, KS * KS):
            dy, dx = divmod(t, KS)
            off = dy * wp + dx
            h1 = h1 + w1[:, t:t + 1] * xwin[:, off:off + slab]
        h1 = jnp.maximum(h1 + b1, 0.0)

        # ---- conv2 (64 -> 1): channel contraction on the MXU.  The interior
        # mask is channel-independent, so masking the 9-row s is identical to
        # masking the 64-row h1 but far cheaper.
        # (MXU default precision is a single bf16 pass for f32; pass
        #  precision=HIGHEST here if strict f32 parity is required.)
        s = jnp.dot(w2, h1, preferred_element_type=jnp.float32)      # (9, slab)
        s = s * mwin

        # ---- 3x3 tap sum: 9 shifted adds; tap 0 also folds in b2.
        acc = s[0:1, 0:SUB] + b2
        for t in range(1, KS * KS):
            dy, dx = divmod(t, KS)
            off = dy * wp + dx
            acc = acc + s[t:t + 1, off:off + SUB]

        o_ref[:, start:start + SUB] = acc


def restorer_forward(lr_nchw, w1, b1, w2, b2):
    """lr_nchw: (N, 1, H, W) float32. Returns (N, 1, H, W) float32."""
    N, C, H, W = lr_nchw.shape
    assert C == 1, "Restorer expects single-channel input"

    hp, wp = H + 2, W + 2            # padded spatial dims (padding=1)
    P = hp * wp                      # flat size of one padded image
    halo = 2 * wp + 2

    # Outer column block: big enough that blocks j and j+1 always cover a
    # sub-chunk plus its halo (chunk >= 2*halo) and that per-grid-step work
    # amortises the ~0.35us step overhead.
    chunk = _round_up(max(2 * halo, 512), SUB)
    total = N * P                    # true flat output positions
    n_chunks = -(-total // chunk)
    L = (n_chunks + 1) * chunk       # +1 block so index map j+1 stays in bounds

    # ---- host-side packing: pad + flatten + embed (two pads total) ---------
    # Flat layout: output position p = n*P + r*wp + c; tap (dy,dx) of either
    # conv is then the contiguous read at p + dy*wp + dx (input embedded at
    # offset wp+1).
    x = lr_nchw[:, 0].astype(jnp.float32)                       # (N, H, W)
    xp = jnp.pad(x, ((0, 0), (1, 1), (1, 1))).reshape(-1)       # (N*P,)
    x_in = jnp.pad(xp, (wp + 1, L - (wp + 1) - total))[None]    # (1, L)

    interior = jnp.pad(jnp.ones((N, H, W), jnp.float32),
                       ((0, 0), (1, 1), (1, 1))).reshape(-1)
    mask = jnp.pad(interior, (0, L - total))[None]               # (1, L)

    # Weight repacking: PyTorch conv weight layout is (out, in, kh, kw).
    w1f = w1[:, 0, :, :].reshape(C_MID, KS * KS).astype(jnp.float32)   # (64, 9)
    w2f = jnp.transpose(w2[0], (1, 2, 0)).reshape(KS * KS, C_MID).astype(jnp.float32)
    b1f = b1.reshape(C_MID, 1).astype(jnp.float32)
    b2f = b2.reshape(1).astype(jnp.float32)

    kernel = functools.partial(_restorer_kernel, wp=wp, chunk=chunk)

    out_flat = pl.pallas_call(
        kernel,
        out_shape=jax.ShapeDtypeStruct((1, n_chunks * chunk), jnp.float32),
        grid_spec=pltpu.PrefetchScalarGridSpec(
            num_scalar_prefetch=0,
            grid=(n_chunks,),
            in_specs=[
                pl.BlockSpec((1, chunk), lambda j: (0, j)),        # x, block j
                pl.BlockSpec((1, chunk), lambda j: (0, j + 1)),    # x, block j+1
                pl.BlockSpec((1, chunk), lambda j: (0, j)),        # mask, j
                pl.BlockSpec((1, chunk), lambda j: (0, j + 1)),    # mask, j+1
                pl.BlockSpec((C_MID, KS * KS), lambda j: (0, 0)),  # w1
                pl.BlockSpec((C_MID, 1), lambda j: (0, 0)),        # b1
                pl.BlockSpec((KS * KS, C_MID), lambda j: (0, 0)),  # w2
                pl.BlockSpec(memory_space=pltpu.MemorySpace.SMEM), # b2 scalar
            ],
            out_specs=pl.BlockSpec((1, chunk), lambda j: (0, j)),
        ),
        compiler_params=pltpu.CompilerParams(
            dimension_semantics=("parallel",),
            vmem_limit_bytes=16 << 20),
    )(x_in, x_in, mask, mask, w1f, b1f, w2f, b2f)

    # out_flat[0, p] with p = n*P + r*wp + c is the result at true pixel (r, c)
    # (r < H, c < W) of image n; the rest is padding/alignment garbage dropped
    # here.
    out = out_flat[0, :total].reshape(N, hp, wp)[:, :H, :W]
    return out[:, None, :, :]                                   # back to NCHW


def _reference(lr_nchw, w1, b1, w2, b2):
    """Pure-JAX reference using lax.conv (NCHW, same padding)."""
    dn = jax.lax.conv_dimension_numbers(lr_nchw.shape, w1.shape,
                                        ("NCHW", "OIHW", "NCHW"))
    h = jax.lax.conv_general_dilated(lr_nchw, w1, (1, 1), "SAME",
                                     dimension_numbers=dn)
    h = jnp.maximum(h + b1.reshape(1, -1, 1, 1), 0.0)
    o = jax.lax.conv_general_dilated(h, w2, (1, 1), "SAME",
                                     dimension_numbers=dn)
    return o + b2.reshape(1, -1, 1, 1)


if __name__ == "__main__":
    key = jax.random.PRNGKey(0)
    k_x, k_w1, k_b1, k_w2, k_b2 = jax.random.split(key, 5)

    N, H, W = 2, 16, 16
    x = jax.random.normal(k_x, (N, 1, H, W), dtype=jnp.float32)

    # deterministic parameter init (PyTorch shapes; synthetic values)
    w1 = jax.random.normal(k_w1, (C_MID, 1, 3, 3), dtype=jnp.float32) * 0.1
    b1 = jax.random.normal(k_b1, (C_MID,), dtype=jnp.float32) * 0.1
    w2 = jax.random.normal(k_w2, (1, C_MID, 3, 3), dtype=jnp.float32) * 0.1
    b2 = jax.random.normal(k_b2, (1,), dtype=jnp.float32) * 0.1

    out = jax.block_until_ready(jax.jit(restorer_forward)(x, w1, b1, w2, b2))
    ref = jax.block_until_ready(_reference(x, w1, b1, w2, b2))

    assert out.shape == (N, 1, H, W), out.shape
    # conv2 runs on the MXU at default (single bf16 pass) precision for f32,
    # same as the lax.conv reference; allow a few e-3 of slack.
    err = float(jnp.max(jnp.abs(out - ref)))
    assert jnp.allclose(out, ref, atol=5e-3, rtol=5e-3), err

    print("KERNEL_OK")
</pallas_src>

<mosaic_0001>
module attributes {stable_mosaic.version = 11 : i64} {
  func.func @_restorer_kernel(%arg0: i32, %arg1: memref<1x512xf32, #tpu.memory_space<vmem>>, %arg2: memref<1x512xf32, #tpu.memory_space<vmem>>, %arg3: memref<1x512xf32, #tpu.memory_space<vmem>>, %arg4: memref<1x512xf32, #tpu.memory_space<vmem>>, %arg5: memref<64x9xf32, #tpu.memory_space<vmem>>, %arg6: memref<64x1xf32, #tpu.memory_space<vmem>>, %arg7: memref<9x64xf32, #tpu.memory_space<vmem>>, %arg8: memref<1xf32, #tpu.memory_space<smem>>, %arg9: memref<1x512xf32, #tpu.memory_space<vmem>>) attributes {dimension_semantics = [#tpu.dimension_semantics<parallel>], iteration_bounds = array<i64: 2>, scalar_prefetch = 0 : i64, scratch_operands = 0 : i64, tpu.core_type = #tpu.core_type<tc>, window_params = [{transform_indices = @transform_0, window_bounds = array<i64: 1, 512>}, {transform_indices = @transform_1, window_bounds = array<i64: 1, 512>}, {transform_indices = @transform_2, window_bounds = array<i64: 1, 512>}, {transform_indices = @transform_3, window_bounds = array<i64: 1, 512>}, {pipeline_mode = #tpu.pipeline_mode<synchronous>, transform_indices = @transform_4, window_bounds = array<i64: 64, 9>}, {pipeline_mode = #tpu.pipeline_mode<synchronous>, transform_indices = @transform_5, window_bounds = array<i64: 64, 1>}, {pipeline_mode = #tpu.pipeline_mode<synchronous>, transform_indices = @transform_6, window_bounds = array<i64: 9, 64>}, {transform_indices = @transform_7, window_bounds = array<i64: 1>}, {transform_indices = @transform_8, window_bounds = array<i64: 1, 512>}]} {
    %c0 = arith.constant 0 : index
    %c0_0 = arith.constant 0 : index
    %0 = vector.load %arg5[%c0, %c0_0] : memref<64x9xf32, #tpu.memory_space<vmem>>, vector<64x9xf32>
    %c0_1 = arith.constant 0 : index
    %c0_2 = arith.constant 0 : index
    %1 = vector.load %arg6[%c0_1, %c0_2] : memref<64x1xf32, #tpu.memory_space<vmem>>, vector<64x1xf32>
    %c0_3 = arith.constant 0 : index
    %c0_4 = arith.constant 0 : index
    %2 = vector.load %arg7[%c0_3, %c0_4] : memref<9x64xf32, #tpu.memory_space<vmem>>, vector<9x64xf32>
    %c0_5 = arith.constant 0 : index
    %3 = memref.load %arg8[%c0_5] : memref<1xf32, #tpu.memory_space<smem>>
    %c0_6 = arith.constant 0 : index
    %c0_7 = arith.constant 0 : index
    %4 = vector.load %arg1[%c0_6, %c0_7] : memref<1x512xf32, #tpu.memory_space<vmem>>, vector<1x332xf32>
    %c0_8 = arith.constant 0 : index
    %c0_9 = arith.constant 0 : index
    %5 = vector.load %arg3[%c0_8, %c0_9] : memref<1x512xf32, #tpu.memory_space<vmem>>, vector<1x294xf32>
    %6 = vector.extract_strided_slice %0 {offsets = [0, 0], sizes = [64, 1], strides = [1, 1]} : vector<64x9xf32> to vector<64x1xf32>
    %7 = vector.extract_strided_slice %4 {offsets = [0, 0], sizes = [1, 294], strides = [1, 1]} : vector<1x332xf32> to vector<1x294xf32>
    %8 = vector.broadcast %6 : vector<64x1xf32> to vector<64x294xf32>
    %9 = vector.broadcast %7 : vector<1x294xf32> to vector<64x294xf32>
    %10 = arith.mulf %8, %9 : vector<64x294xf32>
    %11 = vector.extract_strided_slice %0 {offsets = [0, 1], sizes = [64, 1], strides = [1, 1]} : vector<64x9xf32> to vector<64x1xf32>
    %12 = vector.extract_strided_slice %4 {offsets = [0, 1], sizes = [1, 294], strides = [1, 1]} : vector<1x332xf32> to vector<1x294xf32>
    %13 = vector.broadcast %11 : vector<64x1xf32> to vector<64x294xf32>
    %14 = vector.broadcast %12 : vector<1x294xf32> to vector<64x294xf32>
    %15 = arith.mulf %13, %14 : vector<64x294xf32>
    %16 = arith.addf %10, %15 : vector<64x294xf32>
    %17 = vector.extract_strided_slice %0 {offsets = [0, 2], sizes = [64, 1], strides = [1, 1]} : vector<64x9xf32> to vector<64x1xf32>
    %18 = vector.extract_strided_slice %4 {offsets = [0, 2], sizes = [1, 294], strides = [1, 1]} : vector<1x332xf32> to vector<1x294xf32>
    %19 = vector.broadcast %17 : vector<64x1xf32> to vector<64x294xf32>
    %20 = vector.broadcast %18 : vector<1x294xf32> to vector<64x294xf32>
    %21 = arith.mulf %19, %20 : vector<64x294xf32>
    %22 = arith.addf %16, %21 : vector<64x294xf32>
    %23 = vector.extract_strided_slice %0 {offsets = [0, 3], sizes = [64, 1], strides = [1, 1]} : vector<64x9xf32> to vector<64x1xf32>
    %24 = vector.extract_strided_slice %4 {offsets = [0, 18], sizes = [1, 294], strides = [1, 1]} : vector<1x332xf32> to vector<1x294xf32>
    %25 = vector.broadcast %23 : vector<64x1xf32> to vector<64x294xf32>
    %26 = vector.broadcast %24 : vector<1x294xf32> to vector<64x294xf32>
    %27 = arith.mulf %25, %26 : vector<64x294xf32>
    %28 = arith.addf %22, %27 : vector<64x294xf32>
    %29 = vector.extract_strided_slice %0 {offsets = [0, 4], sizes = [64, 1], strides = [1, 1]} : vector<64x9xf32> to vector<64x1xf32>
    %30 = vector.extract_strided_slice %4 {offsets = [0, 19], sizes = [1, 294], strides = [1, 1]} : vector<1x332xf32> to vector<1x294xf32>
    %31 = vector.broadcast %29 : vector<64x1xf32> to vector<64x294xf32>
    %32 = vector.broadcast %30 : vector<1x294xf32> to vector<64x294xf32>
    %33 = arith.mulf %31, %32 : vector<64x294xf32>
    %34 = arith.addf %28, %33 : vector<64x294xf32>
    %35 = vector.extract_strided_slice %0 {offsets = [0, 5], sizes = [64, 1], strides = [1, 1]} : vector<64x9xf32> to vector<64x1xf32>
    %36 = vector.extract_strided_slice %4 {offsets = [0, 20], sizes = [1, 294], strides = [1, 1]} : vector<1x332xf32> to vector<1x294xf32>
    %37 = vector.broadcast %35 : vector<64x1xf32> to vector<64x294xf32>
    %38 = vector.broadcast %36 : vector<1x294xf32> to vector<64x294xf32>
    %39 = arith.mulf %37, %38 : vector<64x294xf32>
    %40 = arith.addf %34, %39 : vector<64x294xf32>
    %41 = vector.extract_strided_slice %0 {offsets = [0, 6], sizes = [64, 1], strides = [1, 1]} : vector<64x9xf32> to vector<64x1xf32>
    %42 = vector.extract_strided_slice %4 {offsets = [0, 36], sizes = [1, 294], strides = [1, 1]} : vector<1x332xf32> to vector<1x294xf32>
    %43 = vector.broadcast %41 : vector<64x1xf32> to vector<64x294xf32>
    %44 = vector.broadcast %42 : vector<1x294xf32> to vector<64x294xf32>
    %45 = arith.mulf %43, %44 : vector<64x294xf32>
    %46 = arith.addf %40, %45 : vector<64x294xf32>
    %47 = vector.extract_strided_slice %0 {offsets = [0, 7], sizes = [64, 1], strides = [1, 1]} : vector<64x9xf32> to vector<64x1xf32>
    %48 = vector.extract_strided_slice %4 {offsets = [0, 37], sizes = [1, 294], strides = [1, 1]} : vector<1x332xf32> to vector<1x294xf32>
    %49 = vector.broadcast %47 : vector<64x1xf32> to vector<64x294xf32>
    %50 = vector.broadcast %48 : vector<1x294xf32> to vector<64x294xf32>
    %51 = arith.mulf %49, %50 : vector<64x294xf32>
    %52 = arith.addf %46, %51 : vector<64x294xf32>
    %53 = vector.extract_strided_slice %0 {offsets = [0, 8], sizes = [64, 1], strides = [1, 1]} : vector<64x9xf32> to vector<64x1xf32>
    %54 = vector.extract_strided_slice %4 {offsets = [0, 38], sizes = [1, 294], strides = [1, 1]} : vector<1x332xf32> to vector<1x294xf32>
    %55 = vector.broadcast %53 : vector<64x1xf32> to vector<64x294xf32>
    %56 = vector.broadcast %54 : vector<1x294xf32> to vector<64x294xf32>
    %57 = arith.mulf %55, %56 : vector<64x294xf32>
    %58 = arith.addf %52, %57 : vector<64x294xf32>
    %59 = vector.broadcast %1 : vector<64x1xf32> to vector<64x294xf32>
    %60 = arith.addf %58, %59 : vector<64x294xf32>
    %cst = arith.constant 0.000000e+00 : f32
    %61 = vector.broadcast %cst : f32 to vector<64x294xf32>
    %62 = arith.maximumf %60, %61 : vector<64x294xf32>
    %cst_10 = arith.constant dense<0.000000e+00> : vector<9x294xf32>
    %63 = tpu.matmul %2, %62, %cst_10 {dimension_numbers = #tpu.dot_dimension_numbers<[1], [0], [0], [1], [0, 0, 1, 1], [], []>} : vector<9x64xf32>, vector<64x294xf32>, vector<9x294xf32> -> vector<9x294xf32>
    %64 = vector.broadcast %5 : vector<1x294xf32> to vector<9x294xf32>
    %65 = arith.mulf %63, %64 : vector<9x294xf32>
    %66 = vector.extract_strided_slice %65 {offsets = [0, 0], sizes = [1, 256], strides = [1, 1]} : vector<9x294xf32> to vector<1x256xf32>
    %67 = vector.broadcast %3 : f32 to vector<1x256xf32>
    %68 = arith.addf %66, %67 : vector<1x256xf32>
    %69 = vector.extract_strided_slice %65 {offsets = [1, 1], sizes = [1, 256], strides = [1, 1]} : vector<9x294xf32> to vector<1x256xf32>
    %70 = arith.addf %68, %69 : vector<1x256xf32>
    %71 = vector.extract_strided_slice %65 {offsets = [2, 2], sizes = [1, 256], strides = [1, 1]} : vector<9x294xf32> to vector<1x256xf32>
    %72 = arith.addf %70, %71 : vector<1x256xf32>
    %73 = vector.extract_strided_slice %65 {offsets = [3, 18], sizes = [1, 256], strides = [1, 1]} : vector<9x294xf32> to vector<1x256xf32>
    %74 = arith.addf %72, %73 : vector<1x256xf32>
    %75 = vector.extract_strided_slice %65 {offsets = [4, 19], sizes = [1, 256], strides = [1, 1]} : vector<9x294xf32> to vector<1x256xf32>
    %76 = arith.addf %74, %75 : vector<1x256xf32>
    %77 = vector.extract_strided_slice %65 {offsets = [5, 20], sizes = [1, 256], strides = [1, 1]} : vector<9x294xf32> to vector<1x256xf32>
    %78 = arith.addf %76, %77 : vector<1x256xf32>
    %79 = vector.extract_strided_slice %65 {offsets = [6, 36], sizes = [1, 256], strides = [1, 1]} : vector<9x294xf32> to vector<1x256xf32>
    %80 = arith.addf %78, %79 : vector<1x256xf32>
    %81 = vector.extract_strided_slice %65 {offsets = [7, 37], sizes = [1, 256], strides = [1, 1]} : vector<9x294xf32> to vector<1x256xf32>
    %82 = arith.addf %80, %81 : vector<1x256xf32>
    %83 = vector.extract_strided_slice %65 {offsets = [8, 38], sizes = [1, 256], strides = [1, 1]} : vector<9x294xf32> to vector<1x256xf32>
    %84 = arith.addf %82, %83 : vector<1x256xf32>
    %c0_11 = arith.constant 0 : index
    %c0_12 = arith.constant 0 : index
    %85 = vector.load %arg9[%c0_11, %c0_12] : memref<1x512xf32, #tpu.memory_space<vmem>>, vector<1x256xf32>
    tpu.vector_store %arg9[%c0_11, %c0_12], %84 {strides = array<i32>} : memref<1x512xf32, #tpu.memory_space<vmem>>, vector<1x256xf32>,
    %c0_13 = arith.constant 0 : index
    %c256 = arith.constant 256 : index
    %86 = vector.load %arg1[%c0_13, %c256] : memref<1x512xf32, #tpu.memory_space<vmem>>, vector<1x256xf32>
    %c0_14 = arith.constant 0 : index
    %c0_15 = arith.constant 0 : index
    %87 = vector.load %arg2[%c0_14, %c0_15] : memref<1x512xf32, #tpu.memory_space<vmem>>, vector<1x76xf32>
    %88 = tpu.concatenate %86, %87 in 1 : vector<1x256xf32>, vector<1x76xf32> -> vector<1x332xf32>
    %c0_16 = arith.constant 0 : index
    %c256_17 = arith.constant 256 : index
    %89 = vector.load %arg3[%c0_16, %c256_17] : memref<1x512xf32, #tpu.memory_space<vmem>>, vector<1x256xf32>
    %c0_18 = arith.constant 0 : index
    %c0_19 = arith.constant 0 : index
    %90 = vector.load %arg4[%c0_18, %c0_19] : memref<1x512xf32, #tpu.memory_space<vmem>>, vector<1x38xf32>
    %91 = tpu.concatenate %89, %90 in 1 : vector<1x256xf32>, vector<1x38xf32> -> vector<1x294xf32>
    %92 = vector.extract_strided_slice %0 {offsets = [0, 0], sizes = [64, 1], strides = [1, 1]} : vector<64x9xf32> to vector<64x1xf32>
    %93 = vector.extract_strided_slice %88 {offsets = [0, 0], sizes = [1, 294], strides = [1, 1]} : vector<1x332xf32> to vector<1x294xf32>
    %94 = vector.broadcast %92 : vector<64x1xf32> to vector<64x294xf32>
    %95 = vector.broadcast %93 : vector<1x294xf32> to vector<64x294xf32>
    %96 = arith.mulf %94, %95 : vector<64x294xf32>
    %97 = vector.extract_strided_slice %0 {offsets = [0, 1], sizes = [64, 1], strides = [1, 1]} : vector<64x9xf32> to vector<64x1xf32>
    %98 = vector.extract_strided_slice %88 {offsets = [0, 1], sizes = [1, 294], strides = [1, 1]} : vector<1x332xf32> to vector<1x294xf32>
    %99 = vector.broadcast %97 : vector<64x1xf32> to vector<64x294xf32>
    %100 = vector.broadcast %98 : vector<1x294xf32> to vector<64x294xf32>
    %101 = arith.mulf %99, %100 : vector<64x294xf32>
    %102 = arith.addf %96, %101 : vector<64x294xf32>
    %103 = vector.extract_strided_slice %0 {offsets = [0, 2], sizes = [64, 1], strides = [1, 1]} : vector<64x9xf32> to vector<64x1xf32>
    %104 = vector.extract_strided_slice %88 {offsets = [0, 2], sizes = [1, 294], strides = [1, 1]} : vector<1x332xf32> to vector<1x294xf32>
    %105 = vector.broadcast %103 : vector<64x1xf32> to vector<64x294xf32>
    %106 = vector.broadcast %104 : vector<1x294xf32> to vector<64x294xf32>
    %107 = arith.mulf %105, %106 : vector<64x294xf32>
    %108 = arith.addf %102, %107 : vector<64x294xf32>
    %109 = vector.extract_strided_slice %0 {offsets = [0, 3], sizes = [64, 1], strides = [1, 1]} : vector<64x9xf32> to vector<64x1xf32>
    %110 = vector.extract_strided_slice %88 {offsets = [0, 18], sizes = [1, 294], strides = [1, 1]} : vector<1x332xf32> to vector<1x294xf32>
    %111 = vector.broadcast %109 : vector<64x1xf32> to vector<64x294xf32>
    %112 = vector.broadcast %110 : vector<1x294xf32> to vector<64x294xf32>
    %113 = arith.mulf %111, %112 : vector<64x294xf32>
    %114 = arith.addf %108, %113 : vector<64x294xf32>
    %115 = vector.extract_strided_slice %0 {offsets = [0, 4], sizes = [64, 1], strides = [1, 1]} : vector<64x9xf32> to vector<64x1xf32>
    %116 = vector.extract_strided_slice %88 {offsets = [0, 19], sizes = [1, 294], strides = [1, 1]} : vector<1x332xf32> to vector<1x294xf32>
    %117 = vector.broadcast %115 : vector<64x1xf32> to vector<64x294xf32>
    %118 = vector.broadcast %116 : vector<1x294xf32> to vector<64x294xf32>
    %119 = arith.mulf %117, %118 : vector<64x294xf32>
    %120 = arith.addf %114, %119 : vector<64x294xf32>
    %121 = vector.extract_strided_slice %0 {offsets = [0, 5], sizes = [64, 1], strides = [1, 1]} : vector<64x9xf32> to vector<64x1xf32>
    %122 = vector.extract_strided_slice %88 {offsets = [0, 20], sizes = [1, 294], strides = [1, 1]} : vector<1x332xf32> to vector<1x294xf32>
    %123 = vector.broadcast %121 : vector<64x1xf32> to vector<64x294xf32>
    %124 = vector.broadcast %122 : vector<1x294xf32> to vector<64x294xf32>
    %125 = arith.mulf %123, %124 : vector<64x294xf32>
    %126 = arith.addf %120, %125 : vector<64x294xf32>
    %127 = vector.extract_strided_slice %0 {offsets = [0, 6], sizes = [64, 1], strides = [1, 1]} : vector<64x9xf32> to vector<64x1xf32>
    %128 = vector.extract_strided_slice %88 {offsets = [0, 36], sizes = [1, 294], strides = [1, 1]} : vector<1x332xf32> to vector<1x294xf32>
    %129 = vector.broadcast %127 : vector<64x1xf32> to vector<64x294xf32>
    %130 = vector.broadcast %128 : vector<1x294xf32> to vector<64x294xf32>
    %131 = arith.mulf %129, %130 : vector<64x294xf32>
    %132 = arith.addf %126, %131 : vector<64x294xf32>
    %133 = vector.extract_strided_slice %0 {offsets = [0, 7], sizes = [64, 1], strides = [1, 1]} : vector<64x9xf32> to vector<64x1xf32>
    %134 = vector.extract_strided_slice %88 {offsets = [0, 37], sizes = [1, 294], strides = [1, 1]} : vector<1x332xf32> to vector<1x294xf32>
    %135 = vector.broadcast %133 : vector<64x1xf32> to vector<64x294xf32>
    %136 = vector.broadcast %134 : vector<1x294xf32> to vector<64x294xf32>
    %137 = arith.mulf %135, %136 : vector<64x294xf32>
    %138 = arith.addf %132, %137 : vector<64x294xf32>
    %139 = vector.extract_strided_slice %0 {offsets = [0, 8], sizes = [64, 1], strides = [1, 1]} : vector<64x9xf32> to vector<64x1xf32>
    %140 = vector.extract_strided_slice %88 {offsets = [0, 38], sizes = [1, 294], strides = [1, 1]} : vector<1x332xf32> to vector<1x294xf32>
    %141 = vector.broadcast %139 : vector<64x1xf32> to vector<64x294xf32>
    %142 = vector.broadcast %140 : vector<1x294xf32> to vector<64x294xf32>
    %143 = arith.mulf %141, %142 : vector<64x294xf32>
    %144 = arith.addf %138, %143 : vector<64x294xf32>
    %145 = vector.broadcast %1 : vector<64x1xf32> to vector<64x294xf32>
    %146 = arith.addf %144, %145 : vector<64x294xf32>
    %cst_20 = arith.constant 0.000000e+00 : f32
    %147 = vector.broadcast %cst_20 : f32 to vector<64x294xf32>
    %148 = arith.maximumf %146, %147 : vector<64x294xf32>
    %cst_21 = arith.constant dense<0.000000e+00> : vector<9x294xf32>
    %149 = tpu.matmul %2, %148, %cst_21 {dimension_numbers = #tpu.dot_dimension_numbers<[1], [0], [0], [1], [0, 0, 1, 1], [], []>} : vector<9x64xf32>, vector<64x294xf32>, vector<9x294xf32> -> vector<9x294xf32>
    %150 = vector.broadcast %91 : vector<1x294xf32> to vector<9x294xf32>
    %151 = arith.mulf %149, %150 : vector<9x294xf32>
    %152 = vector.extract_strided_slice %151 {offsets = [0, 0], sizes = [1, 256], strides = [1, 1]} : vector<9x294xf32> to vector<1x256xf32>
    %153 = vector.broadcast %3 : f32 to vector<1x256xf32>
    %154 = arith.addf %152, %153 : vector<1x256xf32>
    %155 = vector.extract_strided_slice %151 {offsets = [1, 1], sizes = [1, 256], strides = [1, 1]} : vector<9x294xf32> to vector<1x256xf32>
    %156 = arith.addf %154, %155 : vector<1x256xf32>
    %157 = vector.extract_strided_slice %151 {offsets = [2, 2], sizes = [1, 256], strides = [1, 1]} : vector<9x294xf32> to vector<1x256xf32>
    %158 = arith.addf %156, %157 : vector<1x256xf32>
    %159 = vector.extract_strided_slice %151 {offsets = [3, 18], sizes = [1, 256], strides = [1, 1]} : vector<9x294xf32> to vector<1x256xf32>
    %160 = arith.addf %158, %159 : vector<1x256xf32>
    %161 = vector.extract_strided_slice %151 {offsets = [4, 19], sizes = [1, 256], strides = [1, 1]} : vector<9x294xf32> to vector<1x256xf32>
    %162 = arith.addf %160, %161 : vector<1x256xf32>
    %163 = vector.extract_strided_slice %151 {offsets = [5, 20], sizes = [1, 256], strides = [1, 1]} : vector<9x294xf32> to vector<1x256xf32>
    %164 = arith.addf %162, %163 : vector<1x256xf32>
    %165 = vector.extract_strided_slice %151 {offsets = [6, 36], sizes = [1, 256], strides = [1, 1]} : vector<9x294xf32> to vector<1x256xf32>
    %166 = arith.addf %164, %165 : vector<1x256xf32>
    %167 = vector.extract_strided_slice %151 {offsets = [7, 37], sizes = [1, 256], strides = [1, 1]} : vector<9x294xf32> to vector<1x256xf32>
    %168 = arith.addf %166, %167 : vector<1x256xf32>
    %169 = vector.extract_strided_slice %151 {offsets = [8, 38], sizes = [1, 256], strides = [1, 1]} : vector<9x294xf32> to vector<1x256xf32>
    %170 = arith.addf %168, %169 : vector<1x256xf32>
    %c0_22 = arith.constant 0 : index
    %c256_23 = arith.constant 256 : index
    %171 = vector.load %arg9[%c0_22, %c256_23] : memref<1x512xf32, #tpu.memory_space<vmem>>, vector<1x256xf32>
    tpu.vector_store %arg9[%c0_22, %c256_23], %170 {strides = array<i32>} : memref<1x512xf32, #tpu.memory_space<vmem>>, vector<1x256xf32>,
    return
  }
  func.func @transform_0(%arg0: i32) -> (i32, i32) {
    %c0_i32 = arith.constant 0 : i32
    %c0_i32_0 = arith.constant 0 : i32
    return %c0_i32, %arg0 : i32, i32
  }
  func.func @transform_1(%arg0: i32) -> (i32, i32) {
    %c1_i32 = arith.constant 1 : i32
    %0 = arith.addi %arg0, %c1_i32 : i32
    %c0_i32 = arith.constant 0 : i32
    %c0_i32_0 = arith.constant 0 : i32
    return %c0_i32, %0 : i32, i32
  }
  func.func @transform_2(%arg0: i32) -> (i32, i32) {
    %c0_i32 = arith.constant 0 : i32
    %c0_i32_0 = arith.constant 0 : i32
    return %c0_i32, %arg0 : i32, i32
  }
  func.func @transform_3(%arg0: i32) -> (i32, i32) {
    %c1_i32 = arith.constant 1 : i32
    %0 = arith.addi %arg0, %c1_i32 : i32
    %c0_i32 = arith.constant 0 : i32
    %c0_i32_0 = arith.constant 0 : i32
    return %c0_i32, %0 : i32, i32
  }
  func.func @transform_4(%arg0: i32) -> (i32, i32) {
    %c0_i32 = arith.constant 0 : i32
    %c0_i32_0 = arith.constant 0 : i32
    %c0_i32_1 = arith.constant 0 : i32
    return %c0_i32, %c0_i32_0 : i32, i32
  }
  func.func @transform_5(%arg0: i32) -> (i32, i32) {
    %c0_i32 = arith.constant 0 : i32
    %c0_i32_0 = arith.constant 0 : i32
    %c0_i32_1 = arith.constant 0 : i32
    return %c0_i32, %c0_i32_0 : i32, i32
  }
  func.func @transform_6(%arg0: i32) -> (i32, i32) {
    %c0_i32 = arith.constant 0 : i32
    %c0_i32_0 = arith.constant 0 : i32
    %c0_i32_1 = arith.constant 0 : i32
    return %c0_i32, %c0_i32_0 : i32, i32
  }
  func.func @transform_7(%arg0: i32) -> i32 {
    %c0_i32 = arith.constant 0 : i32
    %c0_i32_0 = arith.constant 0 : i32
    return %c0_i32 : i32
  }
  func.func @transform_8(%arg0: i32) -> (i32, i32) {
    %c0_i32 = arith.constant 0 : i32
    %c0_i32_0 = arith.constant 0 : i32
    return %c0_i32, %arg0 : i32, i32
  }
}

</mosaic_0001>

<llo_original>
// kernel: squeeze.5
$region0: #{squeeze.5}
  %s0 = inlined_call_operand.vmem [shape: f32[64,3,3], index: 0, kind: input, shape index: {}]
  %s1 = inlined_call_operand.vmem [shape: f32[64,9], index: 1, kind: output, shape index: {}]
  $region1: #{squeeze.5} parent=0
    #allocation0 [shape = 'u8[12288]{0}', space=vmem, size = 0x3000, scoped, tag = 'scoped mem for input reshape']
    %s3 = ssub.s32 16, 1
    %s4 = scalar_lea.vmem %s0, 8
    %v5 = vld [vmem:[%s4] sm:%s3]
    %s6 = scalar_lea.vmem [#allocation0], 16
    %7 = vst [vmem:[%s6] sm:%s3] %v5
    %s8 = scalar_lea.vmem %s0, 4
    %v9 = vld [vmem:[%s8] sm:%s3]
    %s10 = scalar_lea.vmem [#allocation0], 8
    %11 = vst [vmem:[%s10] sm:%s3] %v9
    %v12 = vld [vmem:[%s0] sm:%s3]
    %13 = vst [vmem:[#allocation0] sm:%s3] %v12
    %v14 = vld [vmem:[#allocation0] sm:$0x7]
    %vm15 = vcmask 523264
    %16 = vst.msk [vmem:[%s1] sm:$0x7] %vm15, %v14
    %s17 = scalar_lea.vmem [#allocation0], 8
    %v18 = vld [vmem:[%s17] sm:$0x7]
    %vm19 = vcmask 523264
    %s20 = scalar_lea.vmem %s1, 3
    %21 = vst.msk [vmem:[%s20] sm:$0x7] %vm19, %v18
    %s22 = scalar_lea.vmem [#allocation0], 16
    %v23 = vld [vmem:[%s22] sm:$0x7]
    %vm24 = vcmask 523264
    %s25 = scalar_lea.vmem %s1, 6
    %26 = vst.msk [vmem:[%s25] sm:$0x7] %vm24, %v23

// kernel: squeeze.7
$region0: #{squeeze.7}
  %s0 = inlined_call_operand.vmem [shape: f32[648], index: 0, kind: input, shape index: {}]
  %s1 = inlined_call_operand.vmem [shape: f32[2,18,18], index: 1, kind: output, shape index: {}]
  %v2 = vld [vmem:[%s0] sm:$0x1]
  %vm3 = vcmask 146432
  %4 = vst.msk [vmem:[%s1] sm:$0x1] %vm3, %v2
  %s5 = scalar_lea.vmem %s0, 4
  %v6 = vld [vmem:[%s5] sm:$0x1]
  %7 = vrot.lane.b32.xlu0 %v6, 118
  %v8 = vpop.permute.xlu0 %7
  %vm9 = vcmask 146432
  %s10 = scalar_lea.vmem %s1, 35
  %11 = vst.msk [vmem:[%s10] sm:$0x1] %vm9, %v8
  %s12 = scalar_lea.vmem %s0, 3
  %v13 = vld [vmem:[%s12] sm:$0x1]
  %14 = vrot.lane.b32.xlu0 %v13, 116
  %v15 = vpop.permute.xlu0 %14
  %vm16 = vcmask 146432
  %s17 = scalar_lea.vmem %s1, 28
  %18 = vst.msk [vmem:[%s17] sm:$0x1] %vm16, %v15
  %s19 = scalar_lea.vmem %s0, 2
  %v20 = vld [vmem:[%s19] sm:$0x1]
  %21 = vrot.lane.b32.xlu0 %v20, 114
  %v22 = vpop.permute.xlu0 %21
  %vm23 = vcmask 146432
  %s24 = scalar_lea.vmem %s1, 15
  %25 = vst.msk [vmem:[%s24] sm:$0x1] %vm23, %v22
  %s26 = scalar_lea.vmem %s0, 1
  %v27 = vld [vmem:[%s26] sm:$0x1]
  %28 = vrot.lane.b32.xlu0 %v27, 112
  %v29 = vpop.permute.xlu0 %28
  %vm30 = vcmask 146432
  %s31 = scalar_lea.vmem %s1, 8
  %32 = vst.msk [vmem:[%s31] sm:$0x1] %vm30, %v29
  %v33 = vld [vmem:[%s0] sm:$0x1]
  %34 = vrot.lane.b32.xlu0 %v33, 110
  %v35 = vpop.permute.xlu0 %34
  %vm36 = vcmask 146432
  %s37 = scalar_lea.vmem %s1, 1
  %38 = vst.msk [vmem:[%s37] sm:$0x1] %vm36, %v35
  %s39 = scalar_lea.vmem %s0, 4
  %v40 = vld [vmem:[%s39] sm:$0x1]
  %41 = vrot.lane.b32.xlu0 %v40, 100
  %v42 = vpop.permute.xlu0 %41
  %vm43 = vcmask 146432
  %s44 = scalar_lea.vmem %s1, 36
  %45 = vst.msk [vmem:[%s44] sm:$0x1] %vm43, %v42
  %s46 = scalar_lea.vmem %s0, 3
  %v47 = vld [vmem:[%s46] sm:$0x1]
  %48 = vrot.lane.b32.xlu0 %v47, 98
  %v49 = vpop.permute.xlu0 %48
  %vm50 = vcmask 146432
  %s51 = scalar_lea.vmem %s1, 29
  %52 = vst.msk [vmem:[%s51] sm:$0x1] %vm50, %v49
  %s53 = scalar_lea.vmem %s0, 2
  %v54 = vld [vmem:[%s53] sm:$0x1]
  %55 = vrot.lane.b32.xlu0 %v54, 96
  %v56 = vpop.permute.xlu0 %55
  %vm57 = vcmask 146432
  %s58 = scalar_lea.vmem %s1, 16
  %59 = vst.msk [vmem:[%s58] sm:$0x1] %vm57, %v56
  %s60 = scalar_lea.vmem %s0, 1
  %v61 = vld [vmem:[%s60] sm:$0x1]
  %62 = vrot.lane.b32.xlu0 %v61, 94
  %v63 = vpop.permute.xlu0 %62
  %vm64 = vcmask 146432
  %s65 = scalar_lea.vmem %s1, 9
  %66 = vst.msk [vmem:[%s65] sm:$0x1] %vm64, %v63
  %v67 = vld [vmem:[%s0] sm:$0x1]
  %68 = vrot.lane.b32.xlu0 %v67, 92
  %v69 = vpop.permute.xlu0 %68
  %vm70 = vcmask 146432
  %s71 = scalar_lea.vmem %s1, 2
  %72 = vst.msk [vmem:[%s71] sm:$0x1] %vm70, %v69
  %s73 = scalar_lea.vmem %s0, 4
  %v74 = vld [vmem:[%s73] sm:$0x1]
  %75 = vrot.lane.b32.xlu0 %v74, 82
  %v76 = vpop.permute.xlu0 %75
  %vm77 = vcmask 146432
  %s78 = scalar_lea.vmem %s1, 37
  %79 = vst.msk [vmem:[%s78] sm:$0x1] %vm77, %v76
  %s80 = scalar_lea.vmem %s0, 3
  %v81 = vld [vmem:[%s80] sm:$0x1]
  %82 = vrot.lane.b32.xlu0 %v81, 80
  %v83 = vpop.permute.xlu0 %82
  %vm84 = vcmask 146432
  %s85 = scalar_lea.vmem %s1, 30
  %86 = vst.msk [vmem:[%s85] sm:$0x1] %vm84, %v83
  %s87 = scalar_lea.vmem %s0, 2
  %v88 = vld [vmem:[%s87] sm:$0x1]
  %89 = vrot.lane.b32.xlu0 %v88, 78
  %v90 = vpop.permute.xlu0 %89
  %vm91 = vcmask 146432
  %s92 = scalar_lea.vmem %s1, 17
  %93 = vst.msk [vmem:[%s92] sm:$0x1] %vm91, %v90
  %s94 = scalar_lea.vmem %s0, 1
  %v95 = vld [vmem:[%s94] sm:$0x1]
  %96 = vrot.lane.b32.xlu0 %v95, 76
  %v97 = vpop.permute.xlu0 %96
  %vm98 = vcmask 146432
  %s99 = scalar_lea.vmem %s1, 10
  %100 = vst.msk [vmem:[%s99] sm:$0x1] %vm98, %v97
  %v101 = vld [vmem:[%s0] sm:$0x1]
  %102 = vrot.lane.b32.xlu0 %v101, 74
  %v103 = vpop.permute.xlu0 %102
  %vm104 = vcmask 146432
  %s105 = scalar_lea.vmem %s1, 3
  %106 = vst.msk [vmem:[%s105] sm:$0x1] %vm104, %v103
  %s107 = scalar_lea.vmem %s0, 4
  %v108 = vld [vmem:[%s107] sm:$0x1]
  %109 = vrot.lane.b32.xlu0 %v108, 64
  %v110 = vpop.permute.xlu0 %109
  %vm111 = vcmask 146432
  %s112 = scalar_lea.vmem %s1, 38
  %113 = vst.msk [vmem:[%s112] sm:$0x1] %vm111, %v110
  %s114 = scalar_lea.vmem %s0, 3
  %v115 = vld [vmem:[%s114] sm:$0x1]
  %116 = vrot.lane.b32.xlu0 %v115, 62
  %v117 = vpop.permute.xlu0 %116
  %vm118 = vcmask 146432
  %s119 = scalar_lea.vmem %s1, 31
  %120 = vst.msk [vmem:[%s119] sm:$0x1] %vm118, %v117
  %s121 = scalar_lea.vmem %s0, 2
  %v122 = vld [vmem:[%s121] sm:$0x1]
  %123 = vrot.lane.b32.xlu0 %v122, 60
  %v124 = vpop.permute.xlu0 %123
  %vm125 = vcmask 146432
  %s126 = scalar_lea.vmem %s1, 24
  %127 = vst.msk [vmem:[%s126] sm:$0x1] %vm125, %v124
  %s128 = scalar_lea.vmem %s0, 1
  %v129 = vld [vmem:[%s128] sm:$0x1]
  %130 = vrot.lane.b32.xlu0 %v129, 58
  %v131 = vpop.permute.xlu0 %130
  %vm132 = vcmask 146432
  %s133 = scalar_lea.vmem %s1, 11
  %134 = vst.msk [vmem:[%s133] sm:$0x1] %vm132, %v131
  %v135 = vld [vmem:[%s0] sm:$0x1]
  %136 = vrot.lane.b32.xlu0 %v135, 56
  %v137 = vpop.permute.xlu0 %136
  %vm138 = vcmask 146432
  %s139 = scalar_lea.vmem %s1, 4
  %140 = vst.msk [vmem:[%s139] sm:$0x1] %vm138, %v137
  %s141 = scalar_lea.vmem %s0, 4
  %v142 = vld [vmem:[%s141] sm:$0x1]
  %143 = vrot.lane.b32.xlu0 %v142, 46
  %v144 = vpop.permute.xlu0 %143
  %vm145 = vcmask 146432
  %s146 = scalar_lea.vmem %s1, 39
  %147 = vst.msk [vmem:[%s146] sm:$0x1] %vm145, %v144
  %s148 = scalar_lea.vmem %s0, 3
  %v149 = vld [vmem:[%s148] sm:$0x1]
  %150 = vrot.lane.b32.xlu0 %v149, 44
  %v151 = vpop.permute.xlu0 %150
  %vm152 = vcmask 146432
  %s153 = scalar_lea.vmem %s1, 32
  %154 = vst.msk [vmem:[%s153] sm:$0x1] %vm152, %v151
  %s155 = scalar_lea.vmem %s0, 2
  %v156 = vld [vmem:[%s155] sm:$0x1]
  %157 = vrot.lane.b32.xlu0 %v156, 42
  %v158 = vpop.permute.xlu0 %157
  %vm159 = vcmask 146432
  %s160 = scalar_lea.vmem %s1, 25
  %161 = vst.msk [vmem:[%s160] sm:$0x1] %vm159, %v158
  %s162 = scalar_lea.vmem %s0, 1
  %v163 = vld [vmem:[%s162] sm:$0x1]
  %164 = vrot.lane.b32.xlu0 %v163, 40
  %v165 = vpop.permute.xlu0 %164
  %vm166 = vcmask 146432
  %s167 = scalar_lea.vmem %s1, 12
  %168 = vst.msk [vmem:[%s167] sm:$0x1] %vm166, %v165
  %v169 = vld [vmem:[%s0] sm:$0x1]
  %170 = vrot.lane.b32.xlu0 %v169, 38
  %v171 = vpop.permute.xlu0 %170
  %vm172 = vcmask 146432
  %s173 = scalar_lea.vmem %s1, 5
  %174 = vst.msk [vmem:[%s173] sm:$0x1] %vm172, %v171
  %s175 = scalar_lea.vmem %s0, 4
  %v176 = vld [vmem:[%s175] sm:$0x1]
  %177 = vrot.lane.b32.xlu0 %v176, 28
  %v178 = vpop.permute.xlu0 %177
  %vm179 = vcmask 146432
  %s180 = scalar_lea.vmem %s1, 40
  %181 = vst.msk [vmem:[%s180] sm:$0x1] %vm179, %v178
  %s182 = scalar_lea.vmem %s0, 3
  %v183 = vld [vmem:[%s182] sm:$0x1]
  %184 = vrot.lane.b32.xlu0 %v183, 26
  %v185 = vpop.permute.xlu0 %184
  %vm186 = vcmask 146432
  %s187 = scalar_lea.vmem %s1, 33
  %188 = vst.msk [vmem:[%s187] sm:$0x1] %vm186, %v185
  %s189 = scalar_lea.vmem %s0, 2
  %v190 = vld [vmem:[%s189] sm:$0x1]
  %191 = vrot.lane.b32.xlu0 %v190, 24
  %v192 = vpop.permute.xlu0 %191
  %vm193 = vcmask 146432
  %s194 = scalar_lea.vmem %s1, 26
  %195 = vst.msk [vmem:[%s194] sm:$0x1] %vm193, %v192
  %s196 = scalar_lea.vmem %s0, 1
  %v197 = vld [vmem:[%s196] sm:$0x1]
  %198 = vrot.lane.b32.xlu0 %v197, 22
  %v199 = vpop.permute.xlu0 %198
  %vm200 = vcmask 146432
  %s201 = scalar_lea.vmem %s1, 13
  %202 = vst.msk [vmem:[%s201] sm:$0x1] %vm200, %v199
  %v203 = vld [vmem:[%s0] sm:$0x1]
  %204 = vrot.lane.b32.xlu0 %v203, 20
  %v205 = vpop.permute.xlu0 %204
  %vm206 = vcmask 146432
  %s207 = scalar_lea.vmem %s1, 6
  %208 = vst.msk [vmem:[%s207] sm:$0x1] %vm206, %v205
  %s209 = scalar_lea.vmem %s0, 4
  %v210 = vld [vmem:[%s209] sm:$0x1]
  %s211 = scalar_lea.vmem %s0, 5
  %v212 = vld [vmem:[%s211] sm:$0x1]
  %vm213 = vcmask 965632
  %v214 = vsel %vm213, %v212, %v210
  %215 = vrot.lane.b32.xlu0 %v214, 10
  %v216 = vpop.permute.xlu0 %215
  %vm217 = vcmask 80896
  %s218 = scalar_lea.vmem %s1, 41
  %219 = vst.msk [vmem:[%s218] sm:$0x1] %vm217, %v216
  %vm220 = vcmask 146512
  %s221 = scalar_lea.vmem %s1, 41
  %222 = vst.msk [vmem:[%s221] sm:$0x1] %vm220, %v216
  %s223 = scalar_lea.vmem %s0, 3
  %v224 = vld [vmem:[%s223] sm:$0x1]
  %s225 = scalar_lea.vmem %s0, 4
  %v226 = vld [vmem:[%s225] sm:$0x1]
  %vm227 = vcmask 982016
  %v228 = vsel %vm227, %v226, %v224
  %229 = vrot.lane.b32.xlu0 %v228, 8
  %v230 = vpop.permute.xlu0 %229
  %vm231 = vcmask 64512
  %s232 = scalar_lea.vmem %s1, 34
  %233 = vst.msk [vmem:[%s232] sm:$0x1] %vm231, %v230
  %vm234 = vcmask 146496
  %s235 = scalar_lea.vmem %s1, 34
  %236 = vst.msk [vmem:[%s235] sm:$0x1] %vm234, %v230
  %s237 = scalar_lea.vmem %s0, 2
  %v238 = vld [vmem:[%s237] sm:$0x1]
  %s239 = scalar_lea.vmem %s0, 3
  %v240 = vld [vmem:[%s239] sm:$0x1]
  %vm241 = vcmask 998400
  %v242 = vsel %vm241, %v240, %v238
  %243 = vrot.lane.b32.xlu0 %v242, 6
  %v244 = vpop.permute.xlu0 %243
  %vm245 = vcmask 48128
  %s246 = scalar_lea.vmem %s1, 27
  %247 = vst.msk [vmem:[%s246] sm:$0x1] %vm245, %v244
  %vm248 = vcmask 146480
  %s249 = scalar_lea.vmem %s1, 27
  %250 = vst.msk [vmem:[%s249] sm:$0x1] %vm248, %v244
  %s251 = scalar_lea.vmem %s0, 1
  %v252 = vld [vmem:[%s251] sm:$0x1]
  %s253 = scalar_lea.vmem %s0, 2
  %v254 = vld [vmem:[%s253] sm:$0x1]
  %vm255 = vcmask 1014784
  %v256 = vsel %vm255, %v254, %v252
  %257 = vrot.lane.b32.xlu0 %v256, 4
  %v258 = vpop.permute.xlu0 %257
  %vm259 = vcmask 31744
  %s260 = scalar_lea.vmem %s1, 14
  %261 = vst.msk [vmem:[%s260] sm:$0x1] %vm259, %v258
  %vm262 = vcmask 146464
  %s263 = scalar_lea.vmem %s1, 14
  %264 = vst.msk [vmem:[%s263] sm:$0x1] %vm262, %v258
  %v265 = vld [vmem:[%s0] sm:$0x1]
  %s266 = scalar_lea.vmem %s0, 1
  %v267 = vld [vmem:[%s266] sm:$0x1]
  %vm268 = vcmask 1031168
  %v269 = vsel %vm268, %v267, %v265
  %270 = vrot.lane.b32.xlu0 %v269, 2
  %v271 = vpop.permute.xlu0 %270
  %vm272 = vcmask 15360
  %s273 = scalar_lea.vmem %s1, 7
  %274 = vst.msk [vmem:[%s273] sm:$0x1] %vm272, %v271
  %vm275 = vcmask 146448
  %s276 = scalar_lea.vmem %s1, 7
  %277 = vst.msk [vmem:[%s276] sm:$0x1] %vm275, %v271

// kernel: restorer_forward.1
$region0: #{restorer_forward.1}
  #allocation0 [shape = 'u32[]', space=smem, size = 0x4, offset = 0x4, fixed_abs, tag = 'smem constant byte address 0x4 - core index']
  #allocation1 [shape = 'u32[72,128]{1,0:T(1,128)}', space=vmem, size = 0x9000, scoped, tag = 'internal scratch']
  #allocation2 [shape = 'f32[1]{0:T(128)S(6)}', space=smem, size = 0x200, scoped, tag = 'scoped memory for restorer_forward.1']
  %s0 = inlined_call_operand.vmem [shape: f32[1,1536], index: 0, kind: input, shape index: {}, may-alias: {0,1}]
  %s1 = inlined_call_operand.vmem [shape: f32[1,1536], index: 1, kind: input, shape index: {}, may-alias: {0,1}]
  %s2 = inlined_call_operand.vmem [shape: f32[1,1536], index: 2, kind: input, shape index: {}, may-alias: {2,3}]
  %s3 = inlined_call_operand.vmem [shape: f32[1,1536], index: 3, kind: input, shape index: {}, may-alias: {2,3}]
  %s4 = inlined_call_operand.vmem [shape: f32[64,9], index: 4, kind: input, shape index: {}]
  %s5 = inlined_call_operand.vmem [shape: f32[64,1], index: 5, kind: input, shape index: {}]
  %s6 = inlined_call_operand.vmem [shape: f32[9,64], index: 6, kind: input, shape index: {}]
  %s7 = inlined_call_operand.<no memory space> [shape: f32[1], index: 7, kind: input, shape index: {}]
  %s8 = inlined_call_operand.vmem [shape: f32[1,1024], index: 8, kind: output, shape index: {}]
  %s9 = sld [smem:[#allocation0]]
  $region65: #{restorer_forward.1} parent=0
    _
  %s11 = ssub.s32 1, %s9
  %s12 = scalar_select 0, %s11, %s9
  %13 = sst [smem:[#allocation2]] %s7
  loop: start=0, step=1, limit=4
  $region2: #{restorer_forward.1} parent=0 // loop_pre_header
    _
  $region3: #{restorer_forward.1} parent=0 // loop_header
    %s15 = sphi 0, %s19
    %p16 = scmp.ge.s32.totalorder %s15, 4
    %s25 = sphi 0, %s27
    %s28 = sphi 0, %s25
    %s29 = sphi 0, %s28
    %s45 = sphi 0, %s29
    %s53 = sphi 0, %s55
    %s56 = sphi 0, %s53
    %s57 = sphi 0, %s56
    %s73 = sphi 0, %s57
    %s79 = sphi 0, %s81
    %s82 = sphi 0, %s79
    %s83 = sphi 0, %s82
    %s99 = sphi 0, %s83
    %s107 = sphi 0, %s109
    %s110 = sphi 0, %s107
    %s111 = sphi 0, %s110
    %s127 = sphi 0, %s111
    %s131 = sphi 0, %s131
    %s133 = sphi 0, %s131
    %s134 = sphi 0, %s133
    %s148 = sphi 0, %s134
    %s152 = sphi 0, %s152
    %s154 = sphi 0, %s152
    %s155 = sphi 0, %s154
    %s169 = sphi 0, %s155
    %s173 = sphi 0, %s173
    %s175 = sphi 0, %s173
    %s176 = sphi 0, %s175
    %s190 = sphi 0, %s176
    %s194 = sphi 0, %s194
    %s196 = sphi 0, %s194
    %s197 = sphi 0, %s196
    %s211 = sphi 0, %s197
    %s217 = sphi 0, %s219
    %s220 = sphi 0, %s217
    %s221 = sphi 0, %s220
    %s237 = sphi 0, %s221
  $region4: #{restorer_forward.1} parent=0 // loop_header_branch
    %18 = sbr.rel (%p16) target = $region8
  $region5: #{restorer_forward.1} parent=0 // loop_body
    %s20 = ssub.s32 %s15, 1
    %s21 = ssub.s32 %s15, 2
    %s22 = sadd.s32 %s15, 1
    %s23 = ssub.s32 %s15, %s22
    %p24 = scmp.eq.s32.totalorder %s23, 0
    %s26 = sadd.s32 %s25, 1
    %s27 = scalar_select %p24, %s25, %s26
    %p30 = pneg %p24
    %p31 = scmp.eq.s32.totalorder %s15, 1
    %p32 = por %p30, %p31
    %p33 = scmp.ne.s32.totalorder %s25, %s28
    %p34 = scmp.eq.s32.totalorder %s15, 0
    %p35 = por %p33, %p34
    %p36 = scmp.ne.s32.totalorder %s25, %s28
    %p37 = scmp.eq.s32.totalorder %s20, 1
    %p38 = por %p36, %p37
    %p39 = scmp.ne.s32.totalorder %s28, %s29
    %p40 = scmp.eq.s32.totalorder %s20, 0
    %p41 = por %p39, %p40
    %p42 = scmp.ne.s32.totalorder %s28, %s29
    %p43 = scmp.eq.s32.totalorder %s21, 1
    %p44 = por %p42, %p43
    %p46 = scmp.ne.s32.totalorder %s29, %s45
    %p47 = scmp.eq.s32.totalorder %s21, 0
    %p48 = por %p46, %p47
    %s49 = sadd.s32 %s15, 1
    %s50 = sadd.s32 %s22, 1
    %s51 = ssub.s32 %s49, %s50
    %p52 = scmp.eq.s32.totalorder %s51, 0
    %s54 = sadd.s32 %s53, 1
    %s55 = scalar_select %p52, %s53, %s54
    %p58 = pneg %p52
    %p59 = scmp.eq.s32.totalorder %s15, 1
    %p60 = por %p58, %p59
    %p61 = scmp.ne.s32.totalorder %s53, %s56
    %p62 = scmp.eq.s32.totalorder %s15, 0
    %p63 = por %p61, %p62
    %p64 = scmp.ne.s32.totalorder %s53, %s56
    %p65 = scmp.eq.s32.totalorder %s20, 1
    %p66 = por %p64, %p65
    %p67 = scmp.ne.s32.totalorder %s56, %s57
    %p68 = scmp.eq.s32.totalorder %s20, 0
    %p69 = por %p67, %p68
    %p70 = scmp.ne.s32.totalorder %s56, %s57
    %p71 = scmp.eq.s32.totalorder %s21, 1
    %p72 = por %p70, %p71
    %p74 = scmp.ne.s32.totalorder %s57, %s73
    %p75 = scmp.eq.s32.totalorder %s21, 0
    %p76 = por %p74, %p75
    %s77 = ssub.s32 %s15, %s22
    %p78 = scmp.eq.s32.totalorder %s77, 0
    %s80 = sadd.s32 %s79, 1
    %s81 = scalar_select %p78, %s79, %s80
    %p84 = pneg %p78
    %p85 = scmp.eq.s32.totalorder %s15, 1
    %p86 = por %p84, %p85
    %p87 = scmp.ne.s32.totalorder %s79, %s82
    %p88 = scmp.eq.s32.totalorder %s15, 0
    %p89 = por %p87, %p88
    %p90 = scmp.ne.s32.totalorder %s79, %s82
    %p91 = scmp.eq.s32.totalorder %s20, 1
    %p92 = por %p90, %p91
    %p93 = scmp.ne.s32.totalorder %s82, %s83
    %p94 = scmp.eq.s32.totalorder %s20, 0
    %p95 = por %p93, %p94
    %p96 = scmp.ne.s32.totalorder %s82, %s83
    %p97 = scmp.eq.s32.totalorder %s21, 1
    %p98 = por %p96, %p97
    %p100 = scmp.ne.s32.totalorder %s83, %s99
    %p101 = scmp.eq.s32.totalorder %s21, 0
    %p102 = por %p100, %p101
    %s103 = sadd.s32 %s15, 1
    %s104 = sadd.s32 %s22, 1
    %s105 = ssub.s32 %s103, %s104
    %p106 = scmp.eq.s32.totalorder %s105, 0
    %s108 = sadd.s32 %s107, 1
    %s109 = scalar_select %p106, %s107, %s108
    %p112 = pneg %p106
    %p113 = scmp.eq.s32.totalorder %s15, 1
    %p114 = por %p112, %p113
    %p115 = scmp.ne.s32.totalorder %s107, %s110
    %p116 = scmp.eq.s32.totalorder %s15, 0
    %p117 = por %p115, %p116
    %p118 = scmp.ne.s32.totalorder %s107, %s110
    %p119 = scmp.eq.s32.totalorder %s20, 1
    %p120 = por %p118, %p119
    %p121 = scmp.ne.s32.totalorder %s110, %s111
    %p122 = scmp.eq.s32.totalorder %s20, 0
    %p123 = por %p121, %p122
    %p124 = scmp.ne.s32.totalorder %s110, %s111
    %p125 = scmp.eq.s32.totalorder %s21, 1
    %p126 = por %p124, %p125
    %p128 = scmp.ne.s32.totalorder %s111, %s127
    %p129 = scmp.eq.s32.totalorder %s21, 0
    %p130 = por %p128, %p129
    %s132 = sadd.s32 %s131, 1
    %p135 = scmp.eq.s32.totalorder %s15, 1
    %p136 = scmp.ne.s32.totalorder %s131, %s133
    %p137 = scmp.eq.s32.totalorder %s15, 0
    %p138 = por %p136, %p137
    %p139 = scmp.ne.s32.totalorder %s131, %s133
    %p140 = scmp.eq.s32.totalorder %s20, 1
    %p141 = por %p139, %p140
    %p142 = scmp.ne.s32.totalorder %s133, %s134
    %p143 = scmp.eq.s32.totalorder %s20, 0
    %p144 = por %p142, %p143
    %p145 = scmp.ne.s32.totalorder %s133, %s134
    %p146 = scmp.eq.s32.totalorder %s21, 1
    %p147 = por %p145, %p146
    %p149 = scmp.ne.s32.totalorder %s134, %s148
    %p150 = scmp.eq.s32.totalorder %s21, 0
    %p151 = por %p149, %p150
    %s153 = sadd.s32 %s152, 1
    %p156 = scmp.eq.s32.totalorder %s15, 1
    %p157 = scmp.ne.s32.totalorder %s152, %s154
    %p158 = scmp.eq.s32.totalorder %s15, 0
    %p159 = por %p157, %p158
    %p160 = scmp.ne.s32.totalorder %s152, %s154
    %p161 = scmp.eq.s32.totalorder %s20, 1
    %p162 = por %p160, %p161
    %p163 = scmp.ne.s32.totalorder %s154, %s155
    %p164 = scmp.eq.s32.totalorder %s20, 0
    %p165 = por %p163, %p164
    %p166 = scmp.ne.s32.totalorder %s154, %s155
    %p167 = scmp.eq.s32.totalorder %s21, 1
    %p168 = por %p166, %p167
    %p170 = scmp.ne.s32.totalorder %s155, %s169
    %p171 = scmp.eq.s32.totalorder %s21, 0
    %p172 = por %p170, %p171
    %s174 = sadd.s32 %s173, 1
    %p177 = scmp.eq.s32.totalorder %s15, 1
    %p178 = scmp.ne.s32.totalorder %s173, %s175
    %p179 = scmp.eq.s32.totalorder %s15, 0
    %p180 = por %p178, %p179
    %p181 = scmp.ne.s32.totalorder %s173, %s175
    %p182 = scmp.eq.s32.totalorder %s20, 1
    %p183 = por %p181, %p182
    %p184 = scmp.ne.s32.totalorder %s175, %s176
    %p185 = scmp.eq.s32.totalorder %s20, 0
    %p186 = por %p184, %p185
    %p187 = scmp.ne.s32.totalorder %s175, %s176
    %p188 = scmp.eq.s32.totalorder %s21, 1
    %p189 = por %p187, %p188
    %p191 = scmp.ne.s32.totalorder %s176, %s190
    %p192 = scmp.eq.s32.totalorder %s21, 0
    %p193 = por %p191, %p192
    %s195 = sadd.s32 %s194, 1
    %p198 = scmp.eq.s32.totalorder %s15, 1
    %p199 = scmp.ne.s32.totalorder %s194, %s196
    %p200 = scmp.eq.s32.totalorder %s15, 0
    %p201 = por %p199, %p200
    %p202 = scmp.ne.s32.totalorder %s194, %s196
    %p203 = scmp.eq.s32.totalorder %s20, 1
    %p204 = por %p202, %p203
    %p205 = scmp.ne.s32.totalorder %s196, %s197
    %p206 = scmp.eq.s32.totalorder %s20, 0
    %p207 = por %p205, %p206
    %p208 = scmp.ne.s32.totalorder %s196, %s197
    %p209 = scmp.eq.s32.totalorder %s21, 1
    %p210 = por %p208, %p209
    %p212 = scmp.ne.s32.totalorder %s197, %s211
    %p213 = scmp.eq.s32.totalorder %s21, 0
    %p214 = por %p212, %p213
    %s215 = ssub.s32 %s15, %s22
    %p216 = scmp.eq.s32.totalorder %s215, 0
    %s218 = sadd.s32 %s217, 1
    %s219 = scalar_select %p216, %s217, %s218
    %p222 = pneg %p216
    %p223 = scmp.eq.s32.totalorder %s15, 1
    %p224 = por %p222, %p223
    %p225 = scmp.ne.s32.totalorder %s217, %s220
    %p226 = scmp.eq.s32.totalorder %s15, 0
    %p227 = por %p225, %p226
    %p228 = scmp.ne.s32.totalorder %s217, %s220
    %p229 = scmp.eq.s32.totalorder %s20, 1
    %p230 = por %p228, %p229
    %p231 = scmp.ne.s32.totalorder %s220, %s221
    %p232 = scmp.eq.s32.totalorder %s20, 0
    %p233 = por %p231, %p232
    %p234 = scmp.ne.s32.totalorder %s220, %s221
    %p235 = scmp.eq.s32.totalorder %s21, 1
    %p236 = por %p234, %p235
    %p238 = scmp.ne.s32.totalorder %s221, %s237
    %p239 = scmp.eq.s32.totalorder %s21, 0
    %p240 = por %p238, %p239
    %p241 = scmp.le.s32.totalorder 1, %s15
    %p242 = scmp.lt.s32.totalorder %s15, 3
    %p243 = pnand %p241, %p242
    %p244 = pneg %p243
    // Predicated region
    $region9: #{restorer_forward.1} parent=5 // pred_check
      _
    $region10: #{restorer_forward.1} parent=5 // pred_check_branch
      %246 = sbr.rel (%p243) target = $region12
    $region11: #{restorer_forward.1} parent=5 // pred_region
      %s247 = ssub.s32 %s15, 1
      // Predicated region
      $region13: #{restorer_forward.1} parent=11 // pred_check
        %p248 = pneg %p144
      $region14: #{restorer_forward.1} parent=11 // pred_check_branch
        %250 = sbr.rel (%p248) target = $region16
      $region15: #{restorer_forward.1} parent=11 // pred_region
        _
      $region16: #{restorer_forward.1} parent=11 // pred_fallthru
        _
      // Predicated region
      $region17: #{restorer_forward.1} parent=11 // pred_check
        %p251 = pneg %p165
      $region18: #{restorer_forward.1} parent=11 // pred_check_branch
        %253 = sbr.rel (%p251) target = $region20
      $region19: #{restorer_forward.1} parent=11 // pred_region
        _
      $region20: #{restorer_forward.1} parent=11 // pred_fallthru
        _
      // Predicated region
      $region21: #{restorer_forward.1} parent=11 // pred_check
        %p254 = pneg %p186
      $region22: #{restorer_forward.1} parent=11 // pred_check_branch
        %256 = sbr.rel (%p254) target = $region24
      $region23: #{restorer_forward.1} parent=11 // pred_region
        _
      $region24: #{restorer_forward.1} parent=11 // pred_fallthru
        _
      // Predicated region
      $region25: #{restorer_forward.1} parent=11 // pred_check
        %p257 = pneg %p207
      $region26: #{restorer_forward.1} parent=11 // pred_check_branch
        %259 = sbr.rel (%p257) target = $region28
      $region27: #{restorer_forward.1} parent=11 // pred_region
        _
      $region28: #{restorer_forward.1} parent=11 // pred_fallthru
        _
    $region12: #{restorer_forward.1} parent=5 // pred_fallthru
      _
    %p260 = scmp.lt.s32.totalorder %s15, 2
    // Predicated region
    $region29: #{restorer_forward.1} parent=5 // pred_check
      %p261 = pneg %p260
    $region30: #{restorer_forward.1} parent=5 // pred_check_branch
      %263 = sbr.rel (%p261) target = $region32
    $region31: #{restorer_forward.1} parent=5 // pred_region
      // Predicated region
      $region33: #{restorer_forward.1} parent=31 // pred_check
        %p264 = pneg %p35
      $region34: #{restorer_forward.1} parent=31 // pred_check_branch
        %266 = sbr.rel (%p264) target = $region36
      $region35: #{restorer_forward.1} parent=31 // pred_region
        %s267 = smul.u32 4, %s15
        %p268 = scmp.lt.s32.totalorder %s267, 11
        %s269 = scalar_select %p268, %s267, 11
        %s270 = scalar_lea.vmem %s0, %s269
        %s271 = smul.u32 4, %s15
      $region36: #{restorer_forward.1} parent=31 // pred_fallthru
        _
      // Predicated region
      $region37: #{restorer_forward.1} parent=31 // pred_check
        %p272 = pneg %p63
      $region38: #{restorer_forward.1} parent=31 // pred_check_branch
        %274 = sbr.rel (%p272) target = $region40
      $region39: #{restorer_forward.1} parent=31 // pred_region
        %s275 = sadd.s32 %s15, 1
        %s276 = smul.u32 4, %s275
        %p277 = scmp.lt.s32.totalorder %s276, 11
        %s278 = scalar_select %p277, %s276, 11
        %s279 = scalar_lea.vmem %s1, %s278
        %s280 = sadd.s32 %s15, 1
        %s281 = smul.u32 4, %s280
      $region40: #{restorer_forward.1} parent=31 // pred_fallthru
        _
      // Predicated region
      $region41: #{restorer_forward.1} parent=31 // pred_check
        %p282 = pneg %p89
      $region42: #{restorer_forward.1} parent=31 // pred_check_branch
        %284 = sbr.rel (%p282) target = $region44
      $region43: #{restorer_forward.1} parent=31 // pred_region
        %s285 = smul.u32 4, %s15
        %p286 = scmp.lt.s32.totalorder %s285, 11
        %s287 = scalar_select %p286, %s285, 11
        %s288 = scalar_lea.vmem %s2, %s287
        %s289 = smul.u32 4, %s15
      $region44: #{restorer_forward.1} parent=31 // pred_fallthru
        _
      // Predicated region
      $region45: #{restorer_forward.1} parent=31 // pred_check
        %p290 = pneg %p117
      $region46: #{restorer_forward.1} parent=31 // pred_check_branch
        %292 = sbr.rel (%p290) target = $region48
      $region47: #{restorer_forward.1} parent=31 // pred_region
        %s293 = sadd.s32 %s15, 1
        %s294 = smul.u32 4, %s293
        %p295 = scmp.lt.s32.totalorder %s294, 11
        %s296 = scalar_select %p295, %s294, 11
        %s297 = scalar_lea.vmem %s3, %s296
        %s298 = sadd.s32 %s15, 1
        %s299 = smul.u32 4, %s298
      $region48: #{restorer_forward.1} parent=31 // pred_fallthru
        _
    $region32: #{restorer_forward.1} parent=5 // pred_fallthru
      _
    %p300 = scmp.le.s32.totalorder 1, %s15
    %p301 = scmp.lt.s32.totalorder %s15, 3
    %p302 = pnand %p300, %p301
    %p303 = pneg %p302
    // Predicated region
    $region49: #{restorer_forward.1} parent=5 // pred_check
      _
    $region50: #{restorer_forward.1} parent=5 // pred_check_branch
      %305 = sbr.rel (%p302) target = $region52
    $region51: #{restorer_forward.1} parent=5 // pred_region
      %s306 = ssub.s32 %s15, 1
      %s307 = smul.u32 4, %s20
      %p308 = scmp.lt.s32.totalorder %s307, 11
      %s309 = scalar_select %p308, %s307, 11
      %s310 = scalar_lea.vmem %s0, %s309
      %p311 = pneg %p41
      %p312 = pneg %p38
      %s313 = sadd.s32 %s20, 1
      %s314 = smul.u32 4, %s313
      %p315 = scmp.lt.s32.totalorder %s314, 11
      %s316 = scalar_select %p315, %s314, 11
      %s317 = scalar_lea.vmem %s1, %s316
      %p318 = pneg %p69
      %p319 = pneg %p66
      %s320 = smul.u32 4, %s20
      %p321 = scmp.lt.s32.totalorder %s320, 11
      %s322 = scalar_select %p321, %s320, 11
      %s323 = scalar_lea.vmem %s2, %s322
      %p324 = pneg %p95
      %p325 = pneg %p92
      %s326 = sadd.s32 %s20, 1
      %s327 = smul.u32 4, %s326
      %p328 = scmp.lt.s32.totalorder %s327, 11
      %s329 = scalar_select %p328, %s327, 11
      %s330 = scalar_lea.vmem %s3, %s329
      %p331 = pneg %p123
      %p332 = pneg %p120
      %p333 = pneg %p144
      %p334 = pneg %p141
      %p335 = pneg %p165
      %p336 = pneg %p162
      %p337 = pneg %p186
      %p338 = pneg %p183
      %p339 = pneg %p207
      %p340 = pneg %p204
      %p341 = pneg %p233
      %p342 = pneg %p230
      %s343 = smul.u32 4, %s20
      %p344 = scmp.lt.s32.totalorder %s343, 7
      %s345 = scalar_select %p344, %s343, 7
      %s346 = scalar_lea.vmem %s8, %s345
      %s347 = smul.u32 4, %s20
      %p348 = scmp.lt.s32.totalorder %s347, 11
      %s349 = scalar_select %p348, %s347, 11
      %s350 = scalar_lea.vmem %s0, %s349
      %s351 = smul.u32 4, %s20
      %s352 = sadd.s32 %s20, 1
      %s353 = smul.u32 4, %s352
      %p354 = scmp.lt.s32.totalorder %s353, 11
      %s355 = scalar_select %p354, %s353, 11
      %s356 = scalar_lea.vmem %s1, %s355
      %s357 = sadd.s32 %s20, 1
      %s358 = smul.u32 4, %s357
      %s359 = smul.u32 4, %s20
      %p360 = scmp.lt.s32.totalorder %s359, 11
      %s361 = scalar_select %p360, %s359, 11
      %s362 = scalar_lea.vmem %s2, %s361
      %s363 = smul.u32 4, %s20
      %s364 = sadd.s32 %s20, 1
      %s365 = smul.u32 4, %s364
      %p366 = scmp.lt.s32.totalorder %s365, 11
      %s367 = scalar_select %p366, %s365, 11
      %s368 = scalar_lea.vmem %s3, %s367
      %s369 = sadd.s32 %s20, 1
      %s370 = smul.u32 4, %s369
      %s371 = smul.u32 4, %s20
      %p372 = scmp.lt.s32.totalorder %s371, 7
      %s373 = scalar_select %p372, %s371, 7
      %s374 = scalar_lea.vmem %s8, %s373
      %s375 = smul.u32 4, %s20
      %v376 = vld [vmem:[%s4] sm:$0xff]
      %v377 = vld [vmem:[%s4 + $0x8] sm:$0xff]
      %v378 = vld [vmem:[%s4 + $0x10] sm:$0xff]
      %v379 = vld [vmem:[%s4 + $0x18] sm:$0xff]
      %v380 = vld [vmem:[%s4 + $0x20] sm:$0xff]
      %v381 = vld [vmem:[%s4 + $0x28] sm:$0xff]
      %v382 = vld [vmem:[%s4 + $0x30] sm:$0xff]
      %v383 = vld [vmem:[%s4 + $0x38] sm:$0xff]
      %v384 = vld [vmem:[%s5] sm:$0xff]
      %v385 = vld [vmem:[%s5 + $0x8] sm:$0xff]
      %v386 = vld [vmem:[%s5 + $0x10] sm:$0xff]
      %v387 = vld [vmem:[%s5 + $0x18] sm:$0xff]
      %v388 = vld [vmem:[%s5 + $0x20] sm:$0xff]
      %v389 = vld [vmem:[%s5 + $0x28] sm:$0xff]
      %v390 = vld [vmem:[%s5 + $0x30] sm:$0xff]
      %v391 = vld [vmem:[%s5 + $0x38] sm:$0xff]
      %v392 = vld [vmem:[%s6] sm:$0xff]
      %v393 = vld [vmem:[%s6 + $0x8] sm:$0x1]
      %s394 = sld [smem:[#allocation2]]
      %v395 = vld [vmem:[%s350] sm:$0x7]
      %v396 = vld [vmem:[%s362] sm:$0x7]
      %398 = vset.pattern.permute.xlu0 0
      %399 = vperm.xlu0 %398, %v376
      %v400 = vpop.permute.xlu0 %399
      %403 = vset.pattern.permute.xlu0 0
      %404 = vperm.xlu0 %403, %v377
      %v405 = vpop.permute.xlu0 %404
      %408 = vset.pattern.permute.xlu0 0
      %409 = vperm.xlu0 %408, %v378
      %v410 = vpop.permute.xlu0 %409
      %413 = vset.pattern.permute.xlu0 0
      %414 = vperm.xlu0 %413, %v379
      %v415 = vpop.permute.xlu0 %414
      %418 = vset.pattern.permute.xlu0 0
      %419 = vperm.xlu0 %418, %v380
      %v420 = vpop.permute.xlu0 %419
      %423 = vset.pattern.permute.xlu0 0
      %424 = vperm.xlu0 %423, %v381
      %v425 = vpop.permute.xlu0 %424
      %428 = vset.pattern.permute.xlu0 0
      %429 = vperm.xlu0 %428, %v382
      %v430 = vpop.permute.xlu0 %429
      %433 = vset.pattern.permute.xlu0 0
      %434 = vperm.xlu0 %433, %v383
      %v435 = vpop.permute.xlu0 %434
      %v438 = vperm.slane %v395, 0
      %v439 = vperm.slane %v395, 1
      %v440 = vperm.slane %v395, 2
      %v444 = vmul.f32 %v400, %v438
      %v445 = vmul.f32 %v400, %v439
      %v446 = vmul.f32 %v400, %v440
      %v447 = vmul.f32 %v405, %v438
      %v448 = vmul.f32 %v405, %v439
      %v449 = vmul.f32 %v405, %v440
      %v450 = vmul.f32 %v410, %v438
      %v451 = vmul.f32 %v410, %v439
      %v452 = vmul.f32 %v410, %v440
      %v453 = vmul.f32 %v415, %v438
      %v454 = vmul.f32 %v415, %v439
      %v455 = vmul.f32 %v415, %v440
      %v456 = vmul.f32 %v420, %v438
      %v457 = vmul.f32 %v420, %v439
      %v458 = vmul.f32 %v420, %v440
      %v459 = vmul.f32 %v425, %v438
      %v460 = vmul.f32 %v425, %v439
      %v461 = vmul.f32 %v425, %v440
      %v462 = vmul.f32 %v430, %v438
      %v463 = vmul.f32 %v430, %v439
      %v464 = vmul.f32 %v430, %v440
      %v465 = vmul.f32 %v435, %v438
      %v466 = vmul.f32 %v435, %v439
      %v467 = vmul.f32 %v435, %v440
      %468 = vset.pattern.permute.xlu0 1
      %469 = vperm.xlu0 %468, %v376
      %v470 = vpop.permute.xlu0 %469
      %472 = vset.pattern.permute.xlu0 1
      %473 = vperm.xlu0 %472, %v377
      %v474 = vpop.permute.xlu0 %473
      %476 = vset.pattern.permute.xlu0 1
      %477 = vperm.xlu0 %476, %v378
      %v478 = vpop.permute.xlu0 %477
      %480 = vset.pattern.permute.xlu0 1
      %481 = vperm.xlu0 %480, %v379
      %v482 = vpop.permute.xlu0 %481
      %484 = vset.pattern.permute.xlu0 1
      %485 = vperm.xlu0 %484, %v380
      %v486 = vpop.permute.xlu0 %485
      %488 = vset.pattern.permute.xlu0 1
      %489 = vperm.xlu0 %488, %v381
      %v490 = vpop.permute.xlu0 %489
      %492 = vset.pattern.permute.xlu0 1
      %493 = vperm.xlu0 %492, %v382
      %v494 = vpop.permute.xlu0 %493
      %496 = vset.pattern.permute.xlu0 1
      %497 = vperm.xlu0 %496, %v383
      %v498 = vpop.permute.xlu0 %497
      %v500 = vmul.f32 %v470, %v438
      %v501 = vmul.f32 %v470, %v439
      %v502 = vmul.f32 %v470, %v440
      %v503 = vmul.f32 %v474, %v438
      %v504 = vmul.f32 %v474, %v439
      %v505 = vmul.f32 %v474, %v440
      %v506 = vmul.f32 %v478, %v438
      %v507 = vmul.f32 %v478, %v439
      %v508 = vmul.f32 %v478, %v440
      %v509 = vmul.f32 %v482, %v438
      %v510 = vmul.f32 %v482, %v439
      %v511 = vmul.f32 %v482, %v440
      %v512 = vmul.f32 %v486, %v438
      %v513 = vmul.f32 %v486, %v439
      %v514 = vmul.f32 %v486, %v440
      %v515 = vmul.f32 %v490, %v438
      %v516 = vmul.f32 %v490, %v439
      %v517 = vmul.f32 %v490, %v440
      %v518 = vmul.f32 %v494, %v438
      %v519 = vmul.f32 %v494, %v439
      %v520 = vmul.f32 %v494, %v440
      %v521 = vmul.f32 %v498, %v438
      %v522 = vmul.f32 %v498, %v439
      %v523 = vmul.f32 %v498, %v440
      %548 = vrot.lane.b32.xlu0 %v500, 127
      %v549 = vpop.permute.xlu0 %548
      %550 = vrot.lane.b32.xlu0 %v501, 127
      %v551 = vpop.permute.xlu0 %550
      %552 = vrot.lane.b32.xlu0 %v502, 127
      %v553 = vpop.permute.xlu0 %552
      %554 = vrot.lane.b32.xlu0 %v503, 127
      %v555 = vpop.permute.xlu0 %554
      %556 = vrot.lane.b32.xlu0 %v504, 127
      %v557 = vpop.permute.xlu0 %556
      %558 = vrot.lane.b32.xlu0 %v505, 127
      %v559 = vpop.permute.xlu0 %558
      %560 = vrot.lane.b32.xlu0 %v506, 127
      %v561 = vpop.permute.xlu0 %560
      %562 = vrot.lane.b32.xlu0 %v507, 127
      %v563 = vpop.permute.xlu0 %562
      %564 = vrot.lane.b32.xlu0 %v508, 127
      %v565 = vpop.permute.xlu0 %564
      %566 = vrot.lane.b32.xlu0 %v509, 127
      %v567 = vpop.permute.xlu0 %566
      %568 = vrot.lane.b32.xlu0 %v510, 127
      %v569 = vpop.permute.xlu0 %568
      %570 = vrot.lane.b32.xlu0 %v511, 127
      %v571 = vpop.permute.xlu0 %570
      %572 = vrot.lane.b32.xlu0 %v512, 127
      %v573 = vpop.permute.xlu0 %572
      %574 = vrot.lane.b32.xlu0 %v513, 127
      %v575 = vpop.permute.xlu0 %574
      %576 = vrot.lane.b32.xlu0 %v514, 127
      %v577 = vpop.permute.xlu0 %576
      %578 = vrot.lane.b32.xlu0 %v515, 127
      %v579 = vpop.permute.xlu0 %578
      %580 = vrot.lane.b32.xlu0 %v516, 127
      %v581 = vpop.permute.xlu0 %580
      %582 = vrot.lane.b32.xlu0 %v517, 127
      %v583 = vpop.permute.xlu0 %582
      %584 = vrot.lane.b32.xlu0 %v518, 127
      %v585 = vpop.permute.xlu0 %584
      %586 = vrot.lane.b32.xlu0 %v519, 127
      %v587 = vpop.permute.xlu0 %586
      %588 = vrot.lane.b32.xlu0 %v520, 127
      %v589 = vpop.permute.xlu0 %588
      %590 = vrot.lane.b32.xlu0 %v521, 127
      %v591 = vpop.permute.xlu0 %590
      %592 = vrot.lane.b32.xlu0 %v522, 127
      %v593 = vpop.permute.xlu0 %592
      %594 = vrot.lane.b32.xlu0 %v523, 127
      %v595 = vpop.permute.xlu0 %594
      %vm596 = vcmask 1039360
      %v597 = vsel %vm596, %v549, %v551
      %v598 = vsel %vm596, %v551, %v553
      %v599 = vsel %vm596, %v555, %v557
      %v600 = vsel %vm596, %v557, %v559
      %v601 = vsel %vm596, %v561, %v563
      %v602 = vsel %vm596, %v563, %v565
      %v603 = vsel %vm596, %v567, %v569
      %v604 = vsel %vm596, %v569, %v571
      %v605 = vsel %vm596, %v573, %v575
      %v606 = vsel %vm596, %v575, %v577
      %v607 = vsel %vm596, %v579, %v581
      %v608 = vsel %vm596, %v581, %v583
      %v609 = vsel %vm596, %v585, %v587
      %v610 = vsel %vm596, %v587, %v589
      %v611 = vsel %vm596, %v591, %v593
      %v612 = vsel %vm596, %v593, %v595
      %v637 = vadd.f32 %v444, %v597
      %v638 = vadd.f32 %v445, %v598
      %v639 = vadd.f32 %v446, %v553
      %v640 = vadd.f32 %v447, %v599
      %v641 = vadd.f32 %v448, %v600
      %v642 = vadd.f32 %v449, %v559
      %v643 = vadd.f32 %v450, %v601
      %v644 = vadd.f32 %v451, %v602
      %v645 = vadd.f32 %v452, %v565
      %v646 = vadd.f32 %v453, %v603
      %v647 = vadd.f32 %v454, %v604
      %v648 = vadd.f32 %v455, %v571
      %v649 = vadd.f32 %v456, %v605
      %v650 = vadd.f32 %v457, %v606
      %v651 = vadd.f32 %v458, %v577
      %v652 = vadd.f32 %v459, %v607
      %v653 = vadd.f32 %v460, %v608
      %v654 = vadd.f32 %v461, %v583
      %v655 = vadd.f32 %v462, %v609
      %v656 = vadd.f32 %v463, %v610
      %v657 = vadd.f32 %v464, %v589
      %v658 = vadd.f32 %v465, %v611
      %v659 = vadd.f32 %v466, %v612
      %v660 = vadd.f32 %v467, %v595
      %661 = vset.pattern.permute.xlu0 2
      %662 = vperm.xlu0 %661, %v376
      %v663 = vpop.permute.xlu0 %662
      %665 = vset.pattern.permute.xlu0 2
      %666 = vperm.xlu0 %665, %v377
      %v667 = vpop.permute.xlu0 %666
      %669 = vset.pattern.permute.xlu0 2
      %670 = vperm.xlu0 %669, %v378
      %v671 = vpop.permute.xlu0 %670
      %673 = vset.pattern.permute.xlu0 2
      %674 = vperm.xlu0 %673, %v379
      %v675 = vpop.permute.xlu0 %674
      %677 = vset.pattern.permute.xlu0 2
      %678 = vperm.xlu0 %677, %v380
      %v679 = vpop.permute.xlu0 %678
      %681 = vset.pattern.permute.xlu0 2
      %682 = vperm.xlu0 %681, %v381
      %v683 = vpop.permute.xlu0 %682
      %685 = vset.pattern.permute.xlu0 2
      %686 = vperm.xlu0 %685, %v382
      %v687 = vpop.permute.xlu0 %686
      %689 = vset.pattern.permute.xlu0 2
      %690 = vperm.xlu0 %689, %v383
      %v691 = vpop.permute.xlu0 %690
      %v693 = vmul.f32 %v663, %v438
      %v694 = vmul.f32 %v663, %v439
      %v695 = vmul.f32 %v663, %v440
      %v696 = vmul.f32 %v667, %v438
      %v697 = vmul.f32 %v667, %v439
      %v698 = vmul.f32 %v667, %v440
      %v699 = vmul.f32 %v671, %v438
      %v700 = vmul.f32 %v671, %v439
      %v701 = vmul.f32 %v671, %v440
      %v702 = vmul.f32 %v675, %v438
      %v703 = vmul.f32 %v675, %v439
      %v704 = vmul.f32 %v675, %v440
      %v705 = vmul.f32 %v679, %v438
      %v706 = vmul.f32 %v679, %v439
      %v707 = vmul.f32 %v679, %v440
      %v708 = vmul.f32 %v683, %v438
      %v709 = vmul.f32 %v683, %v439
      %v710 = vmul.f32 %v683, %v440
      %v711 = vmul.f32 %v687, %v438
      %v712 = vmul.f32 %v687, %v439
      %v713 = vmul.f32 %v687, %v440
      %v714 = vmul.f32 %v691, %v438
      %v715 = vmul.f32 %v691, %v439
      %v716 = vmul.f32 %v691, %v440
      %741 = vrot.lane.b32.xlu0 %v693, 126
      %v742 = vpop.permute.xlu0 %741
      %743 = vrot.lane.b32.xlu0 %v694, 126
      %v744 = vpop.permute.xlu0 %743
      %745 = vrot.lane.b32.xlu0 %v695, 126
      %v746 = vpop.permute.xlu0 %745
      %747 = vrot.lane.b32.xlu0 %v696, 126
      %v748 = vpop.permute.xlu0 %747
      %749 = vrot.lane.b32.xlu0 %v697, 126
      %v750 = vpop.permute.xlu0 %749
      %751 = vrot.lane.b32.xlu0 %v698, 126
      %v752 = vpop.permute.xlu0 %751
      %753 = vrot.lane.b32.xlu0 %v699, 126
      %v754 = vpop.permute.xlu0 %753
      %755 = vrot.lane.b32.xlu0 %v700, 126
      %v756 = vpop.permute.xlu0 %755
      %757 = vrot.lane.b32.xlu0 %v701, 126
      %v758 = vpop.permute.xlu0 %757
      %759 = vrot.lane.b32.xlu0 %v702, 126
      %v760 = vpop.permute.xlu0 %759
      %761 = vrot.lane.b32.xlu0 %v703, 126
      %v762 = vpop.permute.xlu0 %761
      %763 = vrot.lane.b32.xlu0 %v704, 126
      %v764 = vpop.permute.xlu0 %763
      %765 = vrot.lane.b32.xlu0 %v705, 126
      %v766 = vpop.permute.xlu0 %765
      %767 = vrot.lane.b32.xlu0 %v706, 126
      %v768 = vpop.permute.xlu0 %767
      %769 = vrot.lane.b32.xlu0 %v707, 126
      %v770 = vpop.permute.xlu0 %769
      %771 = vrot.lane.b32.xlu0 %v708, 126
      %v772 = vpop.permute.xlu0 %771
      %773 = vrot.lane.b32.xlu0 %v709, 126
      %v774 = vpop.permute.xlu0 %773
      %775 = vrot.lane.b32.xlu0 %v710, 126
      %v776 = vpop.permute.xlu0 %775
      %777 = vrot.lane.b32.xlu0 %v711, 126
      %v778 = vpop.permute.xlu0 %777
      %779 = vrot.lane.b32.xlu0 %v712, 126
      %v780 = vpop.permute.xlu0 %779
      %781 = vrot.lane.b32.xlu0 %v713, 126
      %v782 = vpop.permute.xlu0 %781
      %783 = vrot.lane.b32.xlu0 %v714, 126
      %v784 = vpop.permute.xlu0 %783
      %785 = vrot.lane.b32.xlu0 %v715, 126
      %v786 = vpop.permute.xlu0 %785
      %787 = vrot.lane.b32.xlu0 %v716, 126
      %v788 = vpop.permute.xlu0 %787
      %vm789 = vcmask 1031168
      %v790 = vsel %vm789, %v742, %v744
      %v791 = vsel %vm789, %v744, %v746
      %v792 = vsel %vm789, %v748, %v750
      %v793 = vsel %vm789, %v750, %v752
      %v794 = vsel %vm789, %v754, %v756
      %v795 = vsel %vm789, %v756, %v758
      %v796 = vsel %vm789, %v760, %v762
      %v797 = vsel %vm789, %v762, %v764
      %v798 = vsel %vm789, %v766, %v768
      %v799 = vsel %vm789, %v768, %v770
      %v800 = vsel %vm789, %v772, %v774
      %v801 = vsel %vm789, %v774, %v776
      %v802 = vsel %vm789, %v778, %v780
      %v803 = vsel %vm789, %v780, %v782
      %v804 = vsel %vm789, %v784, %v786
      %v805 = vsel %vm789, %v786, %v788
      %v830 = vadd.f32 %v637, %v790
      %v831 = vadd.f32 %v638, %v791
      %v832 = vadd.f32 %v639, %v746
      %v833 = vadd.f32 %v640, %v792
      %v834 = vadd.f32 %v641, %v793
      %v835 = vadd.f32 %v642, %v752
      %v836 = vadd.f32 %v643, %v794
      %v837 = vadd.f32 %v644, %v795
      %v838 = vadd.f32 %v645, %v758
      %v839 = vadd.f32 %v646, %v796
      %v840 = vadd.f32 %v647, %v797
      %v841 = vadd.f32 %v648, %v764
      %v842 = vadd.f32 %v649, %v798
      %v843 = vadd.f32 %v650, %v799
      %v844 = vadd.f32 %v651, %v770
      %v845 = vadd.f32 %v652, %v800
      %v846 = vadd.f32 %v653, %v801
      %v847 = vadd.f32 %v654, %v776
      %v848 = vadd.f32 %v655, %v802
      %v849 = vadd.f32 %v656, %v803
      %v850 = vadd.f32 %v657, %v782
      %v851 = vadd.f32 %v658, %v804
      %v852 = vadd.f32 %v659, %v805
      %v853 = vadd.f32 %v660, %v788
      %854 = vset.pattern.permute.xlu0 3
      %855 = vperm.xlu0 %854, %v376
      %v856 = vpop.permute.xlu0 %855
      %858 = vset.pattern.permute.xlu0 3
      %859 = vperm.xlu0 %858, %v377
      %v860 = vpop.permute.xlu0 %859
      %862 = vset.pattern.permute.xlu0 3
      %863 = vperm.xlu0 %862, %v378
      %v864 = vpop.permute.xlu0 %863
      %866 = vset.pattern.permute.xlu0 3
      %867 = vperm.xlu0 %866, %v379
      %v868 = vpop.permute.xlu0 %867
      %870 = vset.pattern.permute.xlu0 3
      %871 = vperm.xlu0 %870, %v380
      %v872 = vpop.permute.xlu0 %871
      %874 = vset.pattern.permute.xlu0 3
      %875 = vperm.xlu0 %874, %v381
      %v876 = vpop.permute.xlu0 %875
      %878 = vset.pattern.permute.xlu0 3
      %879 = vperm.xlu0 %878, %v382
      %v880 = vpop.permute.xlu0 %879
      %882 = vset.pattern.permute.xlu0 3
      %883 = vperm.xlu0 %882, %v383
      %v884 = vpop.permute.xlu0 %883
      %v886 = vmul.f32 %v856, %v438
      %v887 = vmul.f32 %v856, %v439
      %v888 = vmul.f32 %v856, %v440
      %v889 = vmul.f32 %v860, %v438
      %v890 = vmul.f32 %v860, %v439
      %v891 = vmul.f32 %v860, %v440
      %v892 = vmul.f32 %v864, %v438
      %v893 = vmul.f32 %v864, %v439
      %v894 = vmul.f32 %v864, %v440
      %v895 = vmul.f32 %v868, %v438
      %v896 = vmul.f32 %v868, %v439
      %v897 = vmul.f32 %v868, %v440
      %v898 = vmul.f32 %v872, %v438
      %v899 = vmul.f32 %v872, %v439
      %v900 = vmul.f32 %v872, %v440
      %v901 = vmul.f32 %v876, %v438
      %v902 = vmul.f32 %v876, %v439
      %v903 = vmul.f32 %v876, %v440
      %v904 = vmul.f32 %v880, %v438
      %v905 = vmul.f32 %v880, %v439
      %v906 = vmul.f32 %v880, %v440
      %v907 = vmul.f32 %v884, %v438
      %v908 = vmul.f32 %v884, %v439
      %v909 = vmul.f32 %v884, %v440
      %934 = vrot.lane.b32.xlu0 %v886, 110
      %v935 = vpop.permute.xlu0 %934
      %936 = vrot.lane.b32.xlu0 %v887, 110
      %v937 = vpop.permute.xlu0 %936
      %938 = vrot.lane.b32.xlu0 %v888, 110
      %v939 = vpop.permute.xlu0 %938
      %940 = vrot.lane.b32.xlu0 %v889, 110
      %v941 = vpop.permute.xlu0 %940
      %942 = vrot.lane.b32.xlu0 %v890, 110
      %v943 = vpop.permute.xlu0 %942
      %944 = vrot.lane.b32.xlu0 %v891, 110
      %v945 = vpop.permute.xlu0 %944
      %946 = vrot.lane.b32.xlu0 %v892, 110
      %v947 = vpop.permute.xlu0 %946
      %948 = vrot.lane.b32.xlu0 %v893, 110
      %v949 = vpop.permute.xlu0 %948
      %950 = vrot.lane.b32.xlu0 %v894, 110
      %v951 = vpop.permute.xlu0 %950
      %952 = vrot.lane.b32.xlu0 %v895, 110
      %v953 = vpop.permute.xlu0 %952
      %954 = vrot.lane.b32.xlu0 %v896, 110
      %v955 = vpop.permute.xlu0 %954
      %956 = vrot.lane.b32.xlu0 %v897, 110
      %v957 = vpop.permute.xlu0 %956
      %958 = vrot.lane.b32.xlu0 %v898, 110
      %v959 = vpop.permute.xlu0 %958
      %960 = vrot.lane.b32.xlu0 %v899, 110
      %v961 = vpop.permute.xlu0 %960
      %962 = vrot.lane.b32.xlu0 %v900, 110
      %v963 = vpop.permute.xlu0 %962
      %964 = vrot.lane.b32.xlu0 %v901, 110
      %v965 = vpop.permute.xlu0 %964
      %966 = vrot.lane.b32.xlu0 %v902, 110
      %v967 = vpop.permute.xlu0 %966
      %968 = vrot.lane.b32.xlu0 %v903, 110
      %v969 = vpop.permute.xlu0 %968
      %970 = vrot.lane.b32.xlu0 %v904, 110
      %v971 = vpop.permute.xlu0 %970
      %972 = vrot.lane.b32.xlu0 %v905, 110
      %v973 = vpop.permute.xlu0 %972
      %974 = vrot.lane.b32.xlu0 %v906, 110
      %v975 = vpop.permute.xlu0 %974
      %976 = vrot.lane.b32.xlu0 %v907, 110
      %v977 = vpop.permute.xlu0 %976
      %978 = vrot.lane.b32.xlu0 %v908, 110
      %v979 = vpop.permute.xlu0 %978
      %980 = vrot.lane.b32.xlu0 %v909, 110
      %v981 = vpop.permute.xlu0 %980
      %vm982 = vcmask 900096
      %v983 = vsel %vm982, %v935, %v937
      %v984 = vsel %vm982, %v937, %v939
      %v985 = vsel %vm982, %v941, %v943
      %v986 = vsel %vm982, %v943, %v945
      %v987 = vsel %vm982, %v947, %v949
      %v988 = vsel %vm982, %v949, %v951
      %v989 = vsel %vm982, %v953, %v955
      %v990 = vsel %vm982, %v955, %v957
      %v991 = vsel %vm982, %v959, %v961
      %v992 = vsel %vm982, %v961, %v963
      %v993 = vsel %vm982, %v965, %v967
      %v994 = vsel %vm982, %v967, %v969
      %v995 = vsel %vm982, %v971, %v973
      %v996 = vsel %vm982, %v973, %v975
      %v997 = vsel %vm982, %v977, %v979
      %v998 = vsel %vm982, %v979, %v981
      %v1023 = vadd.f32 %v830, %v983
      %v1024 = vadd.f32 %v831, %v984
      %v1025 = vadd.f32 %v832, %v939
      %v1026 = vadd.f32 %v833, %v985
      %v1027 = vadd.f32 %v834, %v986
      %v1028 = vadd.f32 %v835, %v945
      %v1029 = vadd.f32 %v836, %v987
      %v1030 = vadd.f32 %v837, %v988
      %v1031 = vadd.f32 %v838, %v951
      %v1032 = vadd.f32 %v839, %v989
      %v1033 = vadd.f32 %v840, %v990
      %v1034 = vadd.f32 %v841, %v957
      %v1035 = vadd.f32 %v842, %v991
      %v1036 = vadd.f32 %v843, %v992
      %v1037 = vadd.f32 %v844, %v963
      %v1038 = vadd.f32 %v845, %v993
      %v1039 = vadd.f32 %v846, %v994
      %v1040 = vadd.f32 %v847, %v969
      %v1041 = vadd.f32 %v848, %v995
      %v1042 = vadd.f32 %v849, %v996
      %v1043 = vadd.f32 %v850, %v975
      %v1044 = vadd.f32 %v851, %v997
      %v1045 = vadd.f32 %v852, %v998
      %v1046 = vadd.f32 %v853, %v981
      %1047 = vset.pattern.permute.xlu0 4
      %1048 = vperm.xlu0 %1047, %v376
      %v1049 = vpop.permute.xlu0 %1048
      %1051 = vset.pattern.permute.xlu0 4
      %1052 = vperm.xlu0 %1051, %v377
      %v1053 = vpop.permute.xlu0 %1052
      %1055 = vset.pattern.permute.xlu0 4
      %1056 = vperm.xlu0 %1055, %v378
      %v1057 = vpop.permute.xlu0 %1056
      %1059 = vset.pattern.permute.xlu0 4
      %1060 = vperm.xlu0 %1059, %v379
      %v1061 = vpop.permute.xlu0 %1060
      %1063 = vset.pattern.permute.xlu0 4
      %1064 = vperm.xlu0 %1063, %v380
      %v1065 = vpop.permute.xlu0 %1064
      %1067 = vset.pattern.permute.xlu0 4
      %1068 = vperm.xlu0 %1067, %v381
      %v1069 = vpop.permute.xlu0 %1068
      %1071 = vset.pattern.permute.xlu0 4
      %1072 = vperm.xlu0 %1071, %v382
      %v1073 = vpop.permute.xlu0 %1072
      %1075 = vset.pattern.permute.xlu0 4
      %1076 = vperm.xlu0 %1075, %v383
      %v1077 = vpop.permute.xlu0 %1076
      %v1079 = vmul.f32 %v1049, %v438
      %v1080 = vmul.f32 %v1049, %v439
      %v1081 = vmul.f32 %v1049, %v440
      %v1082 = vmul.f32 %v1053, %v438
      %v1083 = vmul.f32 %v1053, %v439
      %v1084 = vmul.f32 %v1053, %v440
      %v1085 = vmul.f32 %v1057, %v438
      %v1086 = vmul.f32 %v1057, %v439
      %v1087 = vmul.f32 %v1057, %v440
      %v1088 = vmul.f32 %v1061, %v438
      %v1089 = vmul.f32 %v1061, %v439
      %v1090 = vmul.f32 %v1061, %v440
      %v1091 = vmul.f32 %v1065, %v438
      %v1092 = vmul.f32 %v1065, %v439
      %v1093 = vmul.f32 %v1065, %v440
      %v1094 = vmul.f32 %v1069, %v438
      %v1095 = vmul.f32 %v1069, %v439
      %v1096 = vmul.f32 %v1069, %v440
      %v1097 = vmul.f32 %v1073, %v438
      %v1098 = vmul.f32 %v1073, %v439
      %v1099 = vmul.f32 %v1073, %v440
      %v1100 = vmul.f32 %v1077, %v438
      %v1101 = vmul.f32 %v1077, %v439
      %v1102 = vmul.f32 %v1077, %v440
      %1127 = vrot.lane.b32.xlu0 %v1079, 109
      %v1128 = vpop.permute.xlu0 %1127
      %1129 = vrot.lane.b32.xlu0 %v1080, 109
      %v1130 = vpop.permute.xlu0 %1129
      %1131 = vrot.lane.b32.xlu0 %v1081, 109
      %v1132 = vpop.permute.xlu0 %1131
      %1133 = vrot.lane.b32.xlu0 %v1082, 109
      %v1134 = vpop.permute.xlu0 %1133
      %1135 = vrot.lane.b32.xlu0 %v1083, 109
      %v1136 = vpop.permute.xlu0 %1135
      %1137 = vrot.lane.b32.xlu0 %v1084, 109
      %v1138 = vpop.permute.xlu0 %1137
      %1139 = vrot.lane.b32.xlu0 %v1085, 109
      %v1140 = vpop.permute.xlu0 %1139
      %1141 = vrot.lane.b32.xlu0 %v1086, 109
      %v1142 = vpop.permute.xlu0 %1141
      %1143 = vrot.lane.b32.xlu0 %v1087, 109
      %v1144 = vpop.permute.xlu0 %1143
      %1145 = vrot.lane.b32.xlu0 %v1088, 109
      %v1146 = vpop.permute.xlu0 %1145
      %1147 = vrot.lane.b32.xlu0 %v1089, 109
      %v1148 = vpop.permute.xlu0 %1147
      %1149 = vrot.lane.b32.xlu0 %v1090, 109
      %v1150 = vpop.permute.xlu0 %1149
      %1151 = vrot.lane.b32.xlu0 %v1091, 109
      %v1152 = vpop.permute.xlu0 %1151
      %1153 = vrot.lane.b32.xlu0 %v1092, 109
      %v1154 = vpop.permute.xlu0 %1153
      %1155 = vrot.lane.b32.xlu0 %v1093, 109
      %v1156 = vpop.permute.xlu0 %1155
      %1157 = vrot.lane.b32.xlu0 %v1094, 109
      %v1158 = vpop.permute.xlu0 %1157
      %1159 = vrot.lane.b32.xlu0 %v1095, 109
      %v1160 = vpop.permute.xlu0 %1159
      %1161 = vrot.lane.b32.xlu0 %v1096, 109
      %v1162 = vpop.permute.xlu0 %1161
      %1163 = vrot.lane.b32.xlu0 %v1097, 109
      %v1164 = vpop.permute.xlu0 %1163
      %1165 = vrot.lane.b32.xlu0 %v1098, 109
      %v1166 = vpop.permute.xlu0 %1165
      %1167 = vrot.lane.b32.xlu0 %v1099, 109
      %v1168 = vpop.permute.xlu0 %1167
      %1169 = vrot.lane.b32.xlu0 %v1100, 109
      %v1170 = vpop.permute.xlu0 %1169
      %1171 = vrot.lane.b32.xlu0 %v1101, 109
      %v1172 = vpop.permute.xlu0 %1171
      %1173 = vrot.lane.b32.xlu0 %v1102, 109
      %v1174 = vpop.permute.xlu0 %1173
      %vm1175 = vcmask 891904
      %v1176 = vsel %vm1175, %v1128, %v1130
      %v1177 = vsel %vm1175, %v1130, %v1132
      %v1178 = vsel %vm1175, %v1134, %v1136
      %v1179 = vsel %vm1175, %v1136, %v1138
      %v1180 = vsel %vm1175, %v1140, %v1142
      %v1181 = vsel %vm1175, %v1142, %v1144
      %v1182 = vsel %vm1175, %v1146, %v1148
      %v1183 = vsel %vm1175, %v1148, %v1150
      %v1184 = vsel %vm1175, %v1152, %v1154
      %v1185 = vsel %vm1175, %v1154, %v1156
      %v1186 = vsel %vm1175, %v1158, %v1160
      %v1187 = vsel %vm1175, %v1160, %v1162
      %v1188 = vsel %vm1175, %v1164, %v1166
      %v1189 = vsel %vm1175, %v1166, %v1168
      %v1190 = vsel %vm1175, %v1170, %v1172
      %v1191 = vsel %vm1175, %v1172, %v1174
      %v1216 = vadd.f32 %v1023, %v1176
      %v1217 = vadd.f32 %v1024, %v1177
      %v1218 = vadd.f32 %v1025, %v1132
      %v1219 = vadd.f32 %v1026, %v1178
      %v1220 = vadd.f32 %v1027, %v1179
      %v1221 = vadd.f32 %v1028, %v1138
      %v1222 = vadd.f32 %v1029, %v1180
      %v1223 = vadd.f32 %v1030, %v1181
      %v1224 = vadd.f32 %v1031, %v1144
      %v1225 = vadd.f32 %v1032, %v1182
      %v1226 = vadd.f32 %v1033, %v1183
      %v1227 = vadd.f32 %v1034, %v1150
      %v1228 = vadd.f32 %v1035, %v1184
      %v1229 = vadd.f32 %v1036, %v1185
      %v1230 = vadd.f32 %v1037, %v1156
      %v1231 = vadd.f32 %v1038, %v1186
      %v1232 = vadd.f32 %v1039, %v1187
      %v1233 = vadd.f32 %v1040, %v1162
      %v1234 = vadd.f32 %v1041, %v1188
      %v1235 = vadd.f32 %v1042, %v1189
      %v1236 = vadd.f32 %v1043, %v1168
      %v1237 = vadd.f32 %v1044, %v1190
      %v1238 = vadd.f32 %v1045, %v1191
      %v1239 = vadd.f32 %v1046, %v1174
      %1240 = vset.pattern.permute.xlu0 5
      %1241 = vperm.xlu0 %1240, %v376
      %v1242 = vpop.permute.xlu0 %1241
      %1244 = vset.pattern.permute.xlu0 5
      %1245 = vperm.xlu0 %1244, %v377
      %v1246 = vpop.permute.xlu0 %1245
      %1248 = vset.pattern.permute.xlu0 5
      %1249 = vperm.xlu0 %1248, %v378
      %v1250 = vpop.permute.xlu0 %1249
      %1252 = vset.pattern.permute.xlu0 5
      %1253 = vperm.xlu0 %1252, %v379
      %v1254 = vpop.permute.xlu0 %1253
      %1256 = vset.pattern.permute.xlu0 5
      %1257 = vperm.xlu0 %1256, %v380
      %v1258 = vpop.permute.xlu0 %1257
      %1260 = vset.pattern.permute.xlu0 5
      %1261 = vperm.xlu0 %1260, %v381
      %v1262 = vpop.permute.xlu0 %1261
      %1264 = vset.pattern.permute.xlu0 5
      %1265 = vperm.xlu0 %1264, %v382
      %v1266 = vpop.permute.xlu0 %1265
      %1268 = vset.pattern.permute.xlu0 5
      %1269 = vperm.xlu0 %1268, %v383
      %v1270 = vpop.permute.xlu0 %1269
      %v1272 = vmul.f32 %v1242, %v438
      %v1273 = vmul.f32 %v1242, %v439
      %v1274 = vmul.f32 %v1242, %v440
      %v1275 = vmul.f32 %v1246, %v438
      %v1276 = vmul.f32 %v1246, %v439
      %v1277 = vmul.f32 %v1246, %v440
      %v1278 = vmul.f32 %v1250, %v438
      %v1279 = vmul.f32 %v1250, %v439
      %v1280 = vmul.f32 %v1250, %v440
      %v1281 = vmul.f32 %v1254, %v438
      %v1282 = vmul.f32 %v1254, %v439
      %v1283 = vmul.f32 %v1254, %v440
      %v1284 = vmul.f32 %v1258, %v438
      %v1285 = vmul.f32 %v1258, %v439
      %v1286 = vmul.f32 %v1258, %v440
      %v1287 = vmul.f32 %v1262, %v438
      %v1288 = vmul.f32 %v1262, %v439
      %v1289 = vmul.f32 %v1262, %v440
      %v1290 = vmul.f32 %v1266, %v438
      %v1291 = vmul.f32 %v1266, %v439
      %v1292 = vmul.f32 %v1266, %v440
      %v1293 = vmul.f32 %v1270, %v438
      %v1294 = vmul.f32 %v1270, %v439
      %v1295 = vmul.f32 %v1270, %v440
      %1320 = vrot.lane.b32.xlu0 %v1272, 108
      %v1321 = vpop.permute.xlu0 %1320
      %1322 = vrot.lane.b32.xlu0 %v1273, 108
      %v1323 = vpop.permute.xlu0 %1322
      %1324 = vrot.lane.b32.xlu0 %v1274, 108
      %v1325 = vpop.permute.xlu0 %1324
      %1326 = vrot.lane.b32.xlu0 %v1275, 108
      %v1327 = vpop.permute.xlu0 %1326
      %1328 = vrot.lane.b32.xlu0 %v1276, 108
      %v1329 = vpop.permute.xlu0 %1328
      %1330 = vrot.lane.b32.xlu0 %v1277, 108
      %v1331 = vpop.permute.xlu0 %1330
      %1332 = vrot.lane.b32.xlu0 %v1278, 108
      %v1333 = vpop.permute.xlu0 %1332
      %1334 = vrot.lane.b32.xlu0 %v1279, 108
      %v1335 = vpop.permute.xlu0 %1334
      %1336 = vrot.lane.b32.xlu0 %v1280, 108
      %v1337 = vpop.permute.xlu0 %1336
      %1338 = vrot.lane.b32.xlu0 %v1281, 108
      %v1339 = vpop.permute.xlu0 %1338
      %1340 = vrot.lane.b32.xlu0 %v1282, 108
      %v1341 = vpop.permute.xlu0 %1340
      %1342 = vrot.lane.b32.xlu0 %v1283, 108
      %v1343 = vpop.permute.xlu0 %1342
      %1344 = vrot.lane.b32.xlu0 %v1284, 108
      %v1345 = vpop.permute.xlu0 %1344
      %1346 = vrot.lane.b32.xlu0 %v1285, 108
      %v1347 = vpop.permute.xlu0 %1346
      %1348 = vrot.lane.b32.xlu0 %v1286, 108
      %v1349 = vpop.permute.xlu0 %1348
      %1350 = vrot.lane.b32.xlu0 %v1287, 108
      %v1351 = vpop.permute.xlu0 %1350
      %1352 = vrot.lane.b32.xlu0 %v1288, 108
      %v1353 = vpop.permute.xlu0 %1352
      %1354 = vrot.lane.b32.xlu0 %v1289, 108
      %v1355 = vpop.permute.xlu0 %1354
      %1356 = vrot.lane.b32.xlu0 %v1290, 108
      %v1357 = vpop.permute.xlu0 %1356
      %1358 = vrot.lane.b32.xlu0 %v1291, 108
      %v1359 = vpop.permute.xlu0 %1358
      %1360 = vrot.lane.b32.xlu0 %v1292, 108
      %v1361 = vpop.permute.xlu0 %1360
      %1362 = vrot.lane.b32.xlu0 %v1293, 108
      %v1363 = vpop.permute.xlu0 %1362
      %1364 = vrot.lane.b32.xlu0 %v1294, 108
      %v1365 = vpop.permute.xlu0 %1364
      %1366 = vrot.lane.b32.xlu0 %v1295, 108
      %v1367 = vpop.permute.xlu0 %1366
      %vm1368 = vcmask 883712
      %v1369 = vsel %vm1368, %v1321, %v1323
      %v1370 = vsel %vm1368, %v1323, %v1325
      %v1371 = vsel %vm1368, %v1327, %v1329
      %v1372 = vsel %vm1368, %v1329, %v1331
      %v1373 = vsel %vm1368, %v1333, %v1335
      %v1374 = vsel %vm1368, %v1335, %v1337
      %v1375 = vsel %vm1368, %v1339, %v1341
      %v1376 = vsel %vm1368, %v1341, %v1343
      %v1377 = vsel %vm1368, %v1345, %v1347
      %v1378 = vsel %vm1368, %v1347, %v1349
      %v1379 = vsel %vm1368, %v1351, %v1353
      %v1380 = vsel %vm1368, %v1353, %v1355
      %v1381 = vsel %vm1368, %v1357, %v1359
      %v1382 = vsel %vm1368, %v1359, %v1361
      %v1383 = vsel %vm1368, %v1363, %v1365
      %v1384 = vsel %vm1368, %v1365, %v1367
      %v1409 = vadd.f32 %v1216, %v1369
      %v1410 = vadd.f32 %v1217, %v1370
      %v1411 = vadd.f32 %v1218, %v1325
      %v1412 = vadd.f32 %v1219, %v1371
      %v1413 = vadd.f32 %v1220, %v1372
      %v1414 = vadd.f32 %v1221, %v1331
      %v1415 = vadd.f32 %v1222, %v1373
      %v1416 = vadd.f32 %v1223, %v1374
      %v1417 = vadd.f32 %v1224, %v1337
      %v1418 = vadd.f32 %v1225, %v1375
      %v1419 = vadd.f32 %v1226, %v1376
      %v1420 = vadd.f32 %v1227, %v1343
      %v1421 = vadd.f32 %v1228, %v1377
      %v1422 = vadd.f32 %v1229, %v1378
      %v1423 = vadd.f32 %v1230, %v1349
      %v1424 = vadd.f32 %v1231, %v1379
      %v1425 = vadd.f32 %v1232, %v1380
      %v1426 = vadd.f32 %v1233, %v1355
      %v1427 = vadd.f32 %v1234, %v1381
      %v1428 = vadd.f32 %v1235, %v1382
      %v1429 = vadd.f32 %v1236, %v1361
      %v1430 = vadd.f32 %v1237, %v1383
      %v1431 = vadd.f32 %v1238, %v1384
      %v1432 = vadd.f32 %v1239, %v1367
      %1433 = vset.pattern.permute.xlu0 6
      %1434 = vperm.xlu0 %1433, %v376
      %v1435 = vpop.permute.xlu0 %1434
      %1437 = vset.pattern.permute.xlu0 6
      %1438 = vperm.xlu0 %1437, %v377
      %v1439 = vpop.permute.xlu0 %1438
      %1441 = vset.pattern.permute.xlu0 6
      %1442 = vperm.xlu0 %1441, %v378
      %v1443 = vpop.permute.xlu0 %1442
      %1445 = vset.pattern.permute.xlu0 6
      %1446 = vperm.xlu0 %1445, %v379
      %v1447 = vpop.permute.xlu0 %1446
      %1449 = vset.pattern.permute.xlu0 6
      %1450 = vperm.xlu0 %1449, %v380
      %v1451 = vpop.permute.xlu0 %1450
      %1453 = vset.pattern.permute.xlu0 6
      %1454 = vperm.xlu0 %1453, %v381
      %v1455 = vpop.permute.xlu0 %1454
      %1457 = vset.pattern.permute.xlu0 6
      %1458 = vperm.xlu0 %1457, %v382
      %v1459 = vpop.permute.xlu0 %1458
      %1461 = vset.pattern.permute.xlu0 6
      %1462 = vperm.xlu0 %1461, %v383
      %v1463 = vpop.permute.xlu0 %1462
      %v1465 = vmul.f32 %v1435, %v438
      %v1466 = vmul.f32 %v1435, %v439
      %v1467 = vmul.f32 %v1435, %v440
      %v1468 = vmul.f32 %v1439, %v438
      %v1469 = vmul.f32 %v1439, %v439
      %v1470 = vmul.f32 %v1439, %v440
      %v1471 = vmul.f32 %v1443, %v438
      %v1472 = vmul.f32 %v1443, %v439
      %v1473 = vmul.f32 %v1443, %v440
      %v1474 = vmul.f32 %v1447, %v438
      %v1475 = vmul.f32 %v1447, %v439
      %v1476 = vmul.f32 %v1447, %v440
      %v1477 = vmul.f32 %v1451, %v438
      %v1478 = vmul.f32 %v1451, %v439
      %v1479 = vmul.f32 %v1451, %v440
      %v1480 = vmul.f32 %v1455, %v438
      %v1481 = vmul.f32 %v1455, %v439
      %v1482 = vmul.f32 %v1455, %v440
      %v1483 = vmul.f32 %v1459, %v438
      %v1484 = vmul.f32 %v1459, %v439
      %v1485 = vmul.f32 %v1459, %v440
      %v1486 = vmul.f32 %v1463, %v438
      %v1487 = vmul.f32 %v1463, %v439
      %v1488 = vmul.f32 %v1463, %v440
      %1513 = vrot.lane.b32.xlu0 %v1465, 92
      %v1514 = vpop.permute.xlu0 %1513
      %1515 = vrot.lane.b32.xlu0 %v1466, 92
      %v1516 = vpop.permute.xlu0 %1515
      %1517 = vrot.lane.b32.xlu0 %v1467, 92
      %v1518 = vpop.permute.xlu0 %1517
      %1519 = vrot.lane.b32.xlu0 %v1468, 92
      %v1520 = vpop.permute.xlu0 %1519
      %1521 = vrot.lane.b32.xlu0 %v1469, 92
      %v1522 = vpop.permute.xlu0 %1521
      %1523 = vrot.lane.b32.xlu0 %v1470, 92
      %v1524 = vpop.permute.xlu0 %1523
      %1525 = vrot.lane.b32.xlu0 %v1471, 92
      %v1526 = vpop.permute.xlu0 %1525
      %1527 = vrot.lane.b32.xlu0 %v1472, 92
      %v1528 = vpop.permute.xlu0 %1527
      %1529 = vrot.lane.b32.xlu0 %v1473, 92
      %v1530 = vpop.permute.xlu0 %1529
      %1531 = vrot.lane.b32.xlu0 %v1474, 92
      %v1532 = vpop.permute.xlu0 %1531
      %1533 = vrot.lane.b32.xlu0 %v1475, 92
      %v1534 = vpop.permute.xlu0 %1533
      %1535 = vrot.lane.b32.xlu0 %v1476, 92
      %v1536 = vpop.permute.xlu0 %1535
      %1537 = vrot.lane.b32.xlu0 %v1477, 92
      %v1538 = vpop.permute.xlu0 %1537
      %1539 = vrot.lane.b32.xlu0 %v1478, 92
      %v1540 = vpop.permute.xlu0 %1539
      %1541 = vrot.lane.b32.xlu0 %v1479, 92
      %v1542 = vpop.permute.xlu0 %1541
      %1543 = vrot.lane.b32.xlu0 %v1480, 92
      %v1544 = vpop.permute.xlu0 %1543
      %1545 = vrot.lane.b32.xlu0 %v1481, 92
      %v1546 = vpop.permute.xlu0 %1545
      %1547 = vrot.lane.b32.xlu0 %v1482, 92
      %v1548 = vpop.permute.xlu0 %1547
      %1549 = vrot.lane.b32.xlu0 %v1483, 92
      %v1550 = vpop.permute.xlu0 %1549
      %1551 = vrot.lane.b32.xlu0 %v1484, 92
      %v1552 = vpop.permute.xlu0 %1551
      %1553 = vrot.lane.b32.xlu0 %v1485, 92
      %v1554 = vpop.permute.xlu0 %1553
      %1555 = vrot.lane.b32.xlu0 %v1486, 92
      %v1556 = vpop.permute.xlu0 %1555
      %1557 = vrot.lane.b32.xlu0 %v1487, 92
      %v1558 = vpop.permute.xlu0 %1557
      %1559 = vrot.lane.b32.xlu0 %v1488, 92
      %v1560 = vpop.permute.xlu0 %1559
      %vm1561 = vcmask 752640
      %v1562 = vsel %vm1561, %v1514, %v1516
      %v1563 = vsel %vm1561, %v1516, %v1518
      %v1564 = vsel %vm1561, %v1520, %v1522
      %v1565 = vsel %vm1561, %v1522, %v1524
      %v1566 = vsel %vm1561, %v1526, %v1528
      %v1567 = vsel %vm1561, %v1528, %v1530
      %v1568 = vsel %vm1561, %v1532, %v1534
      %v1569 = vsel %vm1561, %v1534, %v1536
      %v1570 = vsel %vm1561, %v1538, %v1540
      %v1571 = vsel %vm1561, %v1540, %v1542
      %v1572 = vsel %vm1561, %v1544, %v1546
      %v1573 = vsel %vm1561, %v1546, %v1548
      %v1574 = vsel %vm1561, %v1550, %v1552
      %v1575 = vsel %vm1561, %v1552, %v1554
      %v1576 = vsel %vm1561, %v1556, %v1558
      %v1577 = vsel %vm1561, %v1558, %v1560
      %v1602 = vadd.f32 %v1409, %v1562
      %v1603 = vadd.f32 %v1410, %v1563
      %v1604 = vadd.f32 %v1411, %v1518
      %v1605 = vadd.f32 %v1412, %v1564
      %v1606 = vadd.f32 %v1413, %v1565
      %v1607 = vadd.f32 %v1414, %v1524
      %v1608 = vadd.f32 %v1415, %v1566
      %v1609 = vadd.f32 %v1416, %v1567
      %v1610 = vadd.f32 %v1417, %v1530
      %v1611 = vadd.f32 %v1418, %v1568
      %v1612 = vadd.f32 %v1419, %v1569
      %v1613 = vadd.f32 %v1420, %v1536
      %v1614 = vadd.f32 %v1421, %v1570
      %v1615 = vadd.f32 %v1422, %v1571
      %v1616 = vadd.f32 %v1423, %v1542
      %v1617 = vadd.f32 %v1424, %v1572
      %v1618 = vadd.f32 %v1425, %v1573
      %v1619 = vadd.f32 %v1426, %v1548
      %v1620 = vadd.f32 %v1427, %v1574
      %v1621 = vadd.f32 %v1428, %v1575
      %v1622 = vadd.f32 %v1429, %v1554
      %v1623 = vadd.f32 %v1430, %v1576
      %v1624 = vadd.f32 %v1431, %v1577
      %v1625 = vadd.f32 %v1432, %v1560
      %1626 = vset.pattern.permute.xlu0 7
      %1627 = vperm.xlu0 %1626, %v376
      %v1628 = vpop.permute.xlu0 %1627
      %1630 = vset.pattern.permute.xlu0 7
      %1631 = vperm.xlu0 %1630, %v377
      %v1632 = vpop.permute.xlu0 %1631
      %1634 = vset.pattern.permute.xlu0 7
      %1635 = vperm.xlu0 %1634, %v378
      %v1636 = vpop.permute.xlu0 %1635
      %1638 = vset.pattern.permute.xlu0 7
      %1639 = vperm.xlu0 %1638, %v379
      %v1640 = vpop.permute.xlu0 %1639
      %1642 = vset.pattern.permute.xlu0 7
      %1643 = vperm.xlu0 %1642, %v380
      %v1644 = vpop.permute.xlu0 %1643
      %1646 = vset.pattern.permute.xlu0 7
      %1647 = vperm.xlu0 %1646, %v381
      %v1648 = vpop.permute.xlu0 %1647
      %1650 = vset.pattern.permute.xlu0 7
      %1651 = vperm.xlu0 %1650, %v382
      %v1652 = vpop.permute.xlu0 %1651
      %1654 = vset.pattern.permute.xlu0 7
      %1655 = vperm.xlu0 %1654, %v383
      %v1656 = vpop.permute.xlu0 %1655
      %v1658 = vmul.f32 %v1628, %v438
      %v1659 = vmul.f32 %v1628, %v439
      %v1660 = vmul.f32 %v1628, %v440
      %v1661 = vmul.f32 %v1632, %v438
      %v1662 = vmul.f32 %v1632, %v439
      %v1663 = vmul.f32 %v1632, %v440
      %v1664 = vmul.f32 %v1636, %v438
      %v1665 = vmul.f32 %v1636, %v439
      %v1666 = vmul.f32 %v1636, %v440
      %v1667 = vmul.f32 %v1640, %v438
      %v1668 = vmul.f32 %v1640, %v439
      %v1669 = vmul.f32 %v1640, %v440
      %v1670 = vmul.f32 %v1644, %v438
      %v1671 = vmul.f32 %v1644, %v439
      %v1672 = vmul.f32 %v1644, %v440
      %v1673 = vmul.f32 %v1648, %v438
      %v1674 = vmul.f32 %v1648, %v439
      %v1675 = vmul.f32 %v1648, %v440
      %v1676 = vmul.f32 %v1652, %v438
      %v1677 = vmul.f32 %v1652, %v439
      %v1678 = vmul.f32 %v1652, %v440
      %v1679 = vmul.f32 %v1656, %v438
      %v1680 = vmul.f32 %v1656, %v439
      %v1681 = vmul.f32 %v1656, %v440
      %1706 = vrot.lane.b32.xlu0 %v1658, 91
      %v1707 = vpop.permute.xlu0 %1706
      %1708 = vrot.lane.b32.xlu0 %v1659, 91
      %v1709 = vpop.permute.xlu0 %1708
      %1710 = vrot.lane.b32.xlu0 %v1660, 91
      %v1711 = vpop.permute.xlu0 %1710
      %1712 = vrot.lane.b32.xlu0 %v1661, 91
      %v1713 = vpop.permute.xlu0 %1712
      %1714 = vrot.lane.b32.xlu0 %v1662, 91
      %v1715 = vpop.permute.xlu0 %1714
      %1716 = vrot.lane.b32.xlu0 %v1663, 91
      %v1717 = vpop.permute.xlu0 %1716
      %1718 = vrot.lane.b32.xlu0 %v1664, 91
      %v1719 = vpop.permute.xlu0 %1718
      %1720 = vrot.lane.b32.xlu0 %v1665, 91
      %v1721 = vpop.permute.xlu0 %1720
      %1722 = vrot.lane.b32.xlu0 %v1666, 91
      %v1723 = vpop.permute.xlu0 %1722
      %1724 = vrot.lane.b32.xlu0 %v1667, 91
      %v1725 = vpop.permute.xlu0 %1724
      %1726 = vrot.lane.b32.xlu0 %v1668, 91
      %v1727 = vpop.permute.xlu0 %1726
      %1728 = vrot.lane.b32.xlu0 %v1669, 91
      %v1729 = vpop.permute.xlu0 %1728
      %1730 = vrot.lane.b32.xlu0 %v1670, 91
      %v1731 = vpop.permute.xlu0 %1730
      %1732 = vrot.lane.b32.xlu0 %v1671, 91
      %v1733 = vpop.permute.xlu0 %1732
      %1734 = vrot.lane.b32.xlu0 %v1672, 91
      %v1735 = vpop.permute.xlu0 %1734
      %1736 = vrot.lane.b32.xlu0 %v1673, 91
      %v1737 = vpop.permute.xlu0 %1736
      %1738 = vrot.lane.b32.xlu0 %v1674, 91
      %v1739 = vpop.permute.xlu0 %1738
      %1740 = vrot.lane.b32.xlu0 %v1675, 91
      %v1741 = vpop.permute.xlu0 %1740
      %1742 = vrot.lane.b32.xlu0 %v1676, 91
      %v1743 = vpop.permute.xlu0 %1742
      %1744 = vrot.lane.b32.xlu0 %v1677, 91
      %v1745 = vpop.permute.xlu0 %1744
      %1746 = vrot.lane.b32.xlu0 %v1678, 91
      %v1747 = vpop.permute.xlu0 %1746
      %1748 = vrot.lane.b32.xlu0 %v1679, 91
      %v1749 = vpop.permute.xlu0 %1748
      %1750 = vrot.lane.b32.xlu0 %v1680, 91
      %v1751 = vpop.permute.xlu0 %1750
      %1752 = vrot.lane.b32.xlu0 %v1681, 91
      %v1753 = vpop.permute.xlu0 %1752
      %vm1754 = vcmask 744448
      %v1755 = vsel %vm1754, %v1707, %v1709
      %v1756 = vsel %vm1754, %v1709, %v1711
      %v1757 = vsel %vm1754, %v1713, %v1715
      %v1758 = vsel %vm1754, %v1715, %v1717
      %v1759 = vsel %vm1754, %v1719, %v1721
      %v1760 = vsel %vm1754, %v1721, %v1723
      %v1761 = vsel %vm1754, %v1725, %v1727
      %v1762 = vsel %vm1754, %v1727, %v1729
      %v1763 = vsel %vm1754, %v1731, %v1733
      %v1764 = vsel %vm1754, %v1733, %v1735
      %v1765 = vsel %vm1754, %v1737, %v1739
      %v1766 = vsel %vm1754, %v1739, %v1741
      %v1767 = vsel %vm1754, %v1743, %v1745
      %v1768 = vsel %vm1754, %v1745, %v1747
      %v1769 = vsel %vm1754, %v1749, %v1751
      %v1770 = vsel %vm1754, %v1751, %v1753
      %v1795 = vadd.f32 %v1602, %v1755
      %v1796 = vadd.f32 %v1603, %v1756
      %v1797 = vadd.f32 %v1604, %v1711
      %v1798 = vadd.f32 %v1605, %v1757
      %v1799 = vadd.f32 %v1606, %v1758
      %v1800 = vadd.f32 %v1607, %v1717
      %v1801 = vadd.f32 %v1608, %v1759
      %v1802 = vadd.f32 %v1609, %v1760
      %v1803 = vadd.f32 %v1610, %v1723
      %v1804 = vadd.f32 %v1611, %v1761
      %v1805 = vadd.f32 %v1612, %v1762
      %v1806 = vadd.f32 %v1613, %v1729
      %v1807 = vadd.f32 %v1614, %v1763
      %v1808 = vadd.f32 %v1615, %v1764
      %v1809 = vadd.f32 %v1616, %v1735
      %v1810 = vadd.f32 %v1617, %v1765
      %v1811 = vadd.f32 %v1618, %v1766
      %v1812 = vadd.f32 %v1619, %v1741
      %v1813 = vadd.f32 %v1620, %v1767
      %v1814 = vadd.f32 %v1621, %v1768
      %v1815 = vadd.f32 %v1622, %v1747
      %v1816 = vadd.f32 %v1623, %v1769
      %v1817 = vadd.f32 %v1624, %v1770
      %v1818 = vadd.f32 %v1625, %v1753
      %1819 = vset.pattern.permute.xlu0 8
      %1820 = vperm.xlu0 %1819, %v376
      %v1821 = vpop.permute.xlu0 %1820
      %1823 = vset.pattern.permute.xlu0 8
      %1824 = vperm.xlu0 %1823, %v377
      %v1825 = vpop.permute.xlu0 %1824
      %1827 = vset.pattern.permute.xlu0 8
      %1828 = vperm.xlu0 %1827, %v378
      %v1829 = vpop.permute.xlu0 %1828
      %1831 = vset.pattern.permute.xlu0 8
      %1832 = vperm.xlu0 %1831, %v379
      %v1833 = vpop.permute.xlu0 %1832
      %1835 = vset.pattern.permute.xlu0 8
      %1836 = vperm.xlu0 %1835, %v380
      %v1837 = vpop.permute.xlu0 %1836
      %1839 = vset.pattern.permute.xlu0 8
      %1840 = vperm.xlu0 %1839, %v381
      %v1841 = vpop.permute.xlu0 %1840
      %1843 = vset.pattern.permute.xlu0 8
      %1844 = vperm.xlu0 %1843, %v382
      %v1845 = vpop.permute.xlu0 %1844
      %1847 = vset.pattern.permute.xlu0 8
      %1848 = vperm.xlu0 %1847, %v383
      %v1849 = vpop.permute.xlu0 %1848
      %v1851 = vmul.f32 %v1821, %v438
      %v1852 = vmul.f32 %v1821, %v439
      %v1853 = vmul.f32 %v1821, %v440
      %v1854 = vmul.f32 %v1825, %v438
      %v1855 = vmul.f32 %v1825, %v439
      %v1856 = vmul.f32 %v1825, %v440
      %v1857 = vmul.f32 %v1829, %v438
      %v1858 = vmul.f32 %v1829, %v439
      %v1859 = vmul.f32 %v1829, %v440
      %v1860 = vmul.f32 %v1833, %v438
      %v1861 = vmul.f32 %v1833, %v439
      %v1862 = vmul.f32 %v1833, %v440
      %v1863 = vmul.f32 %v1837, %v438
      %v1864 = vmul.f32 %v1837, %v439
      %v1865 = vmul.f32 %v1837, %v440
      %v1866 = vmul.f32 %v1841, %v438
      %v1867 = vmul.f32 %v1841, %v439
      %v1868 = vmul.f32 %v1841, %v440
      %v1869 = vmul.f32 %v1845, %v438
      %v1870 = vmul.f32 %v1845, %v439
      %v1871 = vmul.f32 %v1845, %v440
      %v1872 = vmul.f32 %v1849, %v438
      %v1873 = vmul.f32 %v1849, %v439
      %v1874 = vmul.f32 %v1849, %v440
      %1899 = vrot.lane.b32.xlu0 %v1851, 90
      %v1900 = vpop.permute.xlu0 %1899
      %1901 = vrot.lane.b32.xlu0 %v1852, 90
      %v1902 = vpop.permute.xlu0 %1901
      %1903 = vrot.lane.b32.xlu0 %v1853, 90
      %v1904 = vpop.permute.xlu0 %1903
      %1905 = vrot.lane.b32.xlu0 %v1854, 90
      %v1906 = vpop.permute.xlu0 %1905
      %1907 = vrot.lane.b32.xlu0 %v1855, 90
      %v1908 = vpop.permute.xlu0 %1907
      %1909 = vrot.lane.b32.xlu0 %v1856, 90
      %v1910 = vpop.permute.xlu0 %1909
      %1911 = vrot.lane.b32.xlu0 %v1857, 90
      %v1912 = vpop.permute.xlu0 %1911
      %1913 = vrot.lane.b32.xlu0 %v1858, 90
      %v1914 = vpop.permute.xlu0 %1913
      %1915 = vrot.lane.b32.xlu0 %v1859, 90
      %v1916 = vpop.permute.xlu0 %1915
      %1917 = vrot.lane.b32.xlu0 %v1860, 90
      %v1918 = vpop.permute.xlu0 %1917
      %1919 = vrot.lane.b32.xlu0 %v1861, 90
      %v1920 = vpop.permute.xlu0 %1919
      %1921 = vrot.lane.b32.xlu0 %v1862, 90
      %v1922 = vpop.permute.xlu0 %1921
      %1923 = vrot.lane.b32.xlu0 %v1863, 90
      %v1924 = vpop.permute.xlu0 %1923
      %1925 = vrot.lane.b32.xlu0 %v1864, 90
      %v1926 = vpop.permute.xlu0 %1925
      %1927 = vrot.lane.b32.xlu0 %v1865, 90
      %v1928 = vpop.permute.xlu0 %1927
      %1929 = vrot.lane.b32.xlu0 %v1866, 90
      %v1930 = vpop.permute.xlu0 %1929
      %1931 = vrot.lane.b32.xlu0 %v1867, 90
      %v1932 = vpop.permute.xlu0 %1931
      %1933 = vrot.lane.b32.xlu0 %v1868, 90
      %v1934 = vpop.permute.xlu0 %1933
      %1935 = vrot.lane.b32.xlu0 %v1869, 90
      %v1936 = vpop.permute.xlu0 %1935
      %1937 = vrot.lane.b32.xlu0 %v1870, 90
      %v1938 = vpop.permute.xlu0 %1937
      %1939 = vrot.lane.b32.xlu0 %v1871, 90
      %v1940 = vpop.permute.xlu0 %1939
      %1941 = vrot.lane.b32.xlu0 %v1872, 90
      %v1942 = vpop.permute.xlu0 %1941
      %1943 = vrot.lane.b32.xlu0 %v1873, 90
      %v1944 = vpop.permute.xlu0 %1943
      %1945 = vrot.lane.b32.xlu0 %v1874, 90
      %v1946 = vpop.permute.xlu0 %1945
      %vm1947 = vcmask 736256
      %v1948 = vsel %vm1947, %v1900, %v1902
      %v1949 = vsel %vm1947, %v1902, %v1904
      %v1950 = vsel %vm1947, %v1906, %v1908
      %v1951 = vsel %vm1947, %v1908, %v1910
      %v1952 = vsel %vm1947, %v1912, %v1914
      %v1953 = vsel %vm1947, %v1914, %v1916
      %v1954 = vsel %vm1947, %v1918, %v1920
      %v1955 = vsel %vm1947, %v1920, %v1922
      %v1956 = vsel %vm1947, %v1924, %v1926
      %v1957 = vsel %vm1947, %v1926, %v1928
      %v1958 = vsel %vm1947, %v1930, %v1932
      %v1959 = vsel %vm1947, %v1932, %v1934
      %v1960 = vsel %vm1947, %v1936, %v1938
      %v1961 = vsel %vm1947, %v1938, %v1940
      %v1962 = vsel %vm1947, %v1942, %v1944
      %v1963 = vsel %vm1947, %v1944, %v1946
      %v1988 = vadd.f32 %v1795, %v1948
      %v1989 = vadd.f32 %v1796, %v1949
      %v1990 = vadd.f32 %v1797, %v1904
      %v1991 = vadd.f32 %v1798, %v1950
      %v1992 = vadd.f32 %v1799, %v1951
      %v1993 = vadd.f32 %v1800, %v1910
      %v1994 = vadd.f32 %v1801, %v1952
      %v1995 = vadd.f32 %v1802, %v1953
      %v1996 = vadd.f32 %v1803, %v1916
      %v1997 = vadd.f32 %v1804, %v1954
      %v1998 = vadd.f32 %v1805, %v1955
      %v1999 = vadd.f32 %v1806, %v1922
      %v2000 = vadd.f32 %v1807, %v1956
      %v2001 = vadd.f32 %v1808, %v1957
      %v2002 = vadd.f32 %v1809, %v1928
      %v2003 = vadd.f32 %v1810, %v1958
      %v2004 = vadd.f32 %v1811, %v1959
      %v2005 = vadd.f32 %v1812, %v1934
      %v2006 = vadd.f32 %v1813, %v1960
      %v2007 = vadd.f32 %v1814, %v1961
      %v2008 = vadd.f32 %v1815, %v1940
      %v2009 = vadd.f32 %v1816, %v1962
      %v2010 = vadd.f32 %v1817, %v1963
      %v2011 = vadd.f32 %v1818, %v1946
      %2013 = vset.pattern.permute.xlu0 0
      %2014 = vperm.xlu0 %2013, %v384
      %v2015 = vpop.permute.xlu0 %2014
      %2018 = vset.pattern.permute.xlu0 0
      %2019 = vperm.xlu0 %2018, %v385
      %v2020 = vpop.permute.xlu0 %2019
      %2023 = vset.pattern.permute.xlu0 0
      %2024 = vperm.xlu0 %2023, %v386
      %v2025 = vpop.permute.xlu0 %2024
      %2028 = vset.pattern.permute.xlu0 0
      %2029 = vperm.xlu0 %2028, %v387
      %v2030 = vpop.permute.xlu0 %2029
      %2033 = vset.pattern.permute.xlu0 0
      %2034 = vperm.xlu0 %2033, %v388
      %v2035 = vpop.permute.xlu0 %2034
      %2038 = vset.pattern.permute.xlu0 0
      %2039 = vperm.xlu0 %2038, %v389
      %v2040 = vpop.permute.xlu0 %2039
      %2043 = vset.pattern.permute.xlu0 0
      %2044 = vperm.xlu0 %2043, %v390
      %v2045 = vpop.permute.xlu0 %2044
      %2048 = vset.pattern.permute.xlu0 0
      %2049 = vperm.xlu0 %2048, %v391
      %v2050 = vpop.permute.xlu0 %2049
      %v2052 = vadd.f32 %v1988, %v2015
      %v2053 = vadd.f32 %v1989, %v2015
      %v2054 = vadd.f32 %v1990, %v2015
      %v2055 = vadd.f32 %v1991, %v2020
      %v2056 = vadd.f32 %v1992, %v2020
      %v2057 = vadd.f32 %v1993, %v2020
      %v2058 = vadd.f32 %v1994, %v2025
      %v2059 = vadd.f32 %v1995, %v2025
      %v2060 = vadd.f32 %v1996, %v2025
      %v2061 = vadd.f32 %v1997, %v2030
      %v2062 = vadd.f32 %v1998, %v2030
      %v2063 = vadd.f32 %v1999, %v2030
      %v2064 = vadd.f32 %v2000, %v2035
      %v2065 = vadd.f32 %v2001, %v2035
      %v2066 = vadd.f32 %v2002, %v2035
      %v2067 = vadd.f32 %v2003, %v2040
      %v2068 = vadd.f32 %v2004, %v2040
      %v2069 = vadd.f32 %v2005, %v2040
      %v2070 = vadd.f32 %v2006, %v2045
      %v2071 = vadd.f32 %v2007, %v2045
      %v2072 = vadd.f32 %v2008, %v2045
      %v2073 = vadd.f32 %v2009, %v2050
      %v2074 = vadd.f32 %v2010, %v2050
      %v2075 = vadd.f32 %v2011, %v2050
      %v2076 = vmax.f32 %v2052, 0.0
      %v2077 = vmax.f32 %v2053, 0.0
      %v2078 = vmax.f32 %v2054, 0.0
      %v2079 = vmax.f32 %v2055, 0.0
      %v2080 = vmax.f32 %v2056, 0.0
      %v2081 = vmax.f32 %v2057, 0.0
      %v2082 = vmax.f32 %v2058, 0.0
      %v2083 = vmax.f32 %v2059, 0.0
      %v2084 = vmax.f32 %v2060, 0.0
      %v2085 = vmax.f32 %v2061, 0.0
      %v2086 = vmax.f32 %v2062, 0.0
      %v2087 = vmax.f32 %v2063, 0.0
      %v2088 = vmax.f32 %v2064, 0.0
      %v2089 = vmax.f32 %v2065, 0.0
      %v2090 = vmax.f32 %v2066, 0.0
      %v2091 = vmax.f32 %v2067, 0.0
      %v2092 = vmax.f32 %v2068, 0.0
      %v2093 = vmax.f32 %v2069, 0.0
      %v2094 = vmax.f32 %v2070, 0.0
      %v2095 = vmax.f32 %v2071, 0.0
      %v2096 = vmax.f32 %v2072, 0.0
      %v2097 = vmax.f32 %v2073, 0.0
      %v2098 = vmax.f32 %v2074, 0.0
      %v2099 = vmax.f32 %v2075, 0.0
      %vm2100 = vcmask 523264
      %v2102 = vsel %vm2100, %v392, 0
      %v2105 = vsel %vm2100, %v393, 0
      %2107 = vmatpush.msra.mxu0 0.0
      %2108 = vmatpush.msra.mxu0 0.0
      %2109 = vmatpush.msra.mxu0 0.0
      %2110 = vmatpush.msra.mxu0 0.0
      %2111 = vmatpush.msra.mxu0 0.0
      %2112 = vmatpush.msra.mxu0 0.0
      %2113 = vmatpush.msra.mxu0 0.0
      %2114 = vmatpush.msra.mxu0 0.0
      %2115 = vmatpush.msra.mxu0 %v2097
      %2116 = vmatpush.msra.mxu0 %v2094
      %2117 = vmatpush.msra.mxu0 %v2091
      %2118 = vmatpush.msra.mxu0 %v2088
      %2119 = vmatpush.msra.mxu0 %v2085
      %2120 = vmatpush.msra.mxu0 %v2082
      %2121 = vmatpush.msra.mxu0 %v2079
      %2122 = vmatpush.msra.mxu0 %v2076
      %2123 = vmatmul.f32.gmra.mxu0 %v2102
      %v2124 = vpop.f32.mrf.mxu0
      %v2125 = vadd.f32 0.0, %v2124
      %2126 = vmatmul.f32.gmra.mxu0 %v2105
      %v2127 = vpop.f32.mrf.mxu0
      %v2128 = vadd.f32 0.0, %v2127
      %2129 = vdwg.mxu0
      %2130 = vmatpush.msra.mxu0 0.0
      %2131 = vmatpush.msra.mxu0 0.0
      %2132 = vmatpush.msra.mxu0 0.0
      %2133 = vmatpush.msra.mxu0 0.0
      %2134 = vmatpush.msra.mxu0 0.0
      %2135 = vmatpush.msra.mxu0 0.0
      %2136 = vmatpush.msra.mxu0 0.0
      %2137 = vmatpush.msra.mxu0 0.0
      %2138 = vmatpush.msra.mxu0 %v2098
      %2139 = vmatpush.msra.mxu0 %v2095
      %2140 = vmatpush.msra.mxu0 %v2092
      %2141 = vmatpush.msra.mxu0 %v2089
      %2142 = vmatpush.msra.mxu0 %v2086
      %2143 = vmatpush.msra.mxu0 %v2083
      %2144 = vmatpush.msra.mxu0 %v2080
      %2145 = vmatpush.msra.mxu0 %v2077
      %2146 = vmatmul.f32.gmra.mxu0 %v2102
      %v2147 = vpop.f32.mrf.mxu0
      %v2148 = vadd.f32 0.0, %v2147
      %2149 = vmatmul.f32.gmra.mxu0 %v2105
      %v2150 = vpop.f32.mrf.mxu0
      %v2151 = vadd.f32 0.0, %v2150
      %2152 = vdwg.mxu0
      %2153 = vmatpush.msra.mxu0 0.0
      %2154 = vmatpush.msra.mxu0 0.0
      %2155 = vmatpush.msra.mxu0 0.0
      %2156 = vmatpush.msra.mxu0 0.0
      %2157 = vmatpush.msra.mxu0 0.0
      %2158 = vmatpush.msra.mxu0 0.0
      %2159 = vmatpush.msra.mxu0 0.0
      %2160 = vmatpush.msra.mxu0 0.0
      %2161 = vmatpush.msra.mxu0 %v2099
      %2162 = vmatpush.msra.mxu0 %v2096
      %2163 = vmatpush.msra.mxu0 %v2093
      %2164 = vmatpush.msra.mxu0 %v2090
      %2165 = vmatpush.msra.mxu0 %v2087
      %2166 = vmatpush.msra.mxu0 %v2084
      %2167 = vmatpush.msra.mxu0 %v2081
      %2168 = vmatpush.msra.mxu0 %v2078
      %2169 = vmatmul.f32.gmra.mxu0 %v2102
      %v2170 = vpop.f32.mrf.mxu0
      %v2171 = vadd.f32 0.0, %v2170
      %2172 = vmatmul.f32.gmra.mxu0 %v2105
      %v2173 = vpop.f32.mrf.mxu0
      %v2174 = vadd.f32 0.0, %v2173
      %2175 = vdwg.mxu0
      %v2177 = vperm.slane %v396, 0
      %v2178 = vperm.slane %v396, 1
      %v2179 = vperm.slane %v396, 2
      %v2183 = vmul.f32 %v2125, %v2177
      %v2184 = vmul.f32 %v2148, %v2178
      %v2185 = vmul.f32 %v2171, %v2179
      %v2186 = vmul.f32 %v2128, %v2177
      %v2187 = vmul.f32 %v2151, %v2178
      %v2188 = vmul.f32 %v2174, %v2179
      %v2189 = vstv %s394
      %v2190 = vadd.f32 %v2183, %v2189
      %v2191 = vadd.f32 %v2184, %v2189
      %v2195 = vrot.slane %v2183, 1
      %v2196 = vrot.slane %v2184, 1
      %v2197 = vrot.slane %v2185, 1
      %2198 = vrot.lane.b32.xlu0 %v2195, 127
      %v2199 = vpop.permute.xlu0 %2198
      %2200 = vrot.lane.b32.xlu0 %v2196, 127
      %v2201 = vpop.permute.xlu0 %2200
      %2202 = vrot.lane.b32.xlu0 %v2197, 127
      %v2203 = vpop.permute.xlu0 %2202
      %v2204 = vsel %vm596, %v2199, %v2201
      %v2205 = vsel %vm596, %v2201, %v2203
      %v2208 = vadd.f32 %v2190, %v2204
      %v2209 = vadd.f32 %v2191, %v2205
      %v2210 = vrot.slane %v2183, 2
      %v2211 = vrot.slane %v2184, 2
      %v2212 = vrot.slane %v2185, 2
      %2213 = vrot.lane.b32.xlu0 %v2210, 126
      %v2214 = vpop.permute.xlu0 %2213
      %2215 = vrot.lane.b32.xlu0 %v2211, 126
      %v2216 = vpop.permute.xlu0 %2215
      %2217 = vrot.lane.b32.xlu0 %v2212, 126
      %v2218 = vpop.permute.xlu0 %2217
      %v2219 = vsel %vm789, %v2214, %v2216
      %v2220 = vsel %vm789, %v2216, %v2218
      %v2223 = vadd.f32 %v2208, %v2219
      %v2224 = vadd.f32 %v2209, %v2220
      %v2225 = vrot.slane %v2183, 3
      %v2226 = vrot.slane %v2184, 3
      %v2227 = vrot.slane %v2185, 3
      %2228 = vrot.lane.b32.xlu0 %v2225, 110
      %v2229 = vpop.permute.xlu0 %2228
      %2230 = vrot.lane.b32.xlu0 %v2226, 110
      %v2231 = vpop.permute.xlu0 %2230
      %2232 = vrot.lane.b32.xlu0 %v2227, 110
      %v2233 = vpop.permute.xlu0 %2232
      %v2234 = vsel %vm982, %v2229, %v2231
      %v2235 = vsel %vm982, %v2231, %v2233
      %v2238 = vadd.f32 %v2223, %v2234
      %v2239 = vadd.f32 %v2224, %v2235
      %v2240 = vrot.slane %v2183, 4
      %v2241 = vrot.slane %v2184, 4
      %v2242 = vrot.slane %v2185, 4
      %2243 = vrot.lane.b32.xlu0 %v2240, 109
      %v2244 = vpop.permute.xlu0 %2243
      %2245 = vrot.lane.b32.xlu0 %v2241, 109
      %v2246 = vpop.permute.xlu0 %2245
      %2247 = vrot.lane.b32.xlu0 %v2242, 109
      %v2248 = vpop.permute.xlu0 %2247
      %v2249 = vsel %vm1175, %v2244, %v2246
      %v2250 = vsel %vm1175, %v2246, %v2248
      %v2253 = vadd.f32 %v2238, %v2249
      %v2254 = vadd.f32 %v2239, %v2250
      %v2255 = vrot.slane %v2183, 5
      %v2256 = vrot.slane %v2184, 5
      %v2257 = vrot.slane %v2185, 5
      %2258 = vrot.lane.b32.xlu0 %v2255, 108
      %v2259 = vpop.permute.xlu0 %2258
      %2260 = vrot.lane.b32.xlu0 %v2256, 108
      %v2261 = vpop.permute.xlu0 %2260
      %2262 = vrot.lane.b32.xlu0 %v2257, 108
      %v2263 = vpop.permute.xlu0 %2262
      %v2264 = vsel %vm1368, %v2259, %v2261
      %v2265 = vsel %vm1368, %v2261, %v2263
      %v2268 = vadd.f32 %v2253, %v2264
      %v2269 = vadd.f32 %v2254, %v2265
      %v2270 = vrot.slane %v2183, 6
      %v2271 = vrot.slane %v2184, 6
      %v2272 = vrot.slane %v2185, 6
      %2273 = vrot.lane.b32.xlu0 %v2270, 92
      %v2274 = vpop.permute.xlu0 %2273
      %2275 = vrot.lane.b32.xlu0 %v2271, 92
      %v2276 = vpop.permute.xlu0 %2275
      %2277 = vrot.lane.b32.xlu0 %v2272, 92
      %v2278 = vpop.permute.xlu0 %2277
      %v2279 = vsel %vm1561, %v2274, %v2276
      %v2280 = vsel %vm1561, %v2276, %v2278
      %v2283 = vadd.f32 %v2268, %v2279
      %v2284 = vadd.f32 %v2269, %v2280
      %v2285 = vrot.slane %v2183, 7
      %v2286 = vrot.slane %v2184, 7
      %v2287 = vrot.slane %v2185, 7
      %2288 = vrot.lane.b32.xlu0 %v2285, 91
      %v2289 = vpop.permute.xlu0 %2288
      %2290 = vrot.lane.b32.xlu0 %v2286, 91
      %v2291 = vpop.permute.xlu0 %2290
      %2292 = vrot.lane.b32.xlu0 %v2287, 91
      %v2293 = vpop.permute.xlu0 %2292
      %v2294 = vsel %vm1754, %v2289, %v2291
      %v2295 = vsel %vm1754, %v2291, %v2293
      %v2298 = vadd.f32 %v2283, %v2294
      %v2299 = vadd.f32 %v2284, %v2295
      %2303 = vrot.lane.b32.xlu0 %v2186, 90
      %v2304 = vpop.permute.xlu0 %2303
      %2305 = vrot.lane.b32.xlu0 %v2187, 90
      %v2306 = vpop.permute.xlu0 %2305
      %2307 = vrot.lane.b32.xlu0 %v2188, 90
      %v2308 = vpop.permute.xlu0 %2307
      %v2309 = vsel %vm1947, %v2304, %v2306
      %v2310 = vsel %vm1947, %v2306, %v2308
      %v2313 = vadd.f32 %v2298, %v2309
      %v2314 = vadd.f32 %v2299, %v2310
      %v2317 = vrot.slane %v2314, 7
      %vm2318 = vcmask 1040384
      %v2319 = vsel %vm2318, %v2313, %v2317
      %v2321 = vlaneseq
      %vm2322 = vcmp.ge.s32.totalorder %v2321, 0
      %vm2323 = vcmp.lt.s32.totalorder %v2321, 256
      %vm2324 = vmand %vm2322, %vm2323
      %2325 = vst.msk [vmem:[%s374] sm:$0x3] %vm2324, %v2319
      %v2326 = vld [vmem:[%s350 + $0x2] sm:$0x3]
      %v2327 = vld [vmem:[%s356] sm:$0x1]
      %v2329 = vperm.slane %v2326, 0
      %v2330 = vperm.slane %v2326, 1
      %v2333 = vld [vmem:[%s362 + $0x2] sm:$0x3]
      %v2334 = vld [vmem:[%s368] sm:$0x1]
      %v2336 = vperm.slane %v2333, 0
      %v2337 = vperm.slane %v2333, 1
      %v2340 = vperm.slane %v2329, 0
      %v2341 = vperm.slane %v2330, 0
      %v2342 = vperm.slane %v2327, 0
      %v2343 = vmul.f32 %v400, %v2340
      %v2344 = vmul.f32 %v400, %v2341
      %v2345 = vmul.f32 %v400, %v2342
      %v2346 = vmul.f32 %v405, %v2340
      %v2347 = vmul.f32 %v405, %v2341
      %v2348 = vmul.f32 %v405, %v2342
      %v2349 = vmul.f32 %v410, %v2340
      %v2350 = vmul.f32 %v410, %v2341
      %v2351 = vmul.f32 %v410, %v2342
      %v2352 = vmul.f32 %v415, %v2340
      %v2353 = vmul.f32 %v415, %v2341
      %v2354 = vmul.f32 %v415, %v2342
      %v2355 = vmul.f32 %v420, %v2340
      %v2356 = vmul.f32 %v420, %v2341
      %v2357 = vmul.f32 %v420, %v2342
      %v2358 = vmul.f32 %v425, %v2340
      %v2359 = vmul.f32 %v425, %v2341
      %v2360 = vmul.f32 %v425, %v2342
      %v2361 = vmul.f32 %v430, %v2340
      %v2362 = vmul.f32 %v430, %v2341
      %v2363 = vmul.f32 %v430, %v2342
      %v2364 = vmul.f32 %v435, %v2340
      %v2365 = vmul.f32 %v435, %v2341
      %v2366 = vmul.f32 %v435, %v2342
      %v2367 = vmul.f32 %v470, %v2340
      %v2368 = vmul.f32 %v470, %v2341
      %v2369 = vmul.f32 %v470, %v2342
      %v2370 = vmul.f32 %v474, %v2340
      %v2371 = vmul.f32 %v474, %v2341
      %v2372 = vmul.f32 %v474, %v2342
      %v2373 = vmul.f32 %v478, %v2340
      %v2374 = vmul.f32 %v478, %v2341
      %v2375 = vmul.f32 %v478, %v2342
      %v2376 = vmul.f32 %v482, %v2340
      %v2377 = vmul.f32 %v482, %v2341
      %v2378 = vmul.f32 %v482, %v2342
      %v2379 = vmul.f32 %v486, %v2340
      %v2380 = vmul.f32 %v486, %v2341
      %v2381 = vmul.f32 %v486, %v2342
      %v2382 = vmul.f32 %v490, %v2340
      %v2383 = vmul.f32 %v490, %v2341
      %v2384 = vmul.f32 %v490, %v2342
      %v2385 = vmul.f32 %v494, %v2340
      %v2386 = vmul.f32 %v494, %v2341
      %v2387 = vmul.f32 %v494, %v2342
      %v2388 = vmul.f32 %v498, %v2340
      %v2389 = vmul.f32 %v498, %v2341
      %v2390 = vmul.f32 %v498, %v2342
      %2415 = vrot.lane.b32.xlu0 %v2367, 127
      %v2416 = vpop.permute.xlu0 %2415
      %2417 = vrot.lane.b32.xlu0 %v2368, 127
      %v2418 = vpop.permute.xlu0 %2417
      %2419 = vrot.lane.b32.xlu0 %v2369, 127
      %v2420 = vpop.permute.xlu0 %2419
      %2421 = vrot.lane.b32.xlu0 %v2370, 127
      %v2422 = vpop.permute.xlu0 %2421
      %2423 = vrot.lane.b32.xlu0 %v2371, 127
      %v2424 = vpop.permute.xlu0 %2423
      %2425 = vrot.lane.b32.xlu0 %v2372, 127
      %v2426 = vpop.permute.xlu0 %2425
      %2427 = vrot.lane.b32.xlu0 %v2373, 127
      %v2428 = vpop.permute.xlu0 %2427
      %2429 = vrot.lane.b32.xlu0 %v2374, 127
      %v2430 = vpop.permute.xlu0 %2429
      %2431 = vrot.lane.b32.xlu0 %v2375, 127
      %v2432 = vpop.permute.xlu0 %2431
      %2433 = vrot.lane.b32.xlu0 %v2376, 127
      %v2434 = vpop.permute.xlu0 %2433
      %2435 = vrot.lane.b32.xlu0 %v2377, 127
      %v2436 = vpop.permute.xlu0 %2435
      %2437 = vrot.lane.b32.xlu0 %v2378, 127
      %v2438 = vpop.permute.xlu0 %2437
      %2439 = vrot.lane.b32.xlu0 %v2379, 127
      %v2440 = vpop.permute.xlu0 %2439
      %2441 = vrot.lane.b32.xlu0 %v2380, 127
      %v2442 = vpop.permute.xlu0 %2441
      %2443 = vrot.lane.b32.xlu0 %v2381, 127
      %v2444 = vpop.permute.xlu0 %2443
      %2445 = vrot.lane.b32.xlu0 %v2382, 127
      %v2446 = vpop.permute.xlu0 %2445
      %2447 = vrot.lane.b32.xlu0 %v2383, 127
      %v2448 = vpop.permute.xlu0 %2447
      %2449 = vrot.lane.b32.xlu0 %v2384, 127
      %v2450 = vpop.permute.xlu0 %2449
      %2451 = vrot.lane.b32.xlu0 %v2385, 127
      %v2452 = vpop.permute.xlu0 %2451
      %2453 = vrot.lane.b32.xlu0 %v2386, 127
      %v2454 = vpop.permute.xlu0 %2453
      %2455 = vrot.lane.b32.xlu0 %v2387, 127
      %v2456 = vpop.permute.xlu0 %2455
      %2457 = vrot.lane.b32.xlu0 %v2388, 127
      %v2458 = vpop.permute.xlu0 %2457
      %2459 = vrot.lane.b32.xlu0 %v2389, 127
      %v2460 = vpop.permute.xlu0 %2459
      %2461 = vrot.lane.b32.xlu0 %v2390, 127
      %v2462 = vpop.permute.xlu0 %2461
      %v2463 = vsel %vm596, %v2416, %v2418
      %v2464 = vsel %vm596, %v2418, %v2420
      %v2465 = vsel %vm596, %v2422, %v2424
      %v2466 = vsel %vm596, %v2424, %v2426
      %v2467 = vsel %vm596, %v2428, %v2430
      %v2468 = vsel %vm596, %v2430, %v2432
      %v2469 = vsel %vm596, %v2434, %v2436
      %v2470 = vsel %vm596, %v2436, %v2438
      %v2471 = vsel %vm596, %v2440, %v2442
      %v2472 = vsel %vm596, %v2442, %v2444
      %v2473 = vsel %vm596, %v2446, %v2448
      %v2474 = vsel %vm596, %v2448, %v2450
      %v2475 = vsel %vm596, %v2452, %v2454
      %v2476 = vsel %vm596, %v2454, %v2456
      %v2477 = vsel %vm596, %v2458, %v2460
      %v2478 = vsel %vm596, %v2460, %v2462
      %v2503 = vadd.f32 %v2343, %v2463
      %v2504 = vadd.f32 %v2344, %v2464
      %v2505 = vadd.f32 %v2345, %v2420
      %v2506 = vadd.f32 %v2346, %v2465
      %v2507 = vadd.f32 %v2347, %v2466
      %v2508 = vadd.f32 %v2348, %v2426
      %v2509 = vadd.f32 %v2349, %v2467
      %v2510 = vadd.f32 %v2350, %v2468
      %v2511 = vadd.f32 %v2351, %v2432
      %v2512 = vadd.f32 %v2352, %v2469
      %v2513 = vadd.f32 %v2353, %v2470
      %v2514 = vadd.f32 %v2354, %v2438
      %v2515 = vadd.f32 %v2355, %v2471
      %v2516 = vadd.f32 %v2356, %v2472
      %v2517 = vadd.f32 %v2357, %v2444
      %v2518 = vadd.f32 %v2358, %v2473
      %v2519 = vadd.f32 %v2359, %v2474
      %v2520 = vadd.f32 %v2360, %v2450
      %v2521 = vadd.f32 %v2361, %v2475
      %v2522 = vadd.f32 %v2362, %v2476
      %v2523 = vadd.f32 %v2363, %v2456
      %v2524 = vadd.f32 %v2364, %v2477
      %v2525 = vadd.f32 %v2365, %v2478
      %v2526 = vadd.f32 %v2366, %v2462
      %v2527 = vmul.f32 %v663, %v2340
      %v2528 = vmul.f32 %v663, %v2341
      %v2529 = vmul.f32 %v663, %v2342
      %v2530 = vmul.f32 %v667, %v2340
      %v2531 = vmul.f32 %v667, %v2341
      %v2532 = vmul.f32 %v667, %v2342
      %v2533 = vmul.f32 %v671, %v2340
      %v2534 = vmul.f32 %v671, %v2341
      %v2535 = vmul.f32 %v671, %v2342
      %v2536 = vmul.f32 %v675, %v2340
      %v2537 = vmul.f32 %v675, %v2341
      %v2538 = vmul.f32 %v675, %v2342
      %v2539 = vmul.f32 %v679, %v2340
      %v2540 = vmul.f32 %v679, %v2341
      %v2541 = vmul.f32 %v679, %v2342
      %v2542 = vmul.f32 %v683, %v2340
      %v2543 = vmul.f32 %v683, %v2341
      %v2544 = vmul.f32 %v683, %v2342
      %v2545 = vmul.f32 %v687, %v2340
      %v2546 = vmul.f32 %v687, %v2341
      %v2547 = vmul.f32 %v687, %v2342
      %v2548 = vmul.f32 %v691, %v2340
      %v2549 = vmul.f32 %v691, %v2341
      %v2550 = vmul.f32 %v691, %v2342
      %2575 = vrot.lane.b32.xlu0 %v2527, 126
      %v2576 = vpop.permute.xlu0 %2575
      %2577 = vrot.lane.b32.xlu0 %v2528, 126
      %v2578 = vpop.permute.xlu0 %2577
      %2579 = vrot.lane.b32.xlu0 %v2529, 126
      %v2580 = vpop.permute.xlu0 %2579
      %2581 = vrot.lane.b32.xlu0 %v2530, 126
      %v2582 = vpop.permute.xlu0 %2581
      %2583 = vrot.lane.b32.xlu0 %v2531, 126
      %v2584 = vpop.permute.xlu0 %2583
      %2585 = vrot.lane.b32.xlu0 %v2532, 126
      %v2586 = vpop.permute.xlu0 %2585
      %2587 = vrot.lane.b32.xlu0 %v2533, 126
      %v2588 = vpop.permute.xlu0 %2587
      %2589 = vrot.lane.b32.xlu0 %v2534, 126
      %v2590 = vpop.permute.xlu0 %2589
      %2591 = vrot.lane.b32.xlu0 %v2535, 126
      %v2592 = vpop.permute.xlu0 %2591
      %2593 = vrot.lane.b32.xlu0 %v2536, 126
      %v2594 = vpop.permute.xlu0 %2593
      %2595 = vrot.lane.b32.xlu0 %v2537, 126
      %v2596 = vpop.permute.xlu0 %2595
      %2597 = vrot.lane.b32.xlu0 %v2538, 126
      %v2598 = vpop.permute.xlu0 %2597
      %2599 = vrot.lane.b32.xlu0 %v2539, 126
      %v2600 = vpop.permute.xlu0 %2599
      %2601 = vrot.lane.b32.xlu0 %v2540, 126
      %v2602 = vpop.permute.xlu0 %2601
      %2603 = vrot.lane.b32.xlu0 %v2541, 126
      %v2604 = vpop.permute.xlu0 %2603
      %2605 = vrot.lane.b32.xlu0 %v2542, 126
      %v2606 = vpop.permute.xlu0 %2605
      %2607 = vrot.lane.b32.xlu0 %v2543, 126
      %v2608 = vpop.permute.xlu0 %2607
      %2609 = vrot.lane.b32.xlu0 %v2544, 126
      %v2610 = vpop.permute.xlu0 %2609
      %2611 = vrot.lane.b32.xlu0 %v2545, 126
      %v2612 = vpop.permute.xlu0 %2611
      %2613 = vrot.lane.b32.xlu0 %v2546, 126
      %v2614 = vpop.permute.xlu0 %2613
      %2615 = vrot.lane.b32.xlu0 %v2547, 126
      %v2616 = vpop.permute.xlu0 %2615
      %2617 = vrot.lane.b32.xlu0 %v2548, 126
      %v2618 = vpop.permute.xlu0 %2617
      %2619 = vrot.lane.b32.xlu0 %v2549, 126
      %v2620 = vpop.permute.xlu0 %2619
      %2621 = vrot.lane.b32.xlu0 %v2550, 126
      %v2622 = vpop.permute.xlu0 %2621
      %v2623 = vsel %vm789, %v2576, %v2578
      %v2624 = vsel %vm789, %v2578, %v2580
      %v2625 = vsel %vm789, %v2582, %v2584
      %v2626 = vsel %vm789, %v2584, %v2586
      %v2627 = vsel %vm789, %v2588, %v2590
      %v2628 = vsel %vm789, %v2590, %v2592
      %v2629 = vsel %vm789, %v2594, %v2596
      %v2630 = vsel %vm789, %v2596, %v2598
      %v2631 = vsel %vm789, %v2600, %v2602
      %v2632 = vsel %vm789, %v2602, %v2604
      %v2633 = vsel %vm789, %v2606, %v2608
      %v2634 = vsel %vm789, %v2608, %v2610
      %v2635 = vsel %vm789, %v2612, %v2614
      %v2636 = vsel %vm789, %v2614, %v2616
      %v2637 = vsel %vm789, %v2618, %v2620
      %v2638 = vsel %vm789, %v2620, %v2622
      %v2663 = vadd.f32 %v2503, %v2623
      %v2664 = vadd.f32 %v2504, %v2624
      %v2665 = vadd.f32 %v2505, %v2580
      %v2666 = vadd.f32 %v2506, %v2625
      %v2667 = vadd.f32 %v2507, %v2626
      %v2668 = vadd.f32 %v2508, %v2586
      %v2669 = vadd.f32 %v2509, %v2627
      %v2670 = vadd.f32 %v2510, %v2628
      %v2671 = vadd.f32 %v2511, %v2592
      %v2672 = vadd.f32 %v2512, %v2629
      %v2673 = vadd.f32 %v2513, %v2630
      %v2674 = vadd.f32 %v2514, %v2598
      %v2675 = vadd.f32 %v2515, %v2631
      %v2676 = vadd.f32 %v2516, %v2632
      %v2677 = vadd.f32 %v2517, %v2604
      %v2678 = vadd.f32 %v2518, %v2633
      %v2679 = vadd.f32 %v2519, %v2634
      %v2680 = vadd.f32 %v2520, %v2610
      %v2681 = vadd.f32 %v2521, %v2635
      %v2682 = vadd.f32 %v2522, %v2636
      %v2683 = vadd.f32 %v2523, %v2616
      %v2684 = vadd.f32 %v2524, %v2637
      %v2685 = vadd.f32 %v2525, %v2638
      %v2686 = vadd.f32 %v2526, %v2622
      %v2687 = vmul.f32 %v856, %v2340
      %v2688 = vmul.f32 %v856, %v2341
      %v2689 = vmul.f32 %v856, %v2342
      %v2690 = vmul.f32 %v860, %v2340
      %v2691 = vmul.f32 %v860, %v2341
      %v2692 = vmul.f32 %v860, %v2342
      %v2693 = vmul.f32 %v864, %v2340
      %v2694 = vmul.f32 %v864, %v2341
      %v2695 = vmul.f32 %v864, %v2342
      %v2696 = vmul.f32 %v868, %v2340
      %v2697 = vmul.f32 %v868, %v2341
      %v2698 = vmul.f32 %v868, %v2342
      %v2699 = vmul.f32 %v872, %v2340
      %v2700 = vmul.f32 %v872, %v2341
      %v2701 = vmul.f32 %v872, %v2342
      %v2702 = vmul.f32 %v876, %v2340
      %v2703 = vmul.f32 %v876, %v2341
      %v2704 = vmul.f32 %v876, %v2342
      %v2705 = vmul.f32 %v880, %v2340
      %v2706 = vmul.f32 %v880, %v2341
      %v2707 = vmul.f32 %v880, %v2342
      %v2708 = vmul.f32 %v884, %v2340
      %v2709 = vmul.f32 %v884, %v2341
      %v2710 = vmul.f32 %v884, %v2342
      %2735 = vrot.lane.b32.xlu0 %v2687, 110
      %v2736 = vpop.permute.xlu0 %2735
      %2737 = vrot.lane.b32.xlu0 %v2688, 110
      %v2738 = vpop.permute.xlu0 %2737
      %2739 = vrot.lane.b32.xlu0 %v2689, 110
      %v2740 = vpop.permute.xlu0 %2739
      %2741 = vrot.lane.b32.xlu0 %v2690, 110
      %v2742 = vpop.permute.xlu0 %2741
      %2743 = vrot.lane.b32.xlu0 %v2691, 110
      %v2744 = vpop.permute.xlu0 %2743
      %2745 = vrot.lane.b32.xlu0 %v2692, 110
      %v2746 = vpop.permute.xlu0 %2745
      %2747 = vrot.lane.b32.xlu0 %v2693, 110
      %v2748 = vpop.permute.xlu0 %2747
      %2749 = vrot.lane.b32.xlu0 %v2694, 110
      %v2750 = vpop.permute.xlu0 %2749
      %2751 = vrot.lane.b32.xlu0 %v2695, 110
      %v2752 = vpop.permute.xlu0 %2751
      %2753 = vrot.lane.b32.xlu0 %v2696, 110
      %v2754 = vpop.permute.xlu0 %2753
      %2755 = vrot.lane.b32.xlu0 %v2697, 110
      %v2756 = vpop.permute.xlu0 %2755
      %2757 = vrot.lane.b32.xlu0 %v2698, 110
      %v2758 = vpop.permute.xlu0 %2757
      %2759 = vrot.lane.b32.xlu0 %v2699, 110
      %v2760 = vpop.permute.xlu0 %2759
      %2761 = vrot.lane.b32.xlu0 %v2700, 110
      %v2762 = vpop.permute.xlu0 %2761
      %2763 = vrot.lane.b32.xlu0 %v2701, 110
      %v2764 = vpop.permute.xlu0 %2763
      %2765 = vrot.lane.b32.xlu0 %v2702, 110
      %v2766 = vpop.permute.xlu0 %2765
      %2767 = vrot.lane.b32.xlu0 %v2703, 110
      %v2768 = vpop.permute.xlu0 %2767
      %2769 = vrot.lane.b32.xlu0 %v2704, 110
      %v2770 = vpop.permute.xlu0 %2769
      %2771 = vrot.lane.b32.xlu0 %v2705, 110
      %v2772 = vpop.permute.xlu0 %2771
      %2773 = vrot.lane.b32.xlu0 %v2706, 110
      %v2774 = vpop.permute.xlu0 %2773
      %2775 = vrot.lane.b32.xlu0 %v2707, 110
      %v2776 = vpop.permute.xlu0 %2775
      %2777 = vrot.lane.b32.xlu0 %v2708, 110
      %v2778 = vpop.permute.xlu0 %2777
      %2779 = vrot.lane.b32.xlu0 %v2709, 110
      %v2780 = vpop.permute.xlu0 %2779
      %2781 = vrot.lane.b32.xlu0 %v2710, 110
      %v2782 = vpop.permute.xlu0 %2781
      %v2783 = vsel %vm982, %v2736, %v2738
      %v2784 = vsel %vm982, %v2738, %v2740
      %v2785 = vsel %vm982, %v2742, %v2744
      %v2786 = vsel %vm982, %v2744, %v2746
      %v2787 = vsel %vm982, %v2748, %v2750
      %v2788 = vsel %vm982, %v2750, %v2752
      %v2789 = vsel %vm982, %v2754, %v2756
      %v2790 = vsel %vm982, %v2756, %v2758
      %v2791 = vsel %vm982, %v2760, %v2762
      %v2792 = vsel %vm982, %v2762, %v2764
      %v2793 = vsel %vm982, %v2766, %v2768
      %v2794 = vsel %vm982, %v2768, %v2770
      %v2795 = vsel %vm982, %v2772, %v2774
      %v2796 = vsel %vm982, %v2774, %v2776
      %v2797 = vsel %vm982, %v2778, %v2780
      %v2798 = vsel %vm982, %v2780, %v2782
      %v2823 = vadd.f32 %v2663, %v2783
      %v2824 = vadd.f32 %v2664, %v2784
      %v2825 = vadd.f32 %v2665, %v2740
      %v2826 = vadd.f32 %v2666, %v2785
      %v2827 = vadd.f32 %v2667, %v2786
      %v2828 = vadd.f32 %v2668, %v2746
      %v2829 = vadd.f32 %v2669, %v2787
      %v2830 = vadd.f32 %v2670, %v2788
      %v2831 = vadd.f32 %v2671, %v2752
      %v2832 = vadd.f32 %v2672, %v2789
      %v2833 = vadd.f32 %v2673, %v2790
      %v2834 = vadd.f32 %v2674, %v2758
      %v2835 = vadd.f32 %v2675, %v2791
      %v2836 = vadd.f32 %v2676, %v2792
      %v2837 = vadd.f32 %v2677, %v2764
      %v2838 = vadd.f32 %v2678, %v2793
      %v2839 = vadd.f32 %v2679, %v2794
      %v2840 = vadd.f32 %v2680, %v2770
      %v2841 = vadd.f32 %v2681, %v2795
      %v2842 = vadd.f32 %v2682, %v2796
      %v2843 = vadd.f32 %v2683, %v2776
      %v2844 = vadd.f32 %v2684, %v2797
      %v2845 = vadd.f32 %v2685, %v2798
      %v2846 = vadd.f32 %v2686, %v2782
      %v2847 = vmul.f32 %v1049, %v2340
      %v2848 = vmul.f32 %v1049, %v2341
      %v2849 = vmul.f32 %v1049, %v2342
      %v2850 = vmul.f32 %v1053, %v2340
      %v2851 = vmul.f32 %v1053, %v2341
      %v2852 = vmul.f32 %v1053, %v2342
      %v2853 = vmul.f32 %v1057, %v2340
      %v2854 = vmul.f32 %v1057, %v2341
      %v2855 = vmul.f32 %v1057, %v2342
      %v2856 = vmul.f32 %v1061, %v2340
      %v2857 = vmul.f32 %v1061, %v2341
      %v2858 = vmul.f32 %v1061, %v2342
      %v2859 = vmul.f32 %v1065, %v2340
      %v2860 = vmul.f32 %v1065, %v2341
      %v2861 = vmul.f32 %v1065, %v2342
      %v2862 = vmul.f32 %v1069, %v2340
      %v2863 = vmul.f32 %v1069, %v2341
      %v2864 = vmul.f32 %v1069, %v2342
      %v2865 = vmul.f32 %v1073, %v2340
      %v2866 = vmul.f32 %v1073, %v2341
      %v2867 = vmul.f32 %v1073, %v2342
      %v2868 = vmul.f32 %v1077, %v2340
      %v2869 = vmul.f32 %v1077, %v2341
      %v2870 = vmul.f32 %v1077, %v2342
      %2895 = vrot.lane.b32.xlu0 %v2847, 109
      %v2896 = vpop.permute.xlu0 %2895
      %2897 = vrot.lane.b32.xlu0 %v2848, 109
      %v2898 = vpop.permute.xlu0 %2897
      %2899 = vrot.lane.b32.xlu0 %v2849, 109
      %v2900 = vpop.permute.xlu0 %2899
      %2901 = vrot.lane.b32.xlu0 %v2850, 109
      %v2902 = vpop.permute.xlu0 %2901
      %2903 = vrot.lane.b32.xlu0 %v2851, 109
      %v2904 = vpop.permute.xlu0 %2903
      %2905 = vrot.lane.b32.xlu0 %v2852, 109
      %v2906 = vpop.permute.xlu0 %2905
      %2907 = vrot.lane.b32.xlu0 %v2853, 109
      %v2908 = vpop.permute.xlu0 %2907
      %2909 = vrot.lane.b32.xlu0 %v2854, 109
      %v2910 = vpop.permute.xlu0 %2909
      %2911 = vrot.lane.b32.xlu0 %v2855, 109
      %v2912 = vpop.permute.xlu0 %2911
      %2913 = vrot.lane.b32.xlu0 %v2856, 109
      %v2914 = vpop.permute.xlu0 %2913
      %2915 = vrot.lane.b32.xlu0 %v2857, 109
      %v2916 = vpop.permute.xlu0 %2915
      %2917 = vrot.lane.b32.xlu0 %v2858, 109
      %v2918 = vpop.permute.xlu0 %2917
      %2919 = vrot.lane.b32.xlu0 %v2859, 109
      %v2920 = vpop.permute.xlu0 %2919
      %2921 = vrot.lane.b32.xlu0 %v2860, 109
      %v2922 = vpop.permute.xlu0 %2921
      %2923 = vrot.lane.b32.xlu0 %v2861, 109
      %v2924 = vpop.permute.xlu0 %2923
      %2925 = vrot.lane.b32.xlu0 %v2862, 109
      %v2926 = vpop.permute.xlu0 %2925
      %2927 = vrot.lane.b32.xlu0 %v2863, 109
      %v2928 = vpop.permute.xlu0 %2927
      %2929 = vrot.lane.b32.xlu0 %v2864, 109
      %v2930 = vpop.permute.xlu0 %2929
      %2931 = vrot.lane.b32.xlu0 %v2865, 109
      %v2932 = vpop.permute.xlu0 %2931
      %2933 = vrot.lane.b32.xlu0 %v2866, 109
      %v2934 = vpop.permute.xlu0 %2933
      %2935 = vrot.lane.b32.xlu0 %v2867, 109
      %v2936 = vpop.permute.xlu0 %2935
      %2937 = vrot.lane.b32.xlu0 %v2868, 109
      %v2938 = vpop.permute.xlu0 %2937
      %2939 = vrot.lane.b32.xlu0 %v2869, 109
      %v2940 = vpop.permute.xlu0 %2939
      %2941 = vrot.lane.b32.xlu0 %v2870, 109
      %v2942 = vpop.permute.xlu0 %2941
      %v2943 = vsel %vm1175, %v2896, %v2898
      %v2944 = vsel %vm1175, %v2898, %v2900
      %v2945 = vsel %vm1175, %v2902, %v2904
      %v2946 = vsel %vm1175, %v2904, %v2906
      %v2947 = vsel %vm1175, %v2908, %v2910
      %v2948 = vsel %vm1175, %v2910, %v2912
      %v2949 = vsel %vm1175, %v2914, %v2916
      %v2950 = vsel %vm1175, %v2916, %v2918
      %v2951 = vsel %vm1175, %v2920, %v2922
      %v2952 = vsel %vm1175, %v2922, %v2924
      %v2953 = vsel %vm1175, %v2926, %v2928
      %v2954 = vsel %vm1175, %v2928, %v2930
      %v2955 = vsel %vm1175, %v2932, %v2934
      %v2956 = vsel %vm1175, %v2934, %v2936
      %v2957 = vsel %vm1175, %v2938, %v2940
      %v2958 = vsel %vm1175, %v2940, %v2942
      %v2983 = vadd.f32 %v2823, %v2943
      %v2984 = vadd.f32 %v2824, %v2944
      %v2985 = vadd.f32 %v2825, %v2900
      %v2986 = vadd.f32 %v2826, %v2945
      %v2987 = vadd.f32 %v2827, %v2946
      %v2988 = vadd.f32 %v2828, %v2906
      %v2989 = vadd.f32 %v2829, %v2947
      %v2990 = vadd.f32 %v2830, %v2948
      %v2991 = vadd.f32 %v2831, %v2912
      %v2992 = vadd.f32 %v2832, %v2949
      %v2993 = vadd.f32 %v2833, %v2950
      %v2994 = vadd.f32 %v2834, %v2918
      %v2995 = vadd.f32 %v2835, %v2951
      %v2996 = vadd.f32 %v2836, %v2952
      %v2997 = vadd.f32 %v2837, %v2924
      %v2998 = vadd.f32 %v2838, %v2953
      %v2999 = vadd.f32 %v2839, %v2954
      %v3000 = vadd.f32 %v2840, %v2930
      %v3001 = vadd.f32 %v2841, %v2955
      %v3002 = vadd.f32 %v2842, %v2956
      %v3003 = vadd.f32 %v2843, %v2936
      %v3004 = vadd.f32 %v2844, %v2957
      %v3005 = vadd.f32 %v2845, %v2958
      %v3006 = vadd.f32 %v2846, %v2942
      %v3007 = vmul.f32 %v1242, %v2340
      %v3008 = vmul.f32 %v1242, %v2341
      %v3009 = vmul.f32 %v1242, %v2342
      %v3010 = vmul.f32 %v1246, %v2340
      %v3011 = vmul.f32 %v1246, %v2341
      %v3012 = vmul.f32 %v1246, %v2342
      %v3013 = vmul.f32 %v1250, %v2340
      %v3014 = vmul.f32 %v1250, %v2341
      %v3015 = vmul.f32 %v1250, %v2342
      %v3016 = vmul.f32 %v1254, %v2340
      %v3017 = vmul.f32 %v1254, %v2341
      %v3018 = vmul.f32 %v1254, %v2342
      %v3019 = vmul.f32 %v1258, %v2340
      %v3020 = vmul.f32 %v1258, %v2341
      %v3021 = vmul.f32 %v1258, %v2342
      %v3022 = vmul.f32 %v1262, %v2340
      %v3023 = vmul.f32 %v1262, %v2341
      %v3024 = vmul.f32 %v1262, %v2342
      %v3025 = vmul.f32 %v1266, %v2340
      %v3026 = vmul.f32 %v1266, %v2341
      %v3027 = vmul.f32 %v1266, %v2342
      %v3028 = vmul.f32 %v1270, %v2340
      %v3029 = vmul.f32 %v1270, %v2341
      %v3030 = vmul.f32 %v1270, %v2342
      %3055 = vrot.lane.b32.xlu0 %v3007, 108
      %v3056 = vpop.permute.xlu0 %3055
      %3057 = vrot.lane.b32.xlu0 %v3008, 108
      %v3058 = vpop.permute.xlu0 %3057
      %3059 = vrot.lane.b32.xlu0 %v3009, 108
      %v3060 = vpop.permute.xlu0 %3059
      %3061 = vrot.lane.b32.xlu0 %v3010, 108
      %v3062 = vpop.permute.xlu0 %3061
      %3063 = vrot.lane.b32.xlu0 %v3011, 108
      %v3064 = vpop.permute.xlu0 %3063
      %3065 = vrot.lane.b32.xlu0 %v3012, 108
      %v3066 = vpop.permute.xlu0 %3065
      %3067 = vrot.lane.b32.xlu0 %v3013, 108
      %v3068 = vpop.permute.xlu0 %3067
      %3069 = vrot.lane.b32.xlu0 %v3014, 108
      %v3070 = vpop.permute.xlu0 %3069
      %3071 = vrot.lane.b32.xlu0 %v3015, 108
      %v3072 = vpop.permute.xlu0 %3071
      %3073 = vrot.lane.b32.xlu0 %v3016, 108
      %v3074 = vpop.permute.xlu0 %3073
      %3075 = vrot.lane.b32.xlu0 %v3017, 108
      %v3076 = vpop.permute.xlu0 %3075
      %3077 = vrot.lane.b32.xlu0 %v3018, 108
      %v3078 = vpop.permute.xlu0 %3077
      %3079 = vrot.lane.b32.xlu0 %v3019, 108
      %v3080 = vpop.permute.xlu0 %3079
      %3081 = vrot.lane.b32.xlu0 %v3020, 108
      %v3082 = vpop.permute.xlu0 %3081
      %3083 = vrot.lane.b32.xlu0 %v3021, 108
      %v3084 = vpop.permute.xlu0 %3083
      %3085 = vrot.lane.b32.xlu0 %v3022, 108
      %v3086 = vpop.permute.xlu0 %3085
      %3087 = vrot.lane.b32.xlu0 %v3023, 108
      %v3088 = vpop.permute.xlu0 %3087
      %3089 = vrot.lane.b32.xlu0 %v3024, 108
      %v3090 = vpop.permute.xlu0 %3089
      %3091 = vrot.lane.b32.xlu0 %v3025, 108
      %v3092 = vpop.permute.xlu0 %3091
      %3093 = vrot.lane.b32.xlu0 %v3026, 108
      %v3094 = vpop.permute.xlu0 %3093
      %3095 = vrot.lane.b32.xlu0 %v3027, 108
      %v3096 = vpop.permute.xlu0 %3095
      %3097 = vrot.lane.b32.xlu0 %v3028, 108
      %v3098 = vpop.permute.xlu0 %3097
      %3099 = vrot.lane.b32.xlu0 %v3029, 108
      %v3100 = vpop.permute.xlu0 %3099
      %3101 = vrot.lane.b32.xlu0 %v3030, 108
      %v3102 = vpop.permute.xlu0 %3101
      %v3103 = vsel %vm1368, %v3056, %v3058
      %v3104 = vsel %vm1368, %v3058, %v3060
      %v3105 = vsel %vm1368, %v3062, %v3064
      %v3106 = vsel %vm1368, %v3064, %v3066
      %v3107 = vsel %vm1368, %v3068, %v3070
      %v3108 = vsel %vm1368, %v3070, %v3072
      %v3109 = vsel %vm1368, %v3074, %v3076
      %v3110 = vsel %vm1368, %v3076, %v3078
      %v3111 = vsel %vm1368, %v3080, %v3082
      %v3112 = vsel %vm1368, %v3082, %v3084
      %v3113 = vsel %vm1368, %v3086, %v3088
      %v3114 = vsel %vm1368, %v3088, %v3090
      %v3115 = vsel %vm1368, %v3092, %v3094
      %v3116 = vsel %vm1368, %v3094, %v3096
      %v3117 = vsel %vm1368, %v3098, %v3100
      %v3118 = vsel %vm1368, %v3100, %v3102
      %v3143 = vadd.f32 %v2983, %v3103
      %v3144 = vadd.f32 %v2984, %v3104
      %v3145 = vadd.f32 %v2985, %v3060
      %v3146 = vadd.f32 %v2986, %v3105
      %v3147 = vadd.f32 %v2987, %v3106
      %v3148 = vadd.f32 %v2988, %v3066
      %v3149 = vadd.f32 %v2989, %v3107
      %v3150 = vadd.f32 %v2990, %v3108
      %v3151 = vadd.f32 %v2991, %v3072
      %v3152 = vadd.f32 %v2992, %v3109
      %v3153 = vadd.f32 %v2993, %v3110
      %v3154 = vadd.f32 %v2994, %v3078
      %v3155 = vadd.f32 %v2995, %v3111
      %v3156 = vadd.f32 %v2996, %v3112
      %v3157 = vadd.f32 %v2997, %v3084
      %v3158 = vadd.f32 %v2998, %v3113
      %v3159 = vadd.f32 %v2999, %v3114
      %v3160 = vadd.f32 %v3000, %v3090
      %v3161 = vadd.f32 %v3001, %v3115
      %v3162 = vadd.f32 %v3002, %v3116
      %v3163 = vadd.f32 %v3003, %v3096
      %v3164 = vadd.f32 %v3004, %v3117
      %v3165 = vadd.f32 %v3005, %v3118
      %v3166 = vadd.f32 %v3006, %v3102
      %v3167 = vmul.f32 %v1435, %v2340
      %v3168 = vmul.f32 %v1435, %v2341
      %v3169 = vmul.f32 %v1435, %v2342
      %v3170 = vmul.f32 %v1439, %v2340
      %v3171 = vmul.f32 %v1439, %v2341
      %v3172 = vmul.f32 %v1439, %v2342
      %v3173 = vmul.f32 %v1443, %v2340
      %v3174 = vmul.f32 %v1443, %v2341
      %v3175 = vmul.f32 %v1443, %v2342
      %v3176 = vmul.f32 %v1447, %v2340
      %v3177 = vmul.f32 %v1447, %v2341
      %v3178 = vmul.f32 %v1447, %v2342
      %v3179 = vmul.f32 %v1451, %v2340
      %v3180 = vmul.f32 %v1451, %v2341
      %v3181 = vmul.f32 %v1451, %v2342
      %v3182 = vmul.f32 %v1455, %v2340
      %v3183 = vmul.f32 %v1455, %v2341
      %v3184 = vmul.f32 %v1455, %v2342
      %v3185 = vmul.f32 %v1459, %v2340
      %v3186 = vmul.f32 %v1459, %v2341
      %v3187 = vmul.f32 %v1459, %v2342
      %v3188 = vmul.f32 %v1463, %v2340
      %v3189 = vmul.f32 %v1463, %v2341
      %v3190 = vmul.f32 %v1463, %v2342
      %3215 = vrot.lane.b32.xlu0 %v3167, 92
      %v3216 = vpop.permute.xlu0 %3215
      %3217 = vrot.lane.b32.xlu0 %v3168, 92
      %v3218 = vpop.permute.xlu0 %3217
      %3219 = vrot.lane.b32.xlu0 %v3169, 92
      %v3220 = vpop.permute.xlu0 %3219
      %3221 = vrot.lane.b32.xlu0 %v3170, 92
      %v3222 = vpop.permute.xlu0 %3221
      %3223 = vrot.lane.b32.xlu0 %v3171, 92
      %v3224 = vpop.permute.xlu0 %3223
      %3225 = vrot.lane.b32.xlu0 %v3172, 92
      %v3226 = vpop.permute.xlu0 %3225
      %3227 = vrot.lane.b32.xlu0 %v3173, 92
      %v3228 = vpop.permute.xlu0 %3227
      %3229 = vrot.lane.b32.xlu0 %v3174, 92
      %v3230 = vpop.permute.xlu0 %3229
      %3231 = vrot.lane.b32.xlu0 %v3175, 92
      %v3232 = vpop.permute.xlu0 %3231
      %3233 = vrot.lane.b32.xlu0 %v3176, 92
      %v3234 = vpop.permute.xlu0 %3233
      %3235 = vrot.lane.b32.xlu0 %v3177, 92
      %v3236 = vpop.permute.xlu0 %3235
      %3237 = vrot.lane.b32.xlu0 %v3178, 92
      %v3238 = vpop.permute.xlu0 %3237
      %3239 = vrot.lane.b32.xlu0 %v3179, 92
      %v3240 = vpop.permute.xlu0 %3239
      %3241 = vrot.lane.b32.xlu0 %v3180, 92
      %v3242 = vpop.permute.xlu0 %3241
      %3243 = vrot.lane.b32.xlu0 %v3181, 92
      %v3244 = vpop.permute.xlu0 %3243
      %3245 = vrot.lane.b32.xlu0 %v3182, 92
      %v3246 = vpop.permute.xlu0 %3245
      %3247 = vrot.lane.b32.xlu0 %v3183, 92
      %v3248 = vpop.permute.xlu0 %3247
      %3249 = vrot.lane.b32.xlu0 %v3184, 92
      %v3250 = vpop.permute.xlu0 %3249
      %3251 = vrot.lane.b32.xlu0 %v3185, 92
      %v3252 = vpop.permute.xlu0 %3251
      %3253 = vrot.lane.b32.xlu0 %v3186, 92
      %v3254 = vpop.permute.xlu0 %3253
      %3255 = vrot.lane.b32.xlu0 %v3187, 92
      %v3256 = vpop.permute.xlu0 %3255
      %3257 = vrot.lane.b32.xlu0 %v3188, 92
      %v3258 = vpop.permute.xlu0 %3257
      %3259 = vrot.lane.b32.xlu0 %v3189, 92
      %v3260 = vpop.permute.xlu0 %3259
      %3261 = vrot.lane.b32.xlu0 %v3190, 92
      %v3262 = vpop.permute.xlu0 %3261
      %v3263 = vsel %vm1561, %v3216, %v3218
      %v3264 = vsel %vm1561, %v3218, %v3220
      %v3265 = vsel %vm1561, %v3222, %v3224
      %v3266 = vsel %vm1561, %v3224, %v3226
      %v3267 = vsel %vm1561, %v3228, %v3230
      %v3268 = vsel %vm1561, %v3230, %v3232
      %v3269 = vsel %vm1561, %v3234, %v3236
      %v3270 = vsel %vm1561, %v3236, %v3238
      %v3271 = vsel %vm1561, %v3240, %v3242
      %v3272 = vsel %vm1561, %v3242, %v3244
      %v3273 = vsel %vm1561, %v3246, %v3248
      %v3274 = vsel %vm1561, %v3248, %v3250
      %v3275 = vsel %vm1561, %v3252, %v3254
      %v3276 = vsel %vm1561, %v3254, %v3256
      %v3277 = vsel %vm1561, %v3258, %v3260
      %v3278 = vsel %vm1561, %v3260, %v3262
      %v3303 = vadd.f32 %v3143, %v3263
      %v3304 = vadd.f32 %v3144, %v3264
      %v3305 = vadd.f32 %v3145, %v3220
      %v3306 = vadd.f32 %v3146, %v3265
      %v3307 = vadd.f32 %v3147, %v3266
      %v3308 = vadd.f32 %v3148, %v3226
      %v3309 = vadd.f32 %v3149, %v3267
      %v3310 = vadd.f32 %v3150, %v3268
      %v3311 = vadd.f32 %v3151, %v3232
      %v3312 = vadd.f32 %v3152, %v3269
      %v3313 = vadd.f32 %v3153, %v3270
      %v3314 = vadd.f32 %v3154, %v3238
      %v3315 = vadd.f32 %v3155, %v3271
      %v3316 = vadd.f32 %v3156, %v3272
      %v3317 = vadd.f32 %v3157, %v3244
      %v3318 = vadd.f32 %v3158, %v3273
      %v3319 = vadd.f32 %v3159, %v3274
      %v3320 = vadd.f32 %v3160, %v3250
      %v3321 = vadd.f32 %v3161, %v3275
      %v3322 = vadd.f32 %v3162, %v3276
      %v3323 = vadd.f32 %v3163, %v3256
      %v3324 = vadd.f32 %v3164, %v3277
      %v3325 = vadd.f32 %v3165, %v3278
      %v3326 = vadd.f32 %v3166, %v3262
      %v3327 = vmul.f32 %v1628, %v2340
      %v3328 = vmul.f32 %v1628, %v2341
      %v3329 = vmul.f32 %v1628, %v2342
      %v3330 = vmul.f32 %v1632, %v2340
      %v3331 = vmul.f32 %v1632, %v2341
      %v3332 = vmul.f32 %v1632, %v2342
      %v3333 = vmul.f32 %v1636, %v2340
      %v3334 = vmul.f32 %v1636, %v2341
      %v3335 = vmul.f32 %v1636, %v2342
      %v3336 = vmul.f32 %v1640, %v2340
      %v3337 = vmul.f32 %v1640, %v2341
      %v3338 = vmul.f32 %v1640, %v2342
      %v3339 = vmul.f32 %v1644, %v2340
      %v3340 = vmul.f32 %v1644, %v2341
      %v3341 = vmul.f32 %v1644, %v2342
      %v3342 = vmul.f32 %v1648, %v2340
      %v3343 = vmul.f32 %v1648, %v2341
      %v3344 = vmul.f32 %v1648, %v2342
      %v3345 = vmul.f32 %v1652, %v2340
      %v3346 = vmul.f32 %v1652, %v2341
      %v3347 = vmul.f32 %v1652, %v2342
      %v3348 = vmul.f32 %v1656, %v2340
      %v3349 = vmul.f32 %v1656, %v2341
      %v3350 = vmul.f32 %v1656, %v2342
      %3375 = vrot.lane.b32.xlu0 %v3327, 91
      %v3376 = vpop.permute.xlu0 %3375
      %3377 = vrot.lane.b32.xlu0 %v3328, 91
      %v3378 = vpop.permute.xlu0 %3377
      %3379 = vrot.lane.b32.xlu0 %v3329, 91
      %v3380 = vpop.permute.xlu0 %3379
      %3381 = vrot.lane.b32.xlu0 %v3330, 91
      %v3382 = vpop.permute.xlu0 %3381
      %3383 = vrot.lane.b32.xlu0 %v3331, 91
      %v3384 = vpop.permute.xlu0 %3383
      %3385 = vrot.lane.b32.xlu0 %v3332, 91
      %v3386 = vpop.permute.xlu0 %3385
      %3387 = vrot.lane.b32.xlu0 %v3333, 91
      %v3388 = vpop.permute.xlu0 %3387
      %3389 = vrot.lane.b32.xlu0 %v3334, 91
      %v3390 = vpop.permute.xlu0 %3389
      %3391 = vrot.lane.b32.xlu0 %v3335, 91
      %v3392 = vpop.permute.xlu0 %3391
      %3393 = vrot.lane.b32.xlu0 %v3336, 91
      %v3394 = vpop.permute.xlu0 %3393
      %3395 = vrot.lane.b32.xlu0 %v3337, 91
      %v3396 = vpop.permute.xlu0 %3395
      %3397 = vrot.lane.b32.xlu0 %v3338, 91
      %v3398 = vpop.permute.xlu0 %3397
      %3399 = vrot.lane.b32.xlu0 %v3339, 91
      %v3400 = vpop.permute.xlu0 %3399
      %3401 = vrot.lane.b32.xlu0 %v3340, 91
      %v3402 = vpop.permute.xlu0 %3401
      %3403 = vrot.lane.b32.xlu0 %v3341, 91
      %v3404 = vpop.permute.xlu0 %3403
      %3405 = vrot.lane.b32.xlu0 %v3342, 91
      %v3406 = vpop.permute.xlu0 %3405
      %3407 = vrot.lane.b32.xlu0 %v3343, 91
      %v3408 = vpop.permute.xlu0 %3407
      %3409 = vrot.lane.b32.xlu0 %v3344, 91
      %v3410 = vpop.permute.xlu0 %3409
      %3411 = vrot.lane.b32.xlu0 %v3345, 91
      %v3412 = vpop.permute.xlu0 %3411
      %3413 = vrot.lane.b32.xlu0 %v3346, 91
      %v3414 = vpop.permute.xlu0 %3413
      %3415 = vrot.lane.b32.xlu0 %v3347, 91
      %v3416 = vpop.permute.xlu0 %3415
      %3417 = vrot.lane.b32.xlu0 %v3348, 91
      %v3418 = vpop.permute.xlu0 %3417
      %3419 = vrot.lane.b32.xlu0 %v3349, 91
      %v3420 = vpop.permute.xlu0 %3419
      %3421 = vrot.lane.b32.xlu0 %v3350, 91
      %v3422 = vpop.permute.xlu0 %3421
      %v3423 = vsel %vm1754, %v3376, %v3378
      %v3424 = vsel %vm1754, %v3378, %v3380
      %v3425 = vsel %vm1754, %v3382, %v3384
      %v3426 = vsel %vm1754, %v3384, %v3386
      %v3427 = vsel %vm1754, %v3388, %v3390
      %v3428 = vsel %vm1754, %v3390, %v3392
      %v3429 = vsel %vm1754, %v3394, %v3396
      %v3430 = vsel %vm1754, %v3396, %v3398
      %v3431 = vsel %vm1754, %v3400, %v3402
      %v3432 = vsel %vm1754, %v3402, %v3404
      %v3433 = vsel %vm1754, %v3406, %v3408
      %v3434 = vsel %vm1754, %v3408, %v3410
      %v3435 = vsel %vm1754, %v3412, %v3414
      %v3436 = vsel %vm1754, %v3414, %v3416
      %v3437 = vsel %vm1754, %v3418, %v3420
      %v3438 = vsel %vm1754, %v3420, %v3422
      %v3463 = vadd.f32 %v3303, %v3423
      %v3464 = vadd.f32 %v3304, %v3424
      %v3465 = vadd.f32 %v3305, %v3380
      %v3466 = vadd.f32 %v3306, %v3425
      %v3467 = vadd.f32 %v3307, %v3426
      %v3468 = vadd.f32 %v3308, %v3386
      %v3469 = vadd.f32 %v3309, %v3427
      %v3470 = vadd.f32 %v3310, %v3428
      %v3471 = vadd.f32 %v3311, %v3392
      %v3472 = vadd.f32 %v3312, %v3429
      %v3473 = vadd.f32 %v3313, %v3430
      %v3474 = vadd.f32 %v3314, %v3398
      %v3475 = vadd.f32 %v3315, %v3431
      %v3476 = vadd.f32 %v3316, %v3432
      %v3477 = vadd.f32 %v3317, %v3404
      %v3478 = vadd.f32 %v3318, %v3433
      %v3479 = vadd.f32 %v3319, %v3434
      %v3480 = vadd.f32 %v3320, %v3410
      %v3481 = vadd.f32 %v3321, %v3435
      %v3482 = vadd.f32 %v3322, %v3436
      %v3483 = vadd.f32 %v3323, %v3416
      %v3484 = vadd.f32 %v3324, %v3437
      %v3485 = vadd.f32 %v3325, %v3438
      %v3486 = vadd.f32 %v3326, %v3422
      %v3487 = vmul.f32 %v1821, %v2340
      %v3488 = vmul.f32 %v1821, %v2341
      %v3489 = vmul.f32 %v1821, %v2342
      %v3490 = vmul.f32 %v1825, %v2340
      %v3491 = vmul.f32 %v1825, %v2341
      %v3492 = vmul.f32 %v1825, %v2342
      %v3493 = vmul.f32 %v1829, %v2340
      %v3494 = vmul.f32 %v1829, %v2341
      %v3495 = vmul.f32 %v1829, %v2342
      %v3496 = vmul.f32 %v1833, %v2340
      %v3497 = vmul.f32 %v1833, %v2341
      %v3498 = vmul.f32 %v1833, %v2342
      %v3499 = vmul.f32 %v1837, %v2340
      %v3500 = vmul.f32 %v1837, %v2341
      %v3501 = vmul.f32 %v1837, %v2342
      %v3502 = vmul.f32 %v1841, %v2340
      %v3503 = vmul.f32 %v1841, %v2341
      %v3504 = vmul.f32 %v1841, %v2342
      %v3505 = vmul.f32 %v1845, %v2340
      %v3506 = vmul.f32 %v1845, %v2341
      %v3507 = vmul.f32 %v1845, %v2342
      %v3508 = vmul.f32 %v1849, %v2340
      %v3509 = vmul.f32 %v1849, %v2341
      %v3510 = vmul.f32 %v1849, %v2342
      %3535 = vrot.lane.b32.xlu0 %v3487, 90
      %v3536 = vpop.permute.xlu0 %3535
      %3537 = vrot.lane.b32.xlu0 %v3488, 90
      %v3538 = vpop.permute.xlu0 %3537
      %3539 = vrot.lane.b32.xlu0 %v3489, 90
      %v3540 = vpop.permute.xlu0 %3539
      %3541 = vrot.lane.b32.xlu0 %v3490, 90
      %v3542 = vpop.permute.xlu0 %3541
      %3543 = vrot.lane.b32.xlu0 %v3491, 90
      %v3544 = vpop.permute.xlu0 %3543
      %3545 = vrot.lane.b32.xlu0 %v3492, 90
      %v3546 = vpop.permute.xlu0 %3545
      %3547 = vrot.lane.b32.xlu0 %v3493, 90
      %v3548 = vpop.permute.xlu0 %3547
      %3549 = vrot.lane.b32.xlu0 %v3494, 90
      %v3550 = vpop.permute.xlu0 %3549
      %3551 = vrot.lane.b32.xlu0 %v3495, 90
      %v3552 = vpop.permute.xlu0 %3551
      %3553 = vrot.lane.b32.xlu0 %v3496, 90
      %v3554 = vpop.permute.xlu0 %3553
      %3555 = vrot.lane.b32.xlu0 %v3497, 90
      %v3556 = vpop.permute.xlu0 %3555
      %3557 = vrot.lane.b32.xlu0 %v3498, 90
      %v3558 = vpop.permute.xlu0 %3557
      %3559 = vrot.lane.b32.xlu0 %v3499, 90
      %v3560 = vpop.permute.xlu0 %3559
      %3561 = vrot.lane.b32.xlu0 %v3500, 90
      %v3562 = vpop.permute.xlu0 %3561
      %3563 = vrot.lane.b32.xlu0 %v3501, 90
      %v3564 = vpop.permute.xlu0 %3563
      %3565 = vrot.lane.b32.xlu0 %v3502, 90
      %v3566 = vpop.permute.xlu0 %3565
      %3567 = vrot.lane.b32.xlu0 %v3503, 90
      %v3568 = vpop.permute.xlu0 %3567
      %3569 = vrot.lane.b32.xlu0 %v3504, 90
      %v3570 = vpop.permute.xlu0 %3569
      %3571 = vrot.lane.b32.xlu0 %v3505, 90
      %v3572 = vpop.permute.xlu0 %3571
      %3573 = vrot.lane.b32.xlu0 %v3506, 90
      %v3574 = vpop.permute.xlu0 %3573
      %3575 = vrot.lane.b32.xlu0 %v3507, 90
      %v3576 = vpop.permute.xlu0 %3575
      %3577 = vrot.lane.b32.xlu0 %v3508, 90
      %v3578 = vpop.permute.xlu0 %3577
      %3579 = vrot.lane.b32.xlu0 %v3509, 90
      %v3580 = vpop.permute.xlu0 %3579
      %3581 = vrot.lane.b32.xlu0 %v3510, 90
      %v3582 = vpop.permute.xlu0 %3581
      %v3583 = vsel %vm1947, %v3536, %v3538
      %v3584 = vsel %vm1947, %v3538, %v3540
      %v3585 = vsel %vm1947, %v3542, %v3544
      %v3586 = vsel %vm1947, %v3544, %v3546
      %v3587 = vsel %vm1947, %v3548, %v3550
      %v3588 = vsel %vm1947, %v3550, %v3552
      %v3589 = vsel %vm1947, %v3554, %v3556
      %v3590 = vsel %vm1947, %v3556, %v3558
      %v3591 = vsel %vm1947, %v3560, %v3562
      %v3592 = vsel %vm1947, %v3562, %v3564
      %v3593 = vsel %vm1947, %v3566, %v3568
      %v3594 = vsel %vm1947, %v3568, %v3570
      %v3595 = vsel %vm1947, %v3572, %v3574
      %v3596 = vsel %vm1947, %v3574, %v3576
      %v3597 = vsel %vm1947, %v3578, %v3580
      %v3598 = vsel %vm1947, %v3580, %v3582
      %v3623 = vadd.f32 %v3463, %v3583
      %v3624 = vadd.f32 %v3464, %v3584
      %v3625 = vadd.f32 %v3465, %v3540
      %v3626 = vadd.f32 %v3466, %v3585
      %v3627 = vadd.f32 %v3467, %v3586
      %v3628 = vadd.f32 %v3468, %v3546
      %v3629 = vadd.f32 %v3469, %v3587
      %v3630 = vadd.f32 %v3470, %v3588
      %v3631 = vadd.f32 %v3471, %v3552
      %v3632 = vadd.f32 %v3472, %v3589
      %v3633 = vadd.f32 %v3473, %v3590
      %v3634 = vadd.f32 %v3474, %v3558
      %v3635 = vadd.f32 %v3475, %v3591
      %v3636 = vadd.f32 %v3476, %v3592
      %v3637 = vadd.f32 %v3477, %v3564
      %v3638 = vadd.f32 %v3478, %v3593
      %v3639 = vadd.f32 %v3479, %v3594
      %v3640 = vadd.f32 %v3480, %v3570
      %v3641 = vadd.f32 %v3481, %v3595
      %v3642 = vadd.f32 %v3482, %v3596
      %v3643 = vadd.f32 %v3483, %v3576
      %v3644 = vadd.f32 %v3484, %v3597
      %v3645 = vadd.f32 %v3485, %v3598
      %v3646 = vadd.f32 %v3486, %v3582
      %v3647 = vadd.f32 %v3623, %v2015
      %v3648 = vadd.f32 %v3624, %v2015
      %v3649 = vadd.f32 %v3625, %v2015
      %v3650 = vadd.f32 %v3626, %v2020
      %v3651 = vadd.f32 %v3627, %v2020
      %v3652 = vadd.f32 %v3628, %v2020
      %v3653 = vadd.f32 %v3629, %v2025
      %v3654 = vadd.f32 %v3630, %v2025
      %v3655 = vadd.f32 %v3631, %v2025
      %v3656 = vadd.f32 %v3632, %v2030
      %v3657 = vadd.f32 %v3633, %v2030
      %v3658 = vadd.f32 %v3634, %v2030
      %v3659 = vadd.f32 %v3635, %v2035
      %v3660 = vadd.f32 %v3636, %v2035
      %v3661 = vadd.f32 %v3637, %v2035
      %v3662 = vadd.f32 %v3638, %v2040
      %v3663 = vadd.f32 %v3639, %v2040
      %v3664 = vadd.f32 %v3640, %v2040
      %v3665 = vadd.f32 %v3641, %v2045
      %v3666 = vadd.f32 %v3642, %v2045
      %v3667 = vadd.f32 %v3643, %v2045
      %v3668 = vadd.f32 %v3644, %v2050
      %v3669 = vadd.f32 %v3645, %v2050
      %v3670 = vadd.f32 %v3646, %v2050
      %v3671 = vmax.f32 %v3647, 0.0
      %v3672 = vmax.f32 %v3648, 0.0
      %v3673 = vmax.f32 %v3649, 0.0
      %v3674 = vmax.f32 %v3650, 0.0
      %v3675 = vmax.f32 %v3651, 0.0
      %v3676 = vmax.f32 %v3652, 0.0
      %v3677 = vmax.f32 %v3653, 0.0
      %v3678 = vmax.f32 %v3654, 0.0
      %v3679 = vmax.f32 %v3655, 0.0
      %v3680 = vmax.f32 %v3656, 0.0
      %v3681 = vmax.f32 %v3657, 0.0
      %v3682 = vmax.f32 %v3658, 0.0
      %v3683 = vmax.f32 %v3659, 0.0
      %v3684 = vmax.f32 %v3660, 0.0
      %v3685 = vmax.f32 %v3661, 0.0
      %v3686 = vmax.f32 %v3662, 0.0
      %v3687 = vmax.f32 %v3663, 0.0
      %v3688 = vmax.f32 %v3664, 0.0
      %v3689 = vmax.f32 %v3665, 0.0
      %v3690 = vmax.f32 %v3666, 0.0
      %v3691 = vmax.f32 %v3667, 0.0
      %v3692 = vmax.f32 %v3668, 0.0
      %v3693 = vmax.f32 %v3669, 0.0
      %v3694 = vmax.f32 %v3670, 0.0
      %3695 = vmatpush.msra.mxu0 0.0
      %3696 = vmatpush.msra.mxu0 0.0
      %3697 = vmatpush.msra.mxu0 0.0
      %3698 = vmatpush.msra.mxu0 0.0
      %3699 = vmatpush.msra.mxu0 0.0
      %3700 = vmatpush.msra.mxu0 0.0
      %3701 = vmatpush.msra.mxu0 0.0
      %3702 = vmatpush.msra.mxu0 0.0
      %3703 = vmatpush.msra.mxu0 %v3692
      %3704 = vmatpush.msra.mxu0 %v3689
      %3705 = vmatpush.msra.mxu0 %v3686
      %3706 = vmatpush.msra.mxu0 %v3683
      %3707 = vmatpush.msra.mxu0 %v3680
      %3708 = vmatpush.msra.mxu0 %v3677
      %3709 = vmatpush.msra.mxu0 %v3674
      %3710 = vmatpush.msra.mxu0 %v3671
      %3711 = vmatmul.f32.gmra.mxu0 %v2102
      %v3712 = vpop.f32.mrf.mxu0
      %v3713 = vadd.f32 0.0, %v3712
      %3714 = vmatmul.f32.gmra.mxu0 %v2105
      %v3715 = vpop.f32.mrf.mxu0
      %v3716 = vadd.f32 0.0, %v3715
      %3717 = vdwg.mxu0
      %3718 = vmatpush.msra.mxu0 0.0
      %3719 = vmatpush.msra.mxu0 0.0
      %3720 = vmatpush.msra.mxu0 0.0
      %3721 = vmatpush.msra.mxu0 0.0
      %3722 = vmatpush.msra.mxu0 0.0
      %3723 = vmatpush.msra.mxu0 0.0
      %3724 = vmatpush.msra.mxu0 0.0
      %3725 = vmatpush.msra.mxu0 0.0
      %3726 = vmatpush.msra.mxu0 %v3693
      %3727 = vmatpush.msra.mxu0 %v3690
      %3728 = vmatpush.msra.mxu0 %v3687
      %3729 = vmatpush.msra.mxu0 %v3684
      %3730 = vmatpush.msra.mxu0 %v3681
      %3731 = vmatpush.msra.mxu0 %v3678
      %3732 = vmatpush.msra.mxu0 %v3675
      %3733 = vmatpush.msra.mxu0 %v3672
      %3734 = vmatmul.f32.gmra.mxu0 %v2102
      %v3735 = vpop.f32.mrf.mxu0
      %v3736 = vadd.f32 0.0, %v3735
      %3737 = vmatmul.f32.gmra.mxu0 %v2105
      %v3738 = vpop.f32.mrf.mxu0
      %v3739 = vadd.f32 0.0, %v3738
      %3740 = vdwg.mxu0
      %3741 = vmatpush.msra.mxu0 0.0
      %3742 = vmatpush.msra.mxu0 0.0
      %3743 = vmatpush.msra.mxu0 0.0
      %3744 = vmatpush.msra.mxu0 0.0
      %3745 = vmatpush.msra.mxu0 0.0
      %3746 = vmatpush.msra.mxu0 0.0
      %3747 = vmatpush.msra.mxu0 0.0
      %3748 = vmatpush.msra.mxu0 0.0
      %3749 = vmatpush.msra.mxu0 %v3694
      %3750 = vmatpush.msra.mxu0 %v3691
      %3751 = vmatpush.msra.mxu0 %v3688
      %3752 = vmatpush.msra.mxu0 %v3685
      %3753 = vmatpush.msra.mxu0 %v3682
      %3754 = vmatpush.msra.mxu0 %v3679
      %3755 = vmatpush.msra.mxu0 %v3676
      %3756 = vmatpush.msra.mxu0 %v3673
      %3757 = vmatmul.f32.gmra.mxu0 %v2102
      %v3758 = vpop.f32.mrf.mxu0
      %v3759 = vadd.f32 0.0, %v3758
      %3760 = vmatmul.f32.gmra.mxu0 %v2105
      %v3761 = vpop.f32.mrf.mxu0
      %v3762 = vadd.f32 0.0, %v3761
      %3763 = vdwg.mxu0
      %v3764 = vperm.slane %v2336, 0
      %v3765 = vperm.slane %v2337, 0
      %v3766 = vperm.slane %v2334, 0
      %v3767 = vmul.f32 %v3713, %v3764
      %v3768 = vmul.f32 %v3736, %v3765
      %v3769 = vmul.f32 %v3759, %v3766
      %v3770 = vmul.f32 %v3716, %v3764
      %v3771 = vmul.f32 %v3739, %v3765
      %v3772 = vmul.f32 %v3762, %v3766
      %v3773 = vadd.f32 %v3767, %v2189
      %v3774 = vadd.f32 %v3768, %v2189
      %v3778 = vrot.slane %v3767, 1
      %v3779 = vrot.slane %v3768, 1
      %v3780 = vrot.slane %v3769, 1
      %3781 = vrot.lane.b32.xlu0 %v3778, 127
      %v3782 = vpop.permute.xlu0 %3781
      %3783 = vrot.lane.b32.xlu0 %v3779, 127
      %v3784 = vpop.permute.xlu0 %3783
      %3785 = vrot.lane.b32.xlu0 %v3780, 127
      %v3786 = vpop.permute.xlu0 %3785
      %v3787 = vsel %vm596, %v3782, %v3784
      %v3788 = vsel %vm596, %v3784, %v3786
      %v3791 = vadd.f32 %v3773, %v3787
      %v3792 = vadd.f32 %v3774, %v3788
      %v3793 = vrot.slane %v3767, 2
      %v3794 = vrot.slane %v3768, 2
      %v3795 = vrot.slane %v3769, 2
      %3796 = vrot.lane.b32.xlu0 %v3793, 126
      %v3797 = vpop.permute.xlu0 %3796
      %3798 = vrot.lane.b32.xlu0 %v3794, 126
      %v3799 = vpop.permute.xlu0 %3798
      %3800 = vrot.lane.b32.xlu0 %v3795, 126
      %v3801 = vpop.permute.xlu0 %3800
      %v3802 = vsel %vm789, %v3797, %v3799
      %v3803 = vsel %vm789, %v3799, %v3801
      %v3806 = vadd.f32 %v3791, %v3802
      %v3807 = vadd.f32 %v3792, %v3803
      %v3808 = vrot.slane %v3767, 3
      %v3809 = vrot.slane %v3768, 3
      %v3810 = vrot.slane %v3769, 3
      %3811 = vrot.lane.b32.xlu0 %v3808, 110
      %v3812 = vpop.permute.xlu0 %3811
      %3813 = vrot.lane.b32.xlu0 %v3809, 110
      %v3814 = vpop.permute.xlu0 %3813
      %3815 = vrot.lane.b32.xlu0 %v3810, 110
      %v3816 = vpop.permute.xlu0 %3815
      %v3817 = vsel %vm982, %v3812, %v3814
      %v3818 = vsel %vm982, %v3814, %v3816
      %v3821 = vadd.f32 %v3806, %v3817
      %v3822 = vadd.f32 %v3807, %v3818
      %v3823 = vrot.slane %v3767, 4
      %v3824 = vrot.slane %v3768, 4
      %v3825 = vrot.slane %v3769, 4
      %3826 = vrot.lane.b32.xlu0 %v3823, 109
      %v3827 = vpop.permute.xlu0 %3826
      %3828 = vrot.lane.b32.xlu0 %v3824, 109
      %v3829 = vpop.permute.xlu0 %3828
      %3830 = vrot.lane.b32.xlu0 %v3825, 109
      %v3831 = vpop.permute.xlu0 %3830
      %v3832 = vsel %vm1175, %v3827, %v3829
      %v3833 = vsel %vm1175, %v3829, %v3831
      %v3836 = vadd.f32 %v3821, %v3832
      %v3837 = vadd.f32 %v3822, %v3833
      %v3838 = vrot.slane %v3767, 5
      %v3839 = vrot.slane %v3768, 5
      %v3840 = vrot.slane %v3769, 5
      %3841 = vrot.lane.b32.xlu0 %v3838, 108
      %v3842 = vpop.permute.xlu0 %3841
      %3843 = vrot.lane.b32.xlu0 %v3839, 108
      %v3844 = vpop.permute.xlu0 %3843
      %3845 = vrot.lane.b32.xlu0 %v3840, 108
      %v3846 = vpop.permute.xlu0 %3845
      %v3847 = vsel %vm1368, %v3842, %v3844
      %v3848 = vsel %vm1368, %v3844, %v3846
      %v3851 = vadd.f32 %v3836, %v3847
      %v3852 = vadd.f32 %v3837, %v3848
      %v3853 = vrot.slane %v3767, 6
      %v3854 = vrot.slane %v3768, 6
      %v3855 = vrot.slane %v3769, 6
      %3856 = vrot.lane.b32.xlu0 %v3853, 92
      %v3857 = vpop.permute.xlu0 %3856
      %3858 = vrot.lane.b32.xlu0 %v3854, 92
      %v3859 = vpop.permute.xlu0 %3858
      %3860 = vrot.lane.b32.xlu0 %v3855, 92
      %v3861 = vpop.permute.xlu0 %3860
      %v3862 = vsel %vm1561, %v3857, %v3859
      %v3863 = vsel %vm1561, %v3859, %v3861
      %v3866 = vadd.f32 %v3851, %v3862
      %v3867 = vadd.f32 %v3852, %v3863
      %v3868 = vrot.slane %v3767, 7
      %v3869 = vrot.slane %v3768, 7
      %v3870 = vrot.slane %v3769, 7
      %3871 = vrot.lane.b32.xlu0 %v3868, 91
      %v3872 = vpop.permute.xlu0 %3871
      %3873 = vrot.lane.b32.xlu0 %v3869, 91
      %v3874 = vpop.permute.xlu0 %3873
      %3875 = vrot.lane.b32.xlu0 %v3870, 91
      %v3876 = vpop.permute.xlu0 %3875
      %v3877 = vsel %vm1754, %v3872, %v3874
      %v3878 = vsel %vm1754, %v3874, %v3876
      %v3881 = vadd.f32 %v3866, %v3877
      %v3882 = vadd.f32 %v3867, %v3878
      %3886 = vrot.lane.b32.xlu0 %v3770, 90
      %v3887 = vpop.permute.xlu0 %3886
      %3888 = vrot.lane.b32.xlu0 %v3771, 90
      %v3889 = vpop.permute.xlu0 %3888
      %3890 = vrot.lane.b32.xlu0 %v3772, 90
      %v3891 = vpop.permute.xlu0 %3890
      %v3892 = vsel %vm1947, %v3887, %v3889
      %v3893 = vsel %vm1947, %v3889, %v3891
      %v3896 = vadd.f32 %v3881, %v3892
      %v3897 = vadd.f32 %v3882, %v3893
      %v3900 = vrot.slane %v3897, 7
      %v3901 = vsel %vm2318, %v3896, %v3900
      %3903 = vst.msk [vmem:[%s374 + $0x2] sm:$0x3] %vm2324, %v3901
      %s3904 = smul.u32 4, %s20
      %p3905 = scmp.lt.s32.totalorder %s3904, 7
      %s3906 = scalar_select %p3905, %s3904, 7
      %s3907 = scalar_lea.vmem %s8, %s3906
      // Predicated region
      $region53: #{restorer_forward.1} parent=51 // pred_check
        %p3908 = pneg %p230
      $region54: #{restorer_forward.1} parent=51 // pred_check_branch
        %3910 = sbr.rel (%p3908) target = $region56
      $region55: #{restorer_forward.1} parent=51 // pred_region
        %s3911 = smul.u32 4, %s20
      $region56: #{restorer_forward.1} parent=51 // pred_fallthru
        _
    $region52: #{restorer_forward.1} parent=5 // pred_fallthru
      _
    %p3912 = scmp.le.s32.totalorder 2, %s15
    // Predicated region
    $region57: #{restorer_forward.1} parent=5 // pred_check
      %p3913 = pneg %p3912
    $region58: #{restorer_forward.1} parent=5 // pred_check_branch
      %3915 = sbr.rel (%p3913) target = $region60
    $region59: #{restorer_forward.1} parent=5 // pred_region
      %s3916 = ssub.s32 %s15, 2
      // Predicated region
      $region61: #{restorer_forward.1} parent=59 // pred_check
        %p3917 = pneg %p236
      $region62: #{restorer_forward.1} parent=59 // pred_check_branch
        %3919 = sbr.rel (%p3917) target = $region64
      $region63: #{restorer_forward.1} parent=59 // pred_region
        %s3920 = smul.u32 4, %s21
        %p3921 = scmp.lt.s32.totalorder %s3920, 7
        %s3922 = scalar_select %p3921, %s3920, 7
        %s3923 = scalar_lea.vmem %s8, %s3922
      $region64: #{restorer_forward.1} parent=59 // pred_fallthru
        _
    $region60: #{restorer_forward.1} parent=5 // pred_fallthru
      _
  $region6: #{restorer_forward.1} parent=0 // loop_footer
    %s19 = sadd.s32 1, %s15
  $region7: #{restorer_forward.1} parent=0 // loop_footer_branch
    %14 = sbr.rel target = $region3
  $region8: #{restorer_forward.1} parent=0 // loop_exit
    _

</llo_original>
